<compile_context>
chip_gen: v6e
topology: v6e:2x2x1
jax: 0.10.0
libtpu: 0.0.40
codegen_flags: <defaults>
</compile_context>

<pallas_src>
import functools

import jax
import jax.numpy as jnp
from jax import lax
from jax.experimental import pallas as pl
from jax.experimental.pallas import tpu as pltpu

CMID = 32   # Resnet hidden channels
COUT = 8    # head output channels


# ----------------------------- fused Pallas kernel ---------------------------

def _fused_kernel(x_ref, mask_ref, w1_ref, b1_ref, w2_ref, b2_ref, wh_ref, bh_ref,
                  o_ref, *, wp, lanes):
    """Whole SecondBranch forward for one lane-packed batch chunk, fully on-chip.

    x_ref : (Cin_p, W)         zero-padded images, flat padded spatial on lanes
                               (W = images_per_step * 384; per-image stride 384)
    mask  : (1, W)             1.0 at interior pixels, 0.0 at halo / lane padding
    w1    : (Cmid, 9*Cin_p)    block-1 weights, all 9 taps K-stacked (proj folded in)
    w2    : (3, Cmid, 3*Cmid)  main-block per-dy dx-stacked slabs (identity folded in)
    wh    : (Cout, Cmid)       1x1 head; b* are (C, 1) column biases
    o_ref : (Cout, W)          softmax probabilities, lane-dense
    """
    mask = mask_ref[...]

    def rot(a, off):
        # b[:, p] = a[:, (p + off) % lanes]; off is a static Python int (can be < 0),
        # pltpu.roll only accepts non-negative shifts.
        return a if off == 0 else pltpu.roll(a, shift=(-off) % lanes, axis=1)

    def dx_stack(a):
        # rows: [a(:, p-1) ; a(:, p) ; a(:, p+1)] stacked along the channel (sublane) axis
        return jnp.concatenate([rot(a, -1), a, rot(a, 1)], axis=0)

    # ---- block 1 (resnet(x, True)): Cin_p=8, all 9 taps K-stacked -> ONE MXU pass ----
    xs = dx_stack(x_ref[...])                                          # (3*Cin_p, W)
    x9 = jnp.concatenate([rot(xs, -wp), xs, rot(xs, wp)], axis=0)      # (9*Cin_p, W)
    h = jnp.dot(w1_ref[...], x9, preferred_element_type=jnp.float32)
    h = jnp.maximum(h + b1_ref[...], 0.0) * mask

    # ---- blocks 2 & 3 (resnet(x, False)): dx-stack (K=96), 3 matmuls, 2 output rolls ----
    def conv_main(a, apply_mask):
        s = dx_stack(a)                                                # (3*Cmid, W)
        p_m = jnp.dot(w2_ref[0], s, preferred_element_type=jnp.float32)   # dy = -1
        p_0 = jnp.dot(w2_ref[1], s, preferred_element_type=jnp.float32)   # dy =  0
        p_p = jnp.dot(w2_ref[2], s, preferred_element_type=jnp.float32)   # dy = +1
        # out[:, p] = p_m[:, p - wp] + p_0[:, p] + p_p[:, p + wp]
        acc = rot(p_m, -wp) + p_0 + rot(p_p, wp)
        out = jnp.maximum(acc + b2_ref[...], 0.0)
        return out * mask if apply_mask else out

    h = conv_main(h, apply_mask=True)
    h = conv_main(h, apply_mask=False)     # halo/pad columns only feed the per-column
                                           # head + softmax and are cropped downstream
    # ---- 1x1 head (32 -> 8) + softmax over the channel (sublane) axis ----
    z = jnp.dot(wh_ref[...], h, preferred_element_type=jnp.float32) + bh_ref[...]
    z = z - jnp.max(z, axis=0, keepdims=True)
    e = jnp.exp(z)
    o_ref[...] = (e / jnp.sum(e, axis=0, keepdims=True)).astype(o_ref.dtype)


# ------------------------------ wrapper / glue --------------------------------

def _fold_weights(p, cin, cin_p, cmid, cout):
    f32 = jnp.float32
    # Block 1: all 9 taps stacked along K; columns ordered (ky, kx, ci) with the input
    # channels zero-padded cin -> cin_p.  The 1x1 projection shortcut is folded into
    # the center (ky=1, kx=1) tap; both biases merge.
    w_in = jnp.pad(p["w_in"].astype(f32), ((0, 0), (0, 0), (0, cin_p - cin), (0, 0)))
    w1 = jnp.transpose(w_in, (3, 0, 1, 2)).reshape(cmid, 9 * cin_p)
    w_proj = jnp.pad(p["w_proj"].astype(f32), ((0, cin_p - cin), (0, 0)))
    c0 = 4 * cin_p
    w1 = w1.at[:, c0:c0 + cin_p].add(w_proj.T)
    b1 = (p["b_in"] + p["b_proj"]).reshape(cmid, 1)

    # Main block: per-dy slabs [W(dy,-1) | W(dy,0) | W(dy,+1)]^T, identity shortcut
    # folded into the (dy=0, dx=0) column block.  Folds are f32, algebraically exact.
    w2 = jnp.transpose(p["w_main"].astype(f32), (0, 3, 1, 2)).reshape(3, cmid, 3 * cmid)
    w2 = w2.at[1, :, cmid:2 * cmid].add(jnp.eye(cmid, dtype=f32))
    b2 = p["b_main"].reshape(cmid, 1)

    wh = p["w_head"].T                                         # (cout, cmid)
    bh = p["b_head"].reshape(cout, 1)
    return w1, b1, w2, b2, wh, bh


def _prep_input(x_nchw, cin_p, mt, nb):
    n, cin, h, w = x_nchw.shape
    hp, wp = h + 2, w + 2
    xp = jnp.pad(x_nchw, ((0, 0), (0, cin_p - cin), (1, 1), (1, 1)))   # ch + halo pad
    xf = xp.reshape(n, cin_p, hp * wp)
    xf = jnp.pad(xf, ((0, 0), (0, 0), (0, mt - hp * wp)))              # lane pad to MT
    n_pad = pl.cdiv(n, nb) * nb
    xf = jnp.pad(xf, ((0, n_pad - n), (0, 0), (0, 0)))                 # batch pad
    xf = xf.reshape(n_pad // nb, nb, cin_p, mt)
    xf = jnp.transpose(xf, (0, 2, 1, 3)).reshape(n_pad // nb, cin_p, nb * mt)
    return xf, n_pad


def _interior_mask(h, w, mt, nb):
    hp, wp = h + 2, w + 2
    q = jnp.arange(mt)
    y, x = q // wp, q % wp
    inside = (q < hp * wp) & (y >= 1) & (y <= h) & (x >= 1) & (x <= w)
    m = inside.astype(jnp.float32).reshape(1, mt)
    return jnp.tile(m, (1, nb))


def second_branch_forward(x_nchw, params, images_per_step=None):
    """x_nchw: (N, Cin, H, W) float32 -> (N, 8, H, W), matching the PyTorch module."""
    n, cin, h, w = x_nchw.shape
    cmid, cout = CMID, COUT
    cin_p = ((cin + 7) // 8) * 8                  # sublane-align the input channels
    hp, wp = h + 2, w + 2
    m = hp * wp
    mt = ((m + 127) // 128) * 128                 # per-image lane stride (tile aligned)

    if images_per_step is None:
        # Lane-pack the batch to amortize per-step overhead / DMA setup (single-TC
        # v5e/v6e optimum).  On v7x (2 TensorCores) pass a value that keeps the grid a
        # multiple of 2 when the batch allows it.
        images_per_step = n if n <= 2 else pl.cdiv(n, 2)
    nb = max(1, min(images_per_step, n))
    lanes = nb * mt

    w1, b1, w2, b2, wh, bh = _fold_weights(params, cin, cin_p, cmid, cout)
    xf, n_pad = _prep_input(x_nchw, cin_p, mt, nb)
    mask = _interior_mask(h, w, mt, nb)
    n_steps = n_pad // nb

    kernel = functools.partial(_fused_kernel, wp=wp, lanes=lanes)

    out = pl.pallas_call(
        kernel,
        out_shape=jax.ShapeDtypeStruct((n_steps, cout, lanes), x_nchw.dtype),
        grid=(n_steps,),
        in_specs=[
            pl.BlockSpec((None, cin_p, lanes), lambda i: (i, 0, 0)),
            pl.BlockSpec((1, lanes), lambda i: (0, 0)),
            pl.BlockSpec((cmid, 9 * cin_p), lambda i: (0, 0)),
            pl.BlockSpec((cmid, 1), lambda i: (0, 0)),
            pl.BlockSpec((3, cmid, 3 * cmid), lambda i: (0, 0, 0)),
            pl.BlockSpec((cmid, 1), lambda i: (0, 0)),
            pl.BlockSpec((cout, cmid), lambda i: (0, 0)),
            pl.BlockSpec((cout, 1), lambda i: (0, 0)),
        ],
        out_specs=pl.BlockSpec((None, cout, lanes), lambda i: (i, 0, 0)),
        compiler_params=pltpu.CompilerParams(dimension_semantics=("parallel",)),
    )(xf, mask, w1, b1, w2, b2, wh, bh)

    # (steps, 8, Nb*MT) -> (N, 8, HP, WP) -> crop halo -> NCHW.
    out = out.reshape(n_steps, cout, nb, mt).transpose(0, 2, 1, 3)
    out = out.reshape(n_pad, cout, mt)[:n, :, :m].reshape(n, cout, hp, wp)
    return out[:, :, 1:1 + h, 1:1 + w]


# ------------------------------ params & reference ----------------------------

def init_params(key, cin=4, cmid=CMID, cout=COUT):
    ks = jax.random.split(key, 8)
    s = 0.1
    return dict(
        w_in=s * jax.random.normal(ks[0], (3, 3, cin, cmid), jnp.float32),
        b_in=s * jax.random.normal(ks[1], (cmid,), jnp.float32),
        w_proj=s * jax.random.normal(ks[2], (cin, cmid), jnp.float32),
        b_proj=s * jax.random.normal(ks[3], (cmid,), jnp.float32),
        w_main=s * jax.random.normal(ks[4], (3, 3, cmid, cmid), jnp.float32),
        b_main=s * jax.random.normal(ks[5], (cmid,), jnp.float32),
        w_head=s * jax.random.normal(ks[6], (cmid, cout), jnp.float32),
        b_head=s * jax.random.normal(ks[7], (cout,), jnp.float32),
    )


def reference_forward(x_nchw, p):
    # HIGHEST precision so the f32 reference matches the kernel's exact-f32 MXU path.
    hi = lax.Precision.HIGHEST
    x = jnp.transpose(x_nchw, (0, 2, 3, 1))
    dn = ("NHWC", "HWIO", "NHWC")
    conv = lambda a, w: lax.conv_general_dilated(a, w, (1, 1), "SAME",
                                                 dimension_numbers=dn, precision=hi)
    h = conv(x, p["w_in"]) + p["b_in"]
    h = h + jnp.einsum("nhwc,cd->nhwd", x, p["w_proj"], precision=hi) + p["b_proj"]
    h = jax.nn.relu(h)
    for _ in range(2):
        h = jax.nn.relu(conv(h, p["w_main"]) + p["b_main"] + h)
    z = jnp.einsum("nhwc,cd->nhwd", h, p["w_head"], precision=hi) + p["b_head"]
    z = jax.nn.softmax(z, axis=-1)
    return jnp.transpose(z, (0, 3, 1, 2))


if __name__ == "__main__":
    key = jax.random.PRNGKey(0)
    kx, kp = jax.random.split(key)
    x = jax.random.normal(kx, (2, 4, 16, 16), jnp.float32)  # NCHW, like the PyTorch module
    params = init_params(kp)

    fwd = jax.jit(second_branch_forward)
    out = jax.block_until_ready(fwd(x, params))

    ref = jax.block_until_ready(reference_forward(x, params))
    assert out.shape == (2, 8, 16, 16), out.shape
    err = float(jnp.max(jnp.abs(out - ref)))
    assert jnp.allclose(out, ref, rtol=2e-5, atol=2e-5), err
    print("KERNEL_OK")
</pallas_src>

<mosaic_0001>
module attributes {stable_mosaic.version = 11 : i64} {
  func.func @_fused_kernel(%arg0: i32, %arg1: memref<1x8x768xf32, #tpu.memory_space<vmem>>, %arg2: memref<1x768xf32, #tpu.memory_space<vmem>>, %arg3: memref<32x72xf32, #tpu.memory_space<vmem>>, %arg4: memref<32x1xf32, #tpu.memory_space<vmem>>, %arg5: memref<3x32x96xf32, #tpu.memory_space<vmem>>, %arg6: memref<32x1xf32, #tpu.memory_space<vmem>>, %arg7: memref<8x32xf32, #tpu.memory_space<vmem>>, %arg8: memref<8x1xf32, #tpu.memory_space<vmem>>, %arg9: memref<1x8x768xf32, #tpu.memory_space<vmem>>) attributes {dimension_semantics = [#tpu.dimension_semantics<parallel>], iteration_bounds = array<i64: 1>, scalar_prefetch = 0 : i64, scratch_operands = 0 : i64, tpu.core_type = #tpu.core_type<tc>, window_params = [{transform_indices = @transform_0, window_bounds = array<i64: 1, 8, 768>}, {pipeline_mode = #tpu.pipeline_mode<synchronous>, transform_indices = @transform_1, window_bounds = array<i64: 1, 768>}, {pipeline_mode = #tpu.pipeline_mode<synchronous>, transform_indices = @transform_2, window_bounds = array<i64: 32, 72>}, {pipeline_mode = #tpu.pipeline_mode<synchronous>, transform_indices = @transform_3, window_bounds = array<i64: 32, 1>}, {pipeline_mode = #tpu.pipeline_mode<synchronous>, transform_indices = @transform_4, window_bounds = array<i64: 3, 32, 96>}, {pipeline_mode = #tpu.pipeline_mode<synchronous>, transform_indices = @transform_5, window_bounds = array<i64: 32, 1>}, {pipeline_mode = #tpu.pipeline_mode<synchronous>, transform_indices = @transform_6, window_bounds = array<i64: 8, 32>}, {pipeline_mode = #tpu.pipeline_mode<synchronous>, transform_indices = @transform_7, window_bounds = array<i64: 8, 1>}, {transform_indices = @transform_8, window_bounds = array<i64: 1, 8, 768>}]} {
    %c0 = arith.constant 0 : index
    %c0_0 = arith.constant 0 : index
    %0 = vector.load %arg2[%c0, %c0_0] : memref<1x768xf32, #tpu.memory_space<vmem>>, vector<1x768xf32>
    %c0_1 = arith.constant 0 : index
    %c0_2 = arith.constant 0 : index
    %c0_3 = arith.constant 0 : index
    %1 = vector.load %arg1[%c0_1, %c0_2, %c0_3] : memref<1x8x768xf32, #tpu.memory_space<vmem>>, vector<1x8x768xf32>
    %2 = vector.shape_cast %1 : vector<1x8x768xf32> to vector<8x768xf32>
    %c1_i32 = arith.constant 1 : i32
    %3 = tpu.dynamic_rotate %2 by %c1_i32 dim 1 : vector<8x768xf32>, i32 -> vector<8x768xf32>
    %c767_i32 = arith.constant 767 : i32
    %4 = tpu.dynamic_rotate %2 by %c767_i32 dim 1 : vector<8x768xf32>, i32 -> vector<8x768xf32>
    %5 = tpu.concatenate %3, %2, %4 in 0 : vector<8x768xf32>, vector<8x768xf32>, vector<8x768xf32> -> vector<24x768xf32>
    %c18_i32 = arith.constant 18 : i32
    %6 = tpu.dynamic_rotate %5 by %c18_i32 dim 1 : vector<24x768xf32>, i32 -> vector<24x768xf32>
    %c750_i32 = arith.constant 750 : i32
    %7 = tpu.dynamic_rotate %5 by %c750_i32 dim 1 : vector<24x768xf32>, i32 -> vector<24x768xf32>
    %8 = tpu.concatenate %6, %5, %7 in 0 : vector<24x768xf32>, vector<24x768xf32>, vector<24x768xf32> -> vector<72x768xf32>
    %c0_4 = arith.constant 0 : index
    %c0_5 = arith.constant 0 : index
    %9 = vector.load %arg3[%c0_4, %c0_5] : memref<32x72xf32, #tpu.memory_space<vmem>>, vector<32x72xf32>
    %cst = arith.constant dense<0.000000e+00> : vector<32x768xf32>
    %10 = tpu.matmul %9, %8, %cst {dimension_numbers = #tpu.dot_dimension_numbers<[1], [0], [0], [1], [0, 0, 1, 1], [], []>} : vector<32x72xf32>, vector<72x768xf32>, vector<32x768xf32> -> vector<32x768xf32>
    %c0_6 = arith.constant 0 : index
    %c0_7 = arith.constant 0 : index
    %11 = vector.load %arg4[%c0_6, %c0_7] : memref<32x1xf32, #tpu.memory_space<vmem>>, vector<32x1xf32>
    %12 = vector.broadcast %11 : vector<32x1xf32> to vector<32x768xf32>
    %13 = arith.addf %10, %12 : vector<32x768xf32>
    %cst_8 = arith.constant 0.000000e+00 : f32
    %14 = vector.broadcast %cst_8 : f32 to vector<32x768xf32>
    %15 = arith.maximumf %13, %14 : vector<32x768xf32>
    %16 = vector.broadcast %0 : vector<1x768xf32> to vector<32x768xf32>
    %17 = arith.mulf %15, %16 : vector<32x768xf32>
    %c1_i32_9 = arith.constant 1 : i32
    %18 = tpu.dynamic_rotate %17 by %c1_i32_9 dim 1 : vector<32x768xf32>, i32 -> vector<32x768xf32>
    %c767_i32_10 = arith.constant 767 : i32
    %19 = tpu.dynamic_rotate %17 by %c767_i32_10 dim 1 : vector<32x768xf32>, i32 -> vector<32x768xf32>
    %20 = tpu.concatenate %18, %17, %19 in 0 : vector<32x768xf32>, vector<32x768xf32>, vector<32x768xf32> -> vector<96x768xf32>
    %c0_11 = arith.constant 0 : index
    %c0_12 = arith.constant 0 : index
    %c0_13 = arith.constant 0 : index
    %21 = vector.load %arg5[%c0_11, %c0_12, %c0_13] : memref<3x32x96xf32, #tpu.memory_space<vmem>>, vector<1x32x96xf32>
    %22 = vector.shape_cast %21 : vector<1x32x96xf32> to vector<32x96xf32>
    %cst_14 = arith.constant dense<0.000000e+00> : vector<32x768xf32>
    %23 = tpu.matmul %22, %20, %cst_14 {dimension_numbers = #tpu.dot_dimension_numbers<[1], [0], [0], [1], [0, 0, 1, 1], [], []>} : vector<32x96xf32>, vector<96x768xf32>, vector<32x768xf32> -> vector<32x768xf32>
    %c1 = arith.constant 1 : index
    %c0_15 = arith.constant 0 : index
    %c0_16 = arith.constant 0 : index
    %24 = vector.load %arg5[%c1, %c0_15, %c0_16] : memref<3x32x96xf32, #tpu.memory_space<vmem>>, vector<1x32x96xf32>
    %25 = vector.shape_cast %24 : vector<1x32x96xf32> to vector<32x96xf32>
    %cst_17 = arith.constant dense<0.000000e+00> : vector<32x768xf32>
    %26 = tpu.matmul %25, %20, %cst_17 {dimension_numbers = #tpu.dot_dimension_numbers<[1], [0], [0], [1], [0, 0, 1, 1], [], []>} : vector<32x96xf32>, vector<96x768xf32>, vector<32x768xf32> -> vector<32x768xf32>
    %c2 = arith.constant 2 : index
    %c0_18 = arith.constant 0 : index
    %c0_19 = arith.constant 0 : index
    %27 = vector.load %arg5[%c2, %c0_18, %c0_19] : memref<3x32x96xf32, #tpu.memory_space<vmem>>, vector<1x32x96xf32>
    %28 = vector.shape_cast %27 : vector<1x32x96xf32> to vector<32x96xf32>
    %cst_20 = arith.constant dense<0.000000e+00> : vector<32x768xf32>
    %29 = tpu.matmul %28, %20, %cst_20 {dimension_numbers = #tpu.dot_dimension_numbers<[1], [0], [0], [1], [0, 0, 1, 1], [], []>} : vector<32x96xf32>, vector<96x768xf32>, vector<32x768xf32> -> vector<32x768xf32>
    %c18_i32_21 = arith.constant 18 : i32
    %30 = tpu.dynamic_rotate %23 by %c18_i32_21 dim 1 : vector<32x768xf32>, i32 -> vector<32x768xf32>
    %31 = arith.addf %30, %26 : vector<32x768xf32>
    %c750_i32_22 = arith.constant 750 : i32
    %32 = tpu.dynamic_rotate %29 by %c750_i32_22 dim 1 : vector<32x768xf32>, i32 -> vector<32x768xf32>
    %33 = arith.addf %31, %32 : vector<32x768xf32>
    %c0_23 = arith.constant 0 : index
    %c0_24 = arith.constant 0 : index
    %34 = vector.load %arg6[%c0_23, %c0_24] : memref<32x1xf32, #tpu.memory_space<vmem>>, vector<32x1xf32>
    %35 = vector.broadcast %34 : vector<32x1xf32> to vector<32x768xf32>
    %36 = arith.addf %33, %35 : vector<32x768xf32>
    %cst_25 = arith.constant 0.000000e+00 : f32
    %37 = vector.broadcast %cst_25 : f32 to vector<32x768xf32>
    %38 = arith.maximumf %36, %37 : vector<32x768xf32>
    %39 = vector.broadcast %0 : vector<1x768xf32> to vector<32x768xf32>
    %40 = arith.mulf %38, %39 : vector<32x768xf32>
    %c1_i32_26 = arith.constant 1 : i32
    %41 = tpu.dynamic_rotate %40 by %c1_i32_26 dim 1 : vector<32x768xf32>, i32 -> vector<32x768xf32>
    %c767_i32_27 = arith.constant 767 : i32
    %42 = tpu.dynamic_rotate %40 by %c767_i32_27 dim 1 : vector<32x768xf32>, i32 -> vector<32x768xf32>
    %43 = tpu.concatenate %41, %40, %42 in 0 : vector<32x768xf32>, vector<32x768xf32>, vector<32x768xf32> -> vector<96x768xf32>
    %c0_28 = arith.constant 0 : index
    %c0_29 = arith.constant 0 : index
    %c0_30 = arith.constant 0 : index
    %44 = vector.load %arg5[%c0_28, %c0_29, %c0_30] : memref<3x32x96xf32, #tpu.memory_space<vmem>>, vector<1x32x96xf32>
    %45 = vector.shape_cast %44 : vector<1x32x96xf32> to vector<32x96xf32>
    %cst_31 = arith.constant dense<0.000000e+00> : vector<32x768xf32>
    %46 = tpu.matmul %45, %43, %cst_31 {dimension_numbers = #tpu.dot_dimension_numbers<[1], [0], [0], [1], [0, 0, 1, 1], [], []>} : vector<32x96xf32>, vector<96x768xf32>, vector<32x768xf32> -> vector<32x768xf32>
    %c1_32 = arith.constant 1 : index
    %c0_33 = arith.constant 0 : index
    %c0_34 = arith.constant 0 : index
    %47 = vector.load %arg5[%c1_32, %c0_33, %c0_34] : memref<3x32x96xf32, #tpu.memory_space<vmem>>, vector<1x32x96xf32>
    %48 = vector.shape_cast %47 : vector<1x32x96xf32> to vector<32x96xf32>
    %cst_35 = arith.constant dense<0.000000e+00> : vector<32x768xf32>
    %49 = tpu.matmul %48, %43, %cst_35 {dimension_numbers = #tpu.dot_dimension_numbers<[1], [0], [0], [1], [0, 0, 1, 1], [], []>} : vector<32x96xf32>, vector<96x768xf32>, vector<32x768xf32> -> vector<32x768xf32>
    %c2_36 = arith.constant 2 : index
    %c0_37 = arith.constant 0 : index
    %c0_38 = arith.constant 0 : index
    %50 = vector.load %arg5[%c2_36, %c0_37, %c0_38] : memref<3x32x96xf32, #tpu.memory_space<vmem>>, vector<1x32x96xf32>
    %51 = vector.shape_cast %50 : vector<1x32x96xf32> to vector<32x96xf32>
    %cst_39 = arith.constant dense<0.000000e+00> : vector<32x768xf32>
    %52 = tpu.matmul %51, %43, %cst_39 {dimension_numbers = #tpu.dot_dimension_numbers<[1], [0], [0], [1], [0, 0, 1, 1], [], []>} : vector<32x96xf32>, vector<96x768xf32>, vector<32x768xf32> -> vector<32x768xf32>
    %c18_i32_40 = arith.constant 18 : i32
    %53 = tpu.dynamic_rotate %46 by %c18_i32_40 dim 1 : vector<32x768xf32>, i32 -> vector<32x768xf32>
    %54 = arith.addf %53, %49 : vector<32x768xf32>
    %c750_i32_41 = arith.constant 750 : i32
    %55 = tpu.dynamic_rotate %52 by %c750_i32_41 dim 1 : vector<32x768xf32>, i32 -> vector<32x768xf32>
    %56 = arith.addf %54, %55 : vector<32x768xf32>
    %c0_42 = arith.constant 0 : index
    %c0_43 = arith.constant 0 : index
    %57 = vector.load %arg6[%c0_42, %c0_43] : memref<32x1xf32, #tpu.memory_space<vmem>>, vector<32x1xf32>
    %58 = vector.broadcast %57 : vector<32x1xf32> to vector<32x768xf32>
    %59 = arith.addf %56, %58 : vector<32x768xf32>
    %cst_44 = arith.constant 0.000000e+00 : f32
    %60 = vector.broadcast %cst_44 : f32 to vector<32x768xf32>
    %61 = arith.maximumf %59, %60 : vector<32x768xf32>
    %c0_45 = arith.constant 0 : index
    %c0_46 = arith.constant 0 : index
    %62 = vector.load %arg7[%c0_45, %c0_46] : memref<8x32xf32, #tpu.memory_space<vmem>>, vector<8x32xf32>
    %cst_47 = arith.constant dense<0.000000e+00> : vector<8x768xf32>
    %63 = tpu.matmul %62, %61, %cst_47 {dimension_numbers = #tpu.dot_dimension_numbers<[1], [0], [0], [1], [0, 0, 1, 1], [], []>} : vector<8x32xf32>, vector<32x768xf32>, vector<8x768xf32> -> vector<8x768xf32>
    %c0_48 = arith.constant 0 : index
    %c0_49 = arith.constant 0 : index
    %64 = vector.load %arg8[%c0_48, %c0_49] : memref<8x1xf32, #tpu.memory_space<vmem>>, vector<8x1xf32>
    %65 = vector.broadcast %64 : vector<8x1xf32> to vector<8x768xf32>
    %66 = arith.addf %63, %65 : vector<8x768xf32>
    %cst_50 = arith.constant dense<0xFF800000> : vector<768xf32>
    %67 = vector.multi_reduction <maximumf>, %66, %cst_50 [0] : vector<8x768xf32> to vector<768xf32>
    %68 = vector.shape_cast %67 : vector<768xf32> to vector<1x768xf32>
    %69 = vector.broadcast %68 : vector<1x768xf32> to vector<8x768xf32>
    %70 = arith.subf %66, %69 : vector<8x768xf32>
    %71 = math.exp %70 : vector<8x768xf32>
    %cst_51 = arith.constant dense<0.000000e+00> : vector<768xf32>
    %72 = vector.multi_reduction <add>, %71, %cst_51 [0] : vector<8x768xf32> to vector<768xf32>
    %73 = vector.shape_cast %72 : vector<768xf32> to vector<1x768xf32>
    %74 = vector.broadcast %73 : vector<1x768xf32> to vector<8x768xf32>
    %75 = arith.divf %71, %74 : vector<8x768xf32>
    %c0_52 = arith.constant 0 : index
    %c0_53 = arith.constant 0 : index
    %c0_54 = arith.constant 0 : index
    %76 = vector.load %arg9[%c0_52, %c0_53, %c0_54] : memref<1x8x768xf32, #tpu.memory_space<vmem>>, vector<1x8x768xf32>
    %77 = vector.shape_cast %76 : vector<1x8x768xf32> to vector<8x768xf32>
    %78 = vector.shape_cast %75 : vector<8x768xf32> to vector<1x8x768xf32>
    tpu.vector_store %arg9[%c0_52, %c0_53, %c0_54], %78 {strides = array<i32>} : memref<1x8x768xf32, #tpu.memory_space<vmem>>, vector<1x8x768xf32>,
    return
  }
  func.func @transform_0(%arg0: i32) -> (i32, i32, i32) {
    %c0_i32 = arith.constant 0 : i32
    %c0_i32_0 = arith.constant 0 : i32
    %c0_i32_1 = arith.constant 0 : i32
    return %arg0, %c0_i32, %c0_i32_0 : i32, i32, i32
  }
  func.func @transform_1(%arg0: i32) -> (i32, i32) {
    %c0_i32 = arith.constant 0 : i32
    %c0_i32_0 = arith.constant 0 : i32
    %c0_i32_1 = arith.constant 0 : i32
    return %c0_i32, %c0_i32_0 : i32, i32
  }
  func.func @transform_2(%arg0: i32) -> (i32, i32) {
    %c0_i32 = arith.constant 0 : i32
    %c0_i32_0 = arith.constant 0 : i32
    %c0_i32_1 = arith.constant 0 : i32
    return %c0_i32, %c0_i32_0 : i32, i32
  }
  func.func @transform_3(%arg0: i32) -> (i32, i32) {
    %c0_i32 = arith.constant 0 : i32
    %c0_i32_0 = arith.constant 0 : i32
    %c0_i32_1 = arith.constant 0 : i32
    return %c0_i32, %c0_i32_0 : i32, i32
  }
  func.func @transform_4(%arg0: i32) -> (i32, i32, i32) {
    %c0_i32 = arith.constant 0 : i32
    %c0_i32_0 = arith.constant 0 : i32
    %c0_i32_1 = arith.constant 0 : i32
    %c0_i32_2 = arith.constant 0 : i32
    return %c0_i32, %c0_i32_0, %c0_i32_1 : i32, i32, i32
  }
  func.func @transform_5(%arg0: i32) -> (i32, i32) {
    %c0_i32 = arith.constant 0 : i32
    %c0_i32_0 = arith.constant 0 : i32
    %c0_i32_1 = arith.constant 0 : i32
    return %c0_i32, %c0_i32_0 : i32, i32
  }
  func.func @transform_6(%arg0: i32) -> (i32, i32) {
    %c0_i32 = arith.constant 0 : i32
    %c0_i32_0 = arith.constant 0 : i32
    %c0_i32_1 = arith.constant 0 : i32
    return %c0_i32, %c0_i32_0 : i32, i32
  }
  func.func @transform_7(%arg0: i32) -> (i32, i32) {
    %c0_i32 = arith.constant 0 : i32
    %c0_i32_0 = arith.constant 0 : i32
    %c0_i32_1 = arith.constant 0 : i32
    return %c0_i32, %c0_i32_0 : i32, i32
  }
  func.func @transform_8(%arg0: i32) -> (i32, i32, i32) {
    %c0_i32 = arith.constant 0 : i32
    %c0_i32_0 = arith.constant 0 : i32
    %c0_i32_1 = arith.constant 0 : i32
    return %arg0, %c0_i32, %c0_i32_0 : i32, i32, i32
  }
}

</mosaic_0001>

<llo_original>
// kernel: second_branch_forward.1
$region0: #{second_branch_forward.1}
  #allocation0 [shape = 'u32[]', space=smem, size = 0x4, offset = 0x4, fixed_abs, tag = 'smem constant byte address 0x4 - core index']
  #allocation1 [shape = 'u32[144,128]{1,0:T(1,128)}', space=vmem, size = 0x12000, scoped, tag = 'internal scratch']
  %s0 = inlined_call_operand.vmem [shape: f32[1,8,768], index: 0, kind: input, shape index: {}]
  %s1 = inlined_call_operand.vmem [shape: f32[1,768], index: 1, kind: input, shape index: {}]
  %s2 = inlined_call_operand.vmem [shape: f32[32,72], index: 2, kind: input, shape index: {}]
  %s3 = inlined_call_operand.vmem [shape: f32[32,1], index: 3, kind: input, shape index: {}]
  %s4 = inlined_call_operand.vmem [shape: f32[3,32,96], index: 4, kind: input, shape index: {}]
  %s5 = inlined_call_operand.vmem [shape: f32[32,1], index: 5, kind: input, shape index: {}]
  %s6 = inlined_call_operand.vmem [shape: f32[8,32], index: 6, kind: input, shape index: {}]
  %s7 = inlined_call_operand.vmem [shape: f32[8,1], index: 7, kind: input, shape index: {}]
  %s8 = inlined_call_operand.vmem [shape: f32[1,8,768], index: 8, kind: output, shape index: {}]
  %s9 = sld [smem:[#allocation0]]
  $region42: #{second_branch_forward.1} parent=0
    _
  %s11 = ssub.s32 1, %s9
  %s12 = scalar_select 0, %s11, %s9
  // Predicated region
  $region2: #{second_branch_forward.1} parent=0 // pred_check
    _
  $region3: #{second_branch_forward.1} parent=0 // pred_check_branch
    %14 = sbr.rel (0) target = $region5
  $region4: #{second_branch_forward.1} parent=0 // pred_region
    _
  $region5: #{second_branch_forward.1} parent=0 // pred_fallthru
    _
  // Predicated region
  $region6: #{second_branch_forward.1} parent=0 // pred_check
    _
  $region7: #{second_branch_forward.1} parent=0 // pred_check_branch
    %16 = sbr.rel (0) target = $region9
  $region8: #{second_branch_forward.1} parent=0 // pred_region
    _
  $region9: #{second_branch_forward.1} parent=0 // pred_fallthru
    _
  // Predicated region
  $region10: #{second_branch_forward.1} parent=0 // pred_check
    _
  $region11: #{second_branch_forward.1} parent=0 // pred_check_branch
    %18 = sbr.rel (0) target = $region13
  $region12: #{second_branch_forward.1} parent=0 // pred_region
    _
  $region13: #{second_branch_forward.1} parent=0 // pred_fallthru
    _
  // Predicated region
  $region14: #{second_branch_forward.1} parent=0 // pred_check
    _
  $region15: #{second_branch_forward.1} parent=0 // pred_check_branch
    %20 = sbr.rel (0) target = $region17
  $region16: #{second_branch_forward.1} parent=0 // pred_region
    _
  $region17: #{second_branch_forward.1} parent=0 // pred_fallthru
    _
  // Predicated region
  $region18: #{second_branch_forward.1} parent=0 // pred_check
    _
  $region19: #{second_branch_forward.1} parent=0 // pred_check_branch
    %22 = sbr.rel (0) target = $region21
  $region20: #{second_branch_forward.1} parent=0 // pred_region
    _
  $region21: #{second_branch_forward.1} parent=0 // pred_fallthru
    _
  // Predicated region
  $region22: #{second_branch_forward.1} parent=0 // pred_check
    _
  $region23: #{second_branch_forward.1} parent=0 // pred_check_branch
    %24 = sbr.rel (0) target = $region25
  $region24: #{second_branch_forward.1} parent=0 // pred_region
    _
  $region25: #{second_branch_forward.1} parent=0 // pred_fallthru
    _
  // Predicated region
  $region26: #{second_branch_forward.1} parent=0 // pred_check
    _
  $region27: #{second_branch_forward.1} parent=0 // pred_check_branch
    %26 = sbr.rel (0) target = $region29
  $region28: #{second_branch_forward.1} parent=0 // pred_region
    _
  $region29: #{second_branch_forward.1} parent=0 // pred_fallthru
    _
  // Predicated region
  $region30: #{second_branch_forward.1} parent=0 // pred_check
    _
  $region31: #{second_branch_forward.1} parent=0 // pred_check_branch
    %28 = sbr.rel (0) target = $region33
  $region32: #{second_branch_forward.1} parent=0 // pred_region
    _
  $region33: #{second_branch_forward.1} parent=0 // pred_fallthru
    _
  %v29 = vld [vmem:[%s1] sm:$0x3f]
  %v30 = vld [vmem:[%s0] sm:$0xff]
  %v31 = vld [vmem:[%s0 + $0x8] sm:$0xff]
  %v32 = vld [vmem:[%s0 + $0x10] sm:$0xff]
  %v33 = vld [vmem:[%s0 + $0x18] sm:$0xff]
  %v34 = vld [vmem:[%s0 + $0x20] sm:$0xff]
  %v35 = vld [vmem:[%s0 + $0x28] sm:$0xff]
  %36 = vrot.lane.b32.xlu0 %v30, 1
  %v37 = vpop.permute.xlu0 %36
  %38 = vrot.lane.b32.xlu0 %v31, 1
  %v39 = vpop.permute.xlu0 %38
  %40 = vrot.lane.b32.xlu0 %v32, 1
  %v41 = vpop.permute.xlu0 %40
  %42 = vrot.lane.b32.xlu0 %v33, 1
  %v43 = vpop.permute.xlu0 %42
  %44 = vrot.lane.b32.xlu0 %v34, 1
  %v45 = vpop.permute.xlu0 %44
  %46 = vrot.lane.b32.xlu0 %v35, 1
  %v47 = vpop.permute.xlu0 %46
  %v48 = vlaneseq
  %v49 = vand.u32 %v48, 127
  %vm50 = vcmp.lt.s32.totalorder %v49, 1
  %v51 = vsel %vm50, %v45, %v47
  %v52 = vsel %vm50, %v43, %v45
  %v53 = vsel %vm50, %v41, %v43
  %v54 = vsel %vm50, %v39, %v41
  %v55 = vsel %vm50, %v37, %v39
  %v56 = vsel %vm50, %v47, %v37
  %57 = vrot.lane.b32.xlu0 %v30, 127
  %v58 = vpop.permute.xlu0 %57
  %59 = vrot.lane.b32.xlu0 %v31, 127
  %v60 = vpop.permute.xlu0 %59
  %61 = vrot.lane.b32.xlu0 %v32, 127
  %v62 = vpop.permute.xlu0 %61
  %63 = vrot.lane.b32.xlu0 %v33, 127
  %v64 = vpop.permute.xlu0 %63
  %65 = vrot.lane.b32.xlu0 %v34, 127
  %v66 = vpop.permute.xlu0 %65
  %67 = vrot.lane.b32.xlu0 %v35, 127
  %v68 = vpop.permute.xlu0 %67
  %vm69 = vcmp.lt.s32.totalorder %v49, 127
  %v70 = vsel %vm69, %v66, %v68
  %v71 = vsel %vm69, %v64, %v66
  %v72 = vsel %vm69, %v62, %v64
  %v73 = vsel %vm69, %v60, %v62
  %v74 = vsel %vm69, %v58, %v60
  %v75 = vsel %vm69, %v68, %v58
  %76 = vrot.lane.b32.xlu0 %v56, 18
  %v77 = vpop.permute.xlu0 %76
  %78 = vrot.lane.b32.xlu0 %v30, 18
  %v79 = vpop.permute.xlu0 %78
  %80 = vrot.lane.b32.xlu0 %v74, 18
  %v81 = vpop.permute.xlu0 %80
  %82 = vrot.lane.b32.xlu0 %v55, 18
  %v83 = vpop.permute.xlu0 %82
  %84 = vrot.lane.b32.xlu0 %v31, 18
  %v85 = vpop.permute.xlu0 %84
  %86 = vrot.lane.b32.xlu0 %v73, 18
  %v87 = vpop.permute.xlu0 %86
  %88 = vrot.lane.b32.xlu0 %v54, 18
  %v89 = vpop.permute.xlu0 %88
  %90 = vrot.lane.b32.xlu0 %v32, 18
  %v91 = vpop.permute.xlu0 %90
  %92 = vrot.lane.b32.xlu0 %v72, 18
  %v93 = vpop.permute.xlu0 %92
  %94 = vrot.lane.b32.xlu0 %v53, 18
  %v95 = vpop.permute.xlu0 %94
  %96 = vrot.lane.b32.xlu0 %v33, 18
  %v97 = vpop.permute.xlu0 %96
  %98 = vrot.lane.b32.xlu0 %v71, 18
  %v99 = vpop.permute.xlu0 %98
  %100 = vrot.lane.b32.xlu0 %v52, 18
  %v101 = vpop.permute.xlu0 %100
  %102 = vrot.lane.b32.xlu0 %v34, 18
  %v103 = vpop.permute.xlu0 %102
  %104 = vrot.lane.b32.xlu0 %v70, 18
  %v105 = vpop.permute.xlu0 %104
  %106 = vrot.lane.b32.xlu0 %v51, 18
  %v107 = vpop.permute.xlu0 %106
  %108 = vrot.lane.b32.xlu0 %v35, 18
  %v109 = vpop.permute.xlu0 %108
  %110 = vrot.lane.b32.xlu0 %v75, 18
  %v111 = vpop.permute.xlu0 %110
  %vm112 = vcmp.lt.s32.totalorder %v49, 18
  %v113 = vsel %vm112, %v101, %v107
  %v114 = vsel %vm112, %v103, %v109
  %v115 = vsel %vm112, %v105, %v111
  %v116 = vsel %vm112, %v95, %v101
  %v117 = vsel %vm112, %v97, %v103
  %v118 = vsel %vm112, %v99, %v105
  %v119 = vsel %vm112, %v89, %v95
  %v120 = vsel %vm112, %v91, %v97
  %v121 = vsel %vm112, %v93, %v99
  %v122 = vsel %vm112, %v83, %v89
  %v123 = vsel %vm112, %v85, %v91
  %v124 = vsel %vm112, %v87, %v93
  %v125 = vsel %vm112, %v77, %v83
  %v126 = vsel %vm112, %v79, %v85
  %v127 = vsel %vm112, %v81, %v87
  %v128 = vsel %vm112, %v107, %v77
  %v129 = vsel %vm112, %v109, %v79
  %v130 = vsel %vm112, %v111, %v81
  %131 = vrot.lane.b32.xlu0 %v56, 110
  %v132 = vpop.permute.xlu0 %131
  %133 = vrot.lane.b32.xlu0 %v30, 110
  %v134 = vpop.permute.xlu0 %133
  %135 = vrot.lane.b32.xlu0 %v74, 110
  %v136 = vpop.permute.xlu0 %135
  %137 = vrot.lane.b32.xlu0 %v55, 110
  %v138 = vpop.permute.xlu0 %137
  %139 = vrot.lane.b32.xlu0 %v31, 110
  %v140 = vpop.permute.xlu0 %139
  %141 = vrot.lane.b32.xlu0 %v73, 110
  %v142 = vpop.permute.xlu0 %141
  %143 = vrot.lane.b32.xlu0 %v54, 110
  %v144 = vpop.permute.xlu0 %143
  %145 = vrot.lane.b32.xlu0 %v32, 110
  %v146 = vpop.permute.xlu0 %145
  %147 = vrot.lane.b32.xlu0 %v72, 110
  %v148 = vpop.permute.xlu0 %147
  %149 = vrot.lane.b32.xlu0 %v53, 110
  %v150 = vpop.permute.xlu0 %149
  %151 = vrot.lane.b32.xlu0 %v33, 110
  %v152 = vpop.permute.xlu0 %151
  %153 = vrot.lane.b32.xlu0 %v71, 110
  %v154 = vpop.permute.xlu0 %153
  %155 = vrot.lane.b32.xlu0 %v52, 110
  %v156 = vpop.permute.xlu0 %155
  %157 = vrot.lane.b32.xlu0 %v34, 110
  %v158 = vpop.permute.xlu0 %157
  %159 = vrot.lane.b32.xlu0 %v70, 110
  %v160 = vpop.permute.xlu0 %159
  %161 = vrot.lane.b32.xlu0 %v51, 110
  %v162 = vpop.permute.xlu0 %161
  %163 = vrot.lane.b32.xlu0 %v35, 110
  %v164 = vpop.permute.xlu0 %163
  %165 = vrot.lane.b32.xlu0 %v75, 110
  %v166 = vpop.permute.xlu0 %165
  %vm167 = vcmp.lt.s32.totalorder %v49, 110
  %v168 = vsel %vm167, %v156, %v162
  %v169 = vsel %vm167, %v158, %v164
  %v170 = vsel %vm167, %v160, %v166
  %v171 = vsel %vm167, %v150, %v156
  %v172 = vsel %vm167, %v152, %v158
  %v173 = vsel %vm167, %v154, %v160
  %v174 = vsel %vm167, %v144, %v150
  %v175 = vsel %vm167, %v146, %v152
  %v176 = vsel %vm167, %v148, %v154
  %v177 = vsel %vm167, %v138, %v144
  %v178 = vsel %vm167, %v140, %v146
  %v179 = vsel %vm167, %v142, %v148
  %v180 = vsel %vm167, %v132, %v138
  %v181 = vsel %vm167, %v134, %v140
  %v182 = vsel %vm167, %v136, %v142
  %v183 = vsel %vm167, %v162, %v132
  %v184 = vsel %vm167, %v164, %v134
  %v185 = vsel %vm167, %v166, %v136
  %v186 = vld [vmem:[%s2] sm:$0xff]
  %v187 = vld [vmem:[%s2 + $0x8] sm:$0xff]
  %v188 = vld [vmem:[%s2 + $0x10] sm:$0xff]
  %v189 = vld [vmem:[%s2 + $0x18] sm:$0xff]
  %v190 = vld [vmem:[%s3] sm:$0xff]
  %v191 = vld [vmem:[%s3 + $0x8] sm:$0xff]
  %v192 = vld [vmem:[%s3 + $0x10] sm:$0xff]
  %v193 = vld [vmem:[%s3 + $0x18] sm:$0xff]
  %195 = vset.pattern.permute.xlu0 0
  %196 = vperm.xlu0 %195, %v190
  %v197 = vpop.permute.xlu0 %196
  %200 = vset.pattern.permute.xlu0 0
  %201 = vperm.xlu0 %200, %v191
  %v202 = vpop.permute.xlu0 %201
  %205 = vset.pattern.permute.xlu0 0
  %206 = vperm.xlu0 %205, %v192
  %v207 = vpop.permute.xlu0 %206
  %210 = vset.pattern.permute.xlu0 0
  %211 = vperm.xlu0 %210, %v193
  %v212 = vpop.permute.xlu0 %211
  %vm214 = vcmask 588800
  %v216 = vsel %vm214, %v186, 0
  %v219 = vsel %vm214, %v187, 0
  %v222 = vsel %vm214, %v188, 0
  %v225 = vsel %vm214, %v189, 0
  %227 = vmatprep.subr.mxu0 0.0
  %228 = vmatpush1.msra.mxu0 0.0
  %229 = vmatprep.subr.mxu0 0.0
  %230 = vmatpush1.msra.mxu0 0.0
  %231 = vmatprep.subr.mxu0 0.0
  %232 = vmatpush1.msra.mxu0 0.0
  %233 = vmatprep.subr.mxu0 0.0
  %234 = vmatpush1.msra.mxu0 0.0
  %235 = vmatprep.subr.mxu0 0.0
  %236 = vmatpush1.msra.mxu0 0.0
  %237 = vmatprep.subr.mxu0 0.0
  %238 = vmatpush1.msra.mxu0 0.0
  %239 = vmatprep.subr.mxu0 0.0
  %240 = vmatpush1.msra.mxu0 0.0
  %241 = vmatprep.subr.mxu0 %v179
  %242 = vmatpush1.msra.mxu0 %v182
  %243 = vmatprep.subr.mxu0 %v178
  %244 = vmatpush1.msra.mxu0 %v181
  %245 = vmatprep.subr.mxu0 %v177
  %246 = vmatpush1.msra.mxu0 %v180
  %247 = vmatprep.subr.mxu0 %v73
  %248 = vmatpush1.msra.mxu0 %v74
  %249 = vmatprep.subr.mxu0 %v31
  %250 = vmatpush1.msra.mxu0 %v30
  %251 = vmatprep.subr.mxu0 %v55
  %252 = vmatpush1.msra.mxu0 %v56
  %253 = vmatprep.subr.mxu0 %v127
  %254 = vmatpush1.msra.mxu0 %v130
  %255 = vmatprep.subr.mxu0 %v126
  %256 = vmatpush1.msra.mxu0 %v129
  %257 = vmatprep.subr.mxu0 %v125
  %258 = vmatpush1.msra.mxu0 %v128
  %259 = vmatprep.subr.mxu0 0.0
  %260 = vmatpush2.msra.mxu0 0.0
  %261 = vmatprep.subr.mxu0 0.0
  %262 = vmatpush2.msra.mxu0 0.0
  %263 = vmatprep.subr.mxu0 0.0
  %264 = vmatpush2.msra.mxu0 0.0
  %265 = vmatprep.subr.mxu0 0.0
  %266 = vmatpush2.msra.mxu0 0.0
  %267 = vmatprep.subr.mxu0 0.0
  %268 = vmatpush2.msra.mxu0 0.0
  %269 = vmatprep.subr.mxu0 0.0
  %270 = vmatpush2.msra.mxu0 0.0
  %271 = vmatprep.subr.mxu0 0.0
  %272 = vmatpush2.msra.mxu0 0.0
  %273 = vmatprep.subr.mxu0 0.0
  %274 = vmatpush2.msra.mxu0 0.0
  %275 = vmatprep.subr.mxu0 0.0
  %276 = vmatpush2.msra.mxu0 0.0
  %277 = vmatprep.subr.mxu0 0.0
  %278 = vmatpush2.msra.mxu0 0.0
  %279 = vmatprep.subr.mxu0 0.0
  %280 = vmatpush2.msra.mxu0 0.0
  %281 = vmatprep.subr.mxu0 0.0
  %282 = vmatpush2.msra.mxu0 0.0
  %283 = vmatprep.subr.mxu0 0.0
  %284 = vmatpush2.msra.mxu0 0.0
  %285 = vmatprep.subr.mxu0 0.0
  %286 = vmatpush2.msra.mxu0 0.0
  %287 = vmatprep.subr.mxu0 0.0
  %288 = vmatpush2.msra.mxu0 0.0
  %289 = vmatprep.subr.mxu0 0.0
  %290 = vmatpush2.msra.mxu0 0.0
  %291 = vmatprep.mubr.f32.mxu0 0.0
  %292 = vmatmul.mubr.f32.gmra.mxu0 %v216
  %v293 = vpop.f32.mrf.mxu0
  %v294 = vadd.f32 %v197, %v293
  %v295 = vpop.f32.mrf.mxu0
  %v296 = vadd.f32 %v197, %v295
  %297 = vmatprep.mubr.f32.mxu0 0.0
  %298 = vmatmul.mubr.f32.gmra.mxu0 %v219
  %v299 = vpop.f32.mrf.mxu0
  %v300 = vadd.f32 %v202, %v299
  %v301 = vpop.f32.mrf.mxu0
  %v302 = vadd.f32 %v202, %v301
  %303 = vmatprep.mubr.f32.mxu0 0.0
  %304 = vmatmul.mubr.f32.gmra.mxu0 %v222
  %v305 = vpop.f32.mrf.mxu0
  %v306 = vadd.f32 %v207, %v305
  %v307 = vpop.f32.mrf.mxu0
  %v308 = vadd.f32 %v207, %v307
  %309 = vmatprep.mubr.f32.mxu0 0.0
  %310 = vmatmul.mubr.f32.gmra.mxu0 %v225
  %v311 = vpop.f32.mrf.mxu0
  %v312 = vadd.f32 %v212, %v311
  %v313 = vpop.f32.mrf.mxu0
  %v314 = vadd.f32 %v212, %v313
  %315 = vdwg.mxu0
  %316 = vmatprep.subr.mxu0 0.0
  %317 = vmatpush1.msra.mxu0 0.0
  %318 = vmatprep.subr.mxu0 0.0
  %319 = vmatpush1.msra.mxu0 0.0
  %320 = vmatprep.subr.mxu0 0.0
  %321 = vmatpush1.msra.mxu0 0.0
  %322 = vmatprep.subr.mxu0 0.0
  %323 = vmatpush1.msra.mxu0 0.0
  %324 = vmatprep.subr.mxu0 0.0
  %325 = vmatpush1.msra.mxu0 0.0
  %326 = vmatprep.subr.mxu0 0.0
  %327 = vmatpush1.msra.mxu0 0.0
  %328 = vmatprep.subr.mxu0 0.0
  %329 = vmatpush1.msra.mxu0 0.0
  %330 = vmatprep.subr.mxu0 %v173
  %331 = vmatpush1.msra.mxu0 %v176
  %332 = vmatprep.subr.mxu0 %v172
  %333 = vmatpush1.msra.mxu0 %v175
  %334 = vmatprep.subr.mxu0 %v171
  %335 = vmatpush1.msra.mxu0 %v174
  %336 = vmatprep.subr.mxu0 %v71
  %337 = vmatpush1.msra.mxu0 %v72
  %338 = vmatprep.subr.mxu0 %v33
  %339 = vmatpush1.msra.mxu0 %v32
  %340 = vmatprep.subr.mxu0 %v53
  %341 = vmatpush1.msra.mxu0 %v54
  %342 = vmatprep.subr.mxu0 %v121
  %343 = vmatpush1.msra.mxu0 %v124
  %344 = vmatprep.subr.mxu0 %v120
  %345 = vmatpush1.msra.mxu0 %v123
  %346 = vmatprep.subr.mxu0 %v119
  %347 = vmatpush1.msra.mxu0 %v122
  %348 = vmatprep.subr.mxu0 0.0
  %349 = vmatpush2.msra.mxu0 0.0
  %350 = vmatprep.subr.mxu0 0.0
  %351 = vmatpush2.msra.mxu0 0.0
  %352 = vmatprep.subr.mxu0 0.0
  %353 = vmatpush2.msra.mxu0 0.0
  %354 = vmatprep.subr.mxu0 0.0
  %355 = vmatpush2.msra.mxu0 0.0
  %356 = vmatprep.subr.mxu0 0.0
  %357 = vmatpush2.msra.mxu0 0.0
  %358 = vmatprep.subr.mxu0 0.0
  %359 = vmatpush2.msra.mxu0 0.0
  %360 = vmatprep.subr.mxu0 0.0
  %361 = vmatpush2.msra.mxu0 0.0
  %362 = vmatprep.subr.mxu0 0.0
  %363 = vmatpush2.msra.mxu0 0.0
  %364 = vmatprep.subr.mxu0 0.0
  %365 = vmatpush2.msra.mxu0 0.0
  %366 = vmatprep.subr.mxu0 0.0
  %367 = vmatpush2.msra.mxu0 0.0
  %368 = vmatprep.subr.mxu0 0.0
  %369 = vmatpush2.msra.mxu0 0.0
  %370 = vmatprep.subr.mxu0 0.0
  %371 = vmatpush2.msra.mxu0 0.0
  %372 = vmatprep.subr.mxu0 0.0
  %373 = vmatpush2.msra.mxu0 0.0
  %374 = vmatprep.subr.mxu0 0.0
  %375 = vmatpush2.msra.mxu0 0.0
  %376 = vmatprep.subr.mxu0 0.0
  %377 = vmatpush2.msra.mxu0 0.0
  %378 = vmatprep.subr.mxu0 0.0
  %379 = vmatpush2.msra.mxu0 0.0
  %380 = vmatprep.mubr.f32.mxu0 0.0
  %381 = vmatmul.mubr.f32.gmra.mxu0 %v216
  %v382 = vpop.f32.mrf.mxu0
  %v383 = vadd.f32 %v197, %v382
  %v384 = vpop.f32.mrf.mxu0
  %v385 = vadd.f32 %v197, %v384
  %386 = vmatprep.mubr.f32.mxu0 0.0
  %387 = vmatmul.mubr.f32.gmra.mxu0 %v219
  %v388 = vpop.f32.mrf.mxu0
  %v389 = vadd.f32 %v202, %v388
  %v390 = vpop.f32.mrf.mxu0
  %v391 = vadd.f32 %v202, %v390
  %392 = vmatprep.mubr.f32.mxu0 0.0
  %393 = vmatmul.mubr.f32.gmra.mxu0 %v222
  %v394 = vpop.f32.mrf.mxu0
  %v395 = vadd.f32 %v207, %v394
  %v396 = vpop.f32.mrf.mxu0
  %v397 = vadd.f32 %v207, %v396
  %398 = vmatprep.mubr.f32.mxu0 0.0
  %399 = vmatmul.mubr.f32.gmra.mxu0 %v225
  %v400 = vpop.f32.mrf.mxu0
  %v401 = vadd.f32 %v212, %v400
  %v402 = vpop.f32.mrf.mxu0
  %v403 = vadd.f32 %v212, %v402
  %404 = vdwg.mxu0
  %405 = vmatprep.subr.mxu0 0.0
  %406 = vmatpush1.msra.mxu0 0.0
  %407 = vmatprep.subr.mxu0 0.0
  %408 = vmatpush1.msra.mxu0 0.0
  %409 = vmatprep.subr.mxu0 0.0
  %410 = vmatpush1.msra.mxu0 0.0
  %411 = vmatprep.subr.mxu0 0.0
  %412 = vmatpush1.msra.mxu0 0.0
  %413 = vmatprep.subr.mxu0 0.0
  %414 = vmatpush1.msra.mxu0 0.0
  %415 = vmatprep.subr.mxu0 0.0
  %416 = vmatpush1.msra.mxu0 0.0
  %417 = vmatprep.subr.mxu0 0.0
  %418 = vmatpush1.msra.mxu0 0.0
  %419 = vmatprep.subr.mxu0 %v185
  %420 = vmatpush1.msra.mxu0 %v170
  %421 = vmatprep.subr.mxu0 %v184
  %422 = vmatpush1.msra.mxu0 %v169
  %423 = vmatprep.subr.mxu0 %v183
  %424 = vmatpush1.msra.mxu0 %v168
  %425 = vmatprep.subr.mxu0 %v75
  %426 = vmatpush1.msra.mxu0 %v70
  %427 = vmatprep.subr.mxu0 %v35
  %428 = vmatpush1.msra.mxu0 %v34
  %429 = vmatprep.subr.mxu0 %v51
  %430 = vmatpush1.msra.mxu0 %v52
  %431 = vmatprep.subr.mxu0 %v115
  %432 = vmatpush1.msra.mxu0 %v118
  %433 = vmatprep.subr.mxu0 %v114
  %434 = vmatpush1.msra.mxu0 %v117
  %435 = vmatprep.subr.mxu0 %v113
  %436 = vmatpush1.msra.mxu0 %v116
  %437 = vmatprep.subr.mxu0 0.0
  %438 = vmatpush2.msra.mxu0 0.0
  %439 = vmatprep.subr.mxu0 0.0
  %440 = vmatpush2.msra.mxu0 0.0
  %441 = vmatprep.subr.mxu0 0.0
  %442 = vmatpush2.msra.mxu0 0.0
  %443 = vmatprep.subr.mxu0 0.0
  %444 = vmatpush2.msra.mxu0 0.0
  %445 = vmatprep.subr.mxu0 0.0
  %446 = vmatpush2.msra.mxu0 0.0
  %447 = vmatprep.subr.mxu0 0.0
  %448 = vmatpush2.msra.mxu0 0.0
  %449 = vmatprep.subr.mxu0 0.0
  %450 = vmatpush2.msra.mxu0 0.0
  %451 = vmatprep.subr.mxu0 0.0
  %452 = vmatpush2.msra.mxu0 0.0
  %453 = vmatprep.subr.mxu0 0.0
  %454 = vmatpush2.msra.mxu0 0.0
  %455 = vmatprep.subr.mxu0 0.0
  %456 = vmatpush2.msra.mxu0 0.0
  %457 = vmatprep.subr.mxu0 0.0
  %458 = vmatpush2.msra.mxu0 0.0
  %459 = vmatprep.subr.mxu0 0.0
  %460 = vmatpush2.msra.mxu0 0.0
  %461 = vmatprep.subr.mxu0 0.0
  %462 = vmatpush2.msra.mxu0 0.0
  %463 = vmatprep.subr.mxu0 0.0
  %464 = vmatpush2.msra.mxu0 0.0
  %465 = vmatprep.subr.mxu0 0.0
  %466 = vmatpush2.msra.mxu0 0.0
  %467 = vmatprep.subr.mxu0 0.0
  %468 = vmatpush2.msra.mxu0 0.0
  %469 = vmatprep.mubr.f32.mxu0 0.0
  %470 = vmatmul.mubr.f32.gmra.mxu0 %v216
  %v471 = vpop.f32.mrf.mxu0
  %v472 = vadd.f32 %v197, %v471
  %v473 = vpop.f32.mrf.mxu0
  %v474 = vadd.f32 %v197, %v473
  %475 = vmatprep.mubr.f32.mxu0 0.0
  %476 = vmatmul.mubr.f32.gmra.mxu0 %v219
  %v477 = vpop.f32.mrf.mxu0
  %v478 = vadd.f32 %v202, %v477
  %v479 = vpop.f32.mrf.mxu0
  %v480 = vadd.f32 %v202, %v479
  %481 = vmatprep.mubr.f32.mxu0 0.0
  %482 = vmatmul.mubr.f32.gmra.mxu0 %v222
  %v483 = vpop.f32.mrf.mxu0
  %v484 = vadd.f32 %v207, %v483
  %v485 = vpop.f32.mrf.mxu0
  %v486 = vadd.f32 %v207, %v485
  %487 = vmatprep.mubr.f32.mxu0 0.0
  %488 = vmatmul.mubr.f32.gmra.mxu0 %v225
  %v489 = vpop.f32.mrf.mxu0
  %v490 = vadd.f32 %v212, %v489
  %v491 = vpop.f32.mrf.mxu0
  %v492 = vadd.f32 %v212, %v491
  %493 = vdwg.mxu0
  %v494 = vmax.f32 %v294, 0.0
  %v495 = vmax.f32 %v296, 0.0
  %v496 = vmax.f32 %v383, 0.0
  %v497 = vmax.f32 %v385, 0.0
  %v498 = vmax.f32 %v472, 0.0
  %v499 = vmax.f32 %v474, 0.0
  %v500 = vmax.f32 %v300, 0.0
  %v501 = vmax.f32 %v302, 0.0
  %v502 = vmax.f32 %v389, 0.0
  %v503 = vmax.f32 %v391, 0.0
  %v504 = vmax.f32 %v478, 0.0
  %v505 = vmax.f32 %v480, 0.0
  %v506 = vmax.f32 %v306, 0.0
  %v507 = vmax.f32 %v308, 0.0
  %v508 = vmax.f32 %v395, 0.0
  %v509 = vmax.f32 %v397, 0.0
  %v510 = vmax.f32 %v484, 0.0
  %v511 = vmax.f32 %v486, 0.0
  %v512 = vmax.f32 %v312, 0.0
  %v513 = vmax.f32 %v314, 0.0
  %v514 = vmax.f32 %v401, 0.0
  %v515 = vmax.f32 %v403, 0.0
  %v516 = vmax.f32 %v490, 0.0
  %v517 = vmax.f32 %v492, 0.0
  %v519 = vlaneseq
  %v520 = vshrl.u32 %v519, 7
  %v521 = vsub.s32 0, %v520
  %v522 = vrot.slane %v29, %v521
  %v523 = vlaneseq
  %v524 = vshrl.u32 %v523, 7
  %v525 = vsub.s32 1, %v524
  %v526 = vrot.slane %v29, %v525
  %v527 = vlaneseq
  %v528 = vshrl.u32 %v527, 7
  %v529 = vsub.s32 2, %v528
  %v530 = vrot.slane %v29, %v529
  %v531 = vlaneseq
  %v532 = vshrl.u32 %v531, 7
  %v533 = vsub.s32 3, %v532
  %v534 = vrot.slane %v29, %v533
  %v535 = vlaneseq
  %v536 = vshrl.u32 %v535, 7
  %v537 = vsub.s32 4, %v536
  %v538 = vrot.slane %v29, %v537
  %v539 = vlaneseq
  %v540 = vshrl.u32 %v539, 7
  %v541 = vsub.s32 5, %v540
  %v542 = vrot.slane %v29, %v541
  %v549 = vmul.f32 %v494, %v522
  %v550 = vmul.f32 %v495, %v526
  %v551 = vmul.f32 %v496, %v530
  %v552 = vmul.f32 %v497, %v534
  %v553 = vmul.f32 %v498, %v538
  %v554 = vmul.f32 %v499, %v542
  %v555 = vmul.f32 %v500, %v522
  %v556 = vmul.f32 %v501, %v526
  %v557 = vmul.f32 %v502, %v530
  %v558 = vmul.f32 %v503, %v534
  %v559 = vmul.f32 %v504, %v538
  %v560 = vmul.f32 %v505, %v542
  %v561 = vmul.f32 %v506, %v522
  %v562 = vmul.f32 %v507, %v526
  %v563 = vmul.f32 %v508, %v530
  %v564 = vmul.f32 %v509, %v534
  %v565 = vmul.f32 %v510, %v538
  %v566 = vmul.f32 %v511, %v542
  %v567 = vmul.f32 %v512, %v522
  %v568 = vmul.f32 %v513, %v526
  %v569 = vmul.f32 %v514, %v530
  %v570 = vmul.f32 %v515, %v534
  %v571 = vmul.f32 %v516, %v538
  %v572 = vmul.f32 %v517, %v542
  %573 = vrot.lane.b32.xlu0 %v549, 1
  %v574 = vpop.permute.xlu0 %573
  %575 = vrot.lane.b32.xlu0 %v555, 1
  %v576 = vpop.permute.xlu0 %575
  %577 = vrot.lane.b32.xlu0 %v561, 1
  %v578 = vpop.permute.xlu0 %577
  %579 = vrot.lane.b32.xlu0 %v567, 1
  %v580 = vpop.permute.xlu0 %579
  %581 = vrot.lane.b32.xlu0 %v550, 1
  %v582 = vpop.permute.xlu0 %581
  %583 = vrot.lane.b32.xlu0 %v556, 1
  %v584 = vpop.permute.xlu0 %583
  %585 = vrot.lane.b32.xlu0 %v562, 1
  %v586 = vpop.permute.xlu0 %585
  %587 = vrot.lane.b32.xlu0 %v568, 1
  %v588 = vpop.permute.xlu0 %587
  %589 = vrot.lane.b32.xlu0 %v551, 1
  %v590 = vpop.permute.xlu0 %589
  %591 = vrot.lane.b32.xlu0 %v557, 1
  %v592 = vpop.permute.xlu0 %591
  %593 = vrot.lane.b32.xlu0 %v563, 1
  %v594 = vpop.permute.xlu0 %593
  %595 = vrot.lane.b32.xlu0 %v569, 1
  %v596 = vpop.permute.xlu0 %595
  %597 = vrot.lane.b32.xlu0 %v552, 1
  %v598 = vpop.permute.xlu0 %597
  %599 = vrot.lane.b32.xlu0 %v558, 1
  %v600 = vpop.permute.xlu0 %599
  %601 = vrot.lane.b32.xlu0 %v564, 1
  %v602 = vpop.permute.xlu0 %601
  %603 = vrot.lane.b32.xlu0 %v570, 1
  %v604 = vpop.permute.xlu0 %603
  %605 = vrot.lane.b32.xlu0 %v553, 1
  %v606 = vpop.permute.xlu0 %605
  %607 = vrot.lane.b32.xlu0 %v559, 1
  %v608 = vpop.permute.xlu0 %607
  %609 = vrot.lane.b32.xlu0 %v565, 1
  %v610 = vpop.permute.xlu0 %609
  %611 = vrot.lane.b32.xlu0 %v571, 1
  %v612 = vpop.permute.xlu0 %611
  %613 = vrot.lane.b32.xlu0 %v554, 1
  %v614 = vpop.permute.xlu0 %613
  %615 = vrot.lane.b32.xlu0 %v560, 1
  %v616 = vpop.permute.xlu0 %615
  %617 = vrot.lane.b32.xlu0 %v566, 1
  %v618 = vpop.permute.xlu0 %617
  %619 = vrot.lane.b32.xlu0 %v572, 1
  %v620 = vpop.permute.xlu0 %619
  %v621 = vsel %vm50, %v606, %v614
  %v622 = vsel %vm50, %v608, %v616
  %v623 = vsel %vm50, %v610, %v618
  %v624 = vsel %vm50, %v612, %v620
  %v625 = vsel %vm50, %v598, %v606
  %v626 = vsel %vm50, %v600, %v608
  %v627 = vsel %vm50, %v602, %v610
  %v628 = vsel %vm50, %v604, %v612
  %v629 = vsel %vm50, %v590, %v598
  %v630 = vsel %vm50, %v592, %v600
  %v631 = vsel %vm50, %v594, %v602
  %v632 = vsel %vm50, %v596, %v604
  %v633 = vsel %vm50, %v582, %v590
  %v634 = vsel %vm50, %v584, %v592
  %v635 = vsel %vm50, %v586, %v594
  %v636 = vsel %vm50, %v588, %v596
  %v637 = vsel %vm50, %v574, %v582
  %v638 = vsel %vm50, %v576, %v584
  %v639 = vsel %vm50, %v578, %v586
  %v640 = vsel %vm50, %v580, %v588
  %v641 = vsel %vm50, %v614, %v574
  %v642 = vsel %vm50, %v616, %v576
  %v643 = vsel %vm50, %v618, %v578
  %v644 = vsel %vm50, %v620, %v580
  %645 = vrot.lane.b32.xlu0 %v549, 127
  %v646 = vpop.permute.xlu0 %645
  %647 = vrot.lane.b32.xlu0 %v555, 127
  %v648 = vpop.permute.xlu0 %647
  %649 = vrot.lane.b32.xlu0 %v561, 127
  %v650 = vpop.permute.xlu0 %649
  %651 = vrot.lane.b32.xlu0 %v567, 127
  %v652 = vpop.permute.xlu0 %651
  %653 = vrot.lane.b32.xlu0 %v550, 127
  %v654 = vpop.permute.xlu0 %653
  %655 = vrot.lane.b32.xlu0 %v556, 127
  %v656 = vpop.permute.xlu0 %655
  %657 = vrot.lane.b32.xlu0 %v562, 127
  %v658 = vpop.permute.xlu0 %657
  %659 = vrot.lane.b32.xlu0 %v568, 127
  %v660 = vpop.permute.xlu0 %659
  %661 = vrot.lane.b32.xlu0 %v551, 127
  %v662 = vpop.permute.xlu0 %661
  %663 = vrot.lane.b32.xlu0 %v557, 127
  %v664 = vpop.permute.xlu0 %663
  %665 = vrot.lane.b32.xlu0 %v563, 127
  %v666 = vpop.permute.xlu0 %665
  %667 = vrot.lane.b32.xlu0 %v569, 127
  %v668 = vpop.permute.xlu0 %667
  %669 = vrot.lane.b32.xlu0 %v552, 127
  %v670 = vpop.permute.xlu0 %669
  %671 = vrot.lane.b32.xlu0 %v558, 127
  %v672 = vpop.permute.xlu0 %671
  %673 = vrot.lane.b32.xlu0 %v564, 127
  %v674 = vpop.permute.xlu0 %673
  %675 = vrot.lane.b32.xlu0 %v570, 127
  %v676 = vpop.permute.xlu0 %675
  %677 = vrot.lane.b32.xlu0 %v553, 127
  %v678 = vpop.permute.xlu0 %677
  %679 = vrot.lane.b32.xlu0 %v559, 127
  %v680 = vpop.permute.xlu0 %679
  %681 = vrot.lane.b32.xlu0 %v565, 127
  %v682 = vpop.permute.xlu0 %681
  %683 = vrot.lane.b32.xlu0 %v571, 127
  %v684 = vpop.permute.xlu0 %683
  %685 = vrot.lane.b32.xlu0 %v554, 127
  %v686 = vpop.permute.xlu0 %685
  %687 = vrot.lane.b32.xlu0 %v560, 127
  %v688 = vpop.permute.xlu0 %687
  %689 = vrot.lane.b32.xlu0 %v566, 127
  %v690 = vpop.permute.xlu0 %689
  %691 = vrot.lane.b32.xlu0 %v572, 127
  %v692 = vpop.permute.xlu0 %691
  %v693 = vsel %vm69, %v678, %v686
  %v694 = vsel %vm69, %v680, %v688
  %v695 = vsel %vm69, %v682, %v690
  %v696 = vsel %vm69, %v684, %v692
  %v697 = vsel %vm69, %v670, %v678
  %v698 = vsel %vm69, %v672, %v680
  %v699 = vsel %vm69, %v674, %v682
  %v700 = vsel %vm69, %v676, %v684
  %v701 = vsel %vm69, %v662, %v670
  %v702 = vsel %vm69, %v664, %v672
  %v703 = vsel %vm69, %v666, %v674
  %v704 = vsel %vm69, %v668, %v676
  %v705 = vsel %vm69, %v654, %v662
  %v706 = vsel %vm69, %v656, %v664
  %v707 = vsel %vm69, %v658, %v666
  %v708 = vsel %vm69, %v660, %v668
  %v709 = vsel %vm69, %v646, %v654
  %v710 = vsel %vm69, %v648, %v656
  %v711 = vsel %vm69, %v650, %v658
  %v712 = vsel %vm69, %v652, %v660
  %v713 = vsel %vm69, %v686, %v646
  %v714 = vsel %vm69, %v688, %v648
  %v715 = vsel %vm69, %v690, %v650
  %v716 = vsel %vm69, %v692, %v652
  %v717 = vld [vmem:[%s4] sm:$0xff]
  %v718 = vld [vmem:[%s4 + $0x8] sm:$0xff]
  %v719 = vld [vmem:[%s4 + $0x10] sm:$0xff]
  %v720 = vld [vmem:[%s4 + $0x18] sm:$0xff]
  %vm721 = vcmask 785408
  %v723 = vsel %vm721, %v717, 0
  %v726 = vsel %vm721, %v718, 0
  %v729 = vsel %vm721, %v719, 0
  %v732 = vsel %vm721, %v720, 0
  %734 = vmatprep.subr.mxu0 0.0
  %735 = vmatpush1.msra.mxu0 0.0
  %736 = vmatprep.subr.mxu0 0.0
  %737 = vmatpush1.msra.mxu0 0.0
  %738 = vmatprep.subr.mxu0 0.0
  %739 = vmatpush1.msra.mxu0 0.0
  %740 = vmatprep.subr.mxu0 0.0
  %741 = vmatpush1.msra.mxu0 0.0
  %742 = vmatprep.subr.mxu0 %v708
  %743 = vmatpush1.msra.mxu0 %v712
  %744 = vmatprep.subr.mxu0 %v707
  %745 = vmatpush1.msra.mxu0 %v711
  %746 = vmatprep.subr.mxu0 %v706
  %747 = vmatpush1.msra.mxu0 %v710
  %748 = vmatprep.subr.mxu0 %v705
  %749 = vmatpush1.msra.mxu0 %v709
  %750 = vmatprep.subr.mxu0 %v568
  %751 = vmatpush1.msra.mxu0 %v567
  %752 = vmatprep.subr.mxu0 %v562
  %753 = vmatpush1.msra.mxu0 %v561
  %754 = vmatprep.subr.mxu0 %v556
  %755 = vmatpush1.msra.mxu0 %v555
  %756 = vmatprep.subr.mxu0 %v550
  %757 = vmatpush1.msra.mxu0 %v549
  %758 = vmatprep.subr.mxu0 %v640
  %759 = vmatpush1.msra.mxu0 %v644
  %760 = vmatprep.subr.mxu0 %v639
  %761 = vmatpush1.msra.mxu0 %v643
  %762 = vmatprep.subr.mxu0 %v638
  %763 = vmatpush1.msra.mxu0 %v642
  %764 = vmatprep.subr.mxu0 %v637
  %765 = vmatpush1.msra.mxu0 %v641
  %766 = vmatprep.subr.mxu0 0.0
  %767 = vmatpush2.msra.mxu0 0.0
  %768 = vmatprep.subr.mxu0 0.0
  %769 = vmatpush2.msra.mxu0 0.0
  %770 = vmatprep.subr.mxu0 0.0
  %771 = vmatpush2.msra.mxu0 0.0
  %772 = vmatprep.subr.mxu0 0.0
  %773 = vmatpush2.msra.mxu0 0.0
  %774 = vmatprep.subr.mxu0 0.0
  %775 = vmatpush2.msra.mxu0 0.0
  %776 = vmatprep.subr.mxu0 0.0
  %777 = vmatpush2.msra.mxu0 0.0
  %778 = vmatprep.subr.mxu0 0.0
  %779 = vmatpush2.msra.mxu0 0.0
  %780 = vmatprep.subr.mxu0 0.0
  %781 = vmatpush2.msra.mxu0 0.0
  %782 = vmatprep.subr.mxu0 0.0
  %783 = vmatpush2.msra.mxu0 0.0
  %784 = vmatprep.subr.mxu0 0.0
  %785 = vmatpush2.msra.mxu0 0.0
  %786 = vmatprep.subr.mxu0 0.0
  %787 = vmatpush2.msra.mxu0 0.0
  %788 = vmatprep.subr.mxu0 0.0
  %789 = vmatpush2.msra.mxu0 0.0
  %790 = vmatprep.subr.mxu0 0.0
  %791 = vmatpush2.msra.mxu0 0.0
  %792 = vmatprep.subr.mxu0 0.0
  %793 = vmatpush2.msra.mxu0 0.0
  %794 = vmatprep.subr.mxu0 0.0
  %795 = vmatpush2.msra.mxu0 0.0
  %796 = vmatprep.subr.mxu0 0.0
  %797 = vmatpush2.msra.mxu0 0.0
  %798 = vmatprep.mubr.f32.mxu0 0.0
  %799 = vmatmul.mubr.f32.gmra.mxu0 %v723
  %v800 = vpop.f32.mrf.mxu0
  %v801 = vadd.f32 0.0, %v800
  %v802 = vpop.f32.mrf.mxu0
  %v803 = vadd.f32 0.0, %v802
  %804 = vmatprep.mubr.f32.mxu0 0.0
  %805 = vmatmul.mubr.f32.gmra.mxu0 %v726
  %v806 = vpop.f32.mrf.mxu0
  %v807 = vadd.f32 0.0, %v806
  %v808 = vpop.f32.mrf.mxu0
  %v809 = vadd.f32 0.0, %v808
  %810 = vmatprep.mubr.f32.mxu0 0.0
  %811 = vmatmul.mubr.f32.gmra.mxu0 %v729
  %v812 = vpop.f32.mrf.mxu0
  %v813 = vadd.f32 0.0, %v812
  %v814 = vpop.f32.mrf.mxu0
  %v815 = vadd.f32 0.0, %v814
  %816 = vmatprep.mubr.f32.mxu0 0.0
  %817 = vmatmul.mubr.f32.gmra.mxu0 %v732
  %v818 = vpop.f32.mrf.mxu0
  %v819 = vadd.f32 0.0, %v818
  %v820 = vpop.f32.mrf.mxu0
  %v821 = vadd.f32 0.0, %v820
  %822 = vdwg.mxu0
  %823 = vmatprep.subr.mxu0 0.0
  %824 = vmatpush1.msra.mxu0 0.0
  %825 = vmatprep.subr.mxu0 0.0
  %826 = vmatpush1.msra.mxu0 0.0
  %827 = vmatprep.subr.mxu0 0.0
  %828 = vmatpush1.msra.mxu0 0.0
  %829 = vmatprep.subr.mxu0 0.0
  %830 = vmatpush1.msra.mxu0 0.0
  %831 = vmatprep.subr.mxu0 %v700
  %832 = vmatpush1.msra.mxu0 %v704
  %833 = vmatprep.subr.mxu0 %v699
  %834 = vmatpush1.msra.mxu0 %v703
  %835 = vmatprep.subr.mxu0 %v698
  %836 = vmatpush1.msra.mxu0 %v702
  %837 = vmatprep.subr.mxu0 %v697
  %838 = vmatpush1.msra.mxu0 %v701
  %839 = vmatprep.subr.mxu0 %v570
  %840 = vmatpush1.msra.mxu0 %v569
  %841 = vmatprep.subr.mxu0 %v564
  %842 = vmatpush1.msra.mxu0 %v563
  %843 = vmatprep.subr.mxu0 %v558
  %844 = vmatpush1.msra.mxu0 %v557
  %845 = vmatprep.subr.mxu0 %v552
  %846 = vmatpush1.msra.mxu0 %v551
  %847 = vmatprep.subr.mxu0 %v632
  %848 = vmatpush1.msra.mxu0 %v636
  %849 = vmatprep.subr.mxu0 %v631
  %850 = vmatpush1.msra.mxu0 %v635
  %851 = vmatprep.subr.mxu0 %v630
  %852 = vmatpush1.msra.mxu0 %v634
  %853 = vmatprep.subr.mxu0 %v629
  %854 = vmatpush1.msra.mxu0 %v633
  %855 = vmatprep.subr.mxu0 0.0
  %856 = vmatpush2.msra.mxu0 0.0
  %857 = vmatprep.subr.mxu0 0.0
  %858 = vmatpush2.msra.mxu0 0.0
  %859 = vmatprep.subr.mxu0 0.0
  %860 = vmatpush2.msra.mxu0 0.0
  %861 = vmatprep.subr.mxu0 0.0
  %862 = vmatpush2.msra.mxu0 0.0
  %863 = vmatprep.subr.mxu0 0.0
  %864 = vmatpush2.msra.mxu0 0.0
  %865 = vmatprep.subr.mxu0 0.0
  %866 = vmatpush2.msra.mxu0 0.0
  %867 = vmatprep.subr.mxu0 0.0
  %868 = vmatpush2.msra.mxu0 0.0
  %869 = vmatprep.subr.mxu0 0.0
  %870 = vmatpush2.msra.mxu0 0.0
  %871 = vmatprep.subr.mxu0 0.0
  %872 = vmatpush2.msra.mxu0 0.0
  %873 = vmatprep.subr.mxu0 0.0
  %874 = vmatpush2.msra.mxu0 0.0
  %875 = vmatprep.subr.mxu0 0.0
  %876 = vmatpush2.msra.mxu0 0.0
  %877 = vmatprep.subr.mxu0 0.0
  %878 = vmatpush2.msra.mxu0 0.0
  %879 = vmatprep.subr.mxu0 0.0
  %880 = vmatpush2.msra.mxu0 0.0
  %881 = vmatprep.subr.mxu0 0.0
  %882 = vmatpush2.msra.mxu0 0.0
  %883 = vmatprep.subr.mxu0 0.0
  %884 = vmatpush2.msra.mxu0 0.0
  %885 = vmatprep.subr.mxu0 0.0
  %886 = vmatpush2.msra.mxu0 0.0
  %887 = vmatprep.mubr.f32.mxu0 0.0
  %888 = vmatmul.mubr.f32.gmra.mxu0 %v723
  %v889 = vpop.f32.mrf.mxu0
  %v890 = vadd.f32 0.0, %v889
  %v891 = vpop.f32.mrf.mxu0
  %v892 = vadd.f32 0.0, %v891
  %893 = vmatprep.mubr.f32.mxu0 0.0
  %894 = vmatmul.mubr.f32.gmra.mxu0 %v726
  %v895 = vpop.f32.mrf.mxu0
  %v896 = vadd.f32 0.0, %v895
  %v897 = vpop.f32.mrf.mxu0
  %v898 = vadd.f32 0.0, %v897
  %899 = vmatprep.mubr.f32.mxu0 0.0
  %900 = vmatmul.mubr.f32.gmra.mxu0 %v729
  %v901 = vpop.f32.mrf.mxu0
  %v902 = vadd.f32 0.0, %v901
  %v903 = vpop.f32.mrf.mxu0
  %v904 = vadd.f32 0.0, %v903
  %905 = vmatprep.mubr.f32.mxu0 0.0
  %906 = vmatmul.mubr.f32.gmra.mxu0 %v732
  %v907 = vpop.f32.mrf.mxu0
  %v908 = vadd.f32 0.0, %v907
  %v909 = vpop.f32.mrf.mxu0
  %v910 = vadd.f32 0.0, %v909
  %911 = vdwg.mxu0
  %912 = vmatprep.subr.mxu0 0.0
  %913 = vmatpush1.msra.mxu0 0.0
  %914 = vmatprep.subr.mxu0 0.0
  %915 = vmatpush1.msra.mxu0 0.0
  %916 = vmatprep.subr.mxu0 0.0
  %917 = vmatpush1.msra.mxu0 0.0
  %918 = vmatprep.subr.mxu0 0.0
  %919 = vmatpush1.msra.mxu0 0.0
  %920 = vmatprep.subr.mxu0 %v716
  %921 = vmatpush1.msra.mxu0 %v696
  %922 = vmatprep.subr.mxu0 %v715
  %923 = vmatpush1.msra.mxu0 %v695
  %924 = vmatprep.subr.mxu0 %v714
  %925 = vmatpush1.msra.mxu0 %v694
  %926 = vmatprep.subr.mxu0 %v713
  %927 = vmatpush1.msra.mxu0 %v693
  %928 = vmatprep.subr.mxu0 %v572
  %929 = vmatpush1.msra.mxu0 %v571
  %930 = vmatprep.subr.mxu0 %v566
  %931 = vmatpush1.msra.mxu0 %v565
  %932 = vmatprep.subr.mxu0 %v560
  %933 = vmatpush1.msra.mxu0 %v559
  %934 = vmatprep.subr.mxu0 %v554
  %935 = vmatpush1.msra.mxu0 %v553
  %936 = vmatprep.subr.mxu0 %v624
  %937 = vmatpush1.msra.mxu0 %v628
  %938 = vmatprep.subr.mxu0 %v623
  %939 = vmatpush1.msra.mxu0 %v627
  %940 = vmatprep.subr.mxu0 %v622
  %941 = vmatpush1.msra.mxu0 %v626
  %942 = vmatprep.subr.mxu0 %v621
  %943 = vmatpush1.msra.mxu0 %v625
  %944 = vmatprep.subr.mxu0 0.0
  %945 = vmatpush2.msra.mxu0 0.0
  %946 = vmatprep.subr.mxu0 0.0
  %947 = vmatpush2.msra.mxu0 0.0
  %948 = vmatprep.subr.mxu0 0.0
  %949 = vmatpush2.msra.mxu0 0.0
  %950 = vmatprep.subr.mxu0 0.0
  %951 = vmatpush2.msra.mxu0 0.0
  %952 = vmatprep.subr.mxu0 0.0
  %953 = vmatpush2.msra.mxu0 0.0
  %954 = vmatprep.subr.mxu0 0.0
  %955 = vmatpush2.msra.mxu0 0.0
  %956 = vmatprep.subr.mxu0 0.0
  %957 = vmatpush2.msra.mxu0 0.0
  %958 = vmatprep.subr.mxu0 0.0
  %959 = vmatpush2.msra.mxu0 0.0
  %960 = vmatprep.subr.mxu0 0.0
  %961 = vmatpush2.msra.mxu0 0.0
  %962 = vmatprep.subr.mxu0 0.0
  %963 = vmatpush2.msra.mxu0 0.0
  %964 = vmatprep.subr.mxu0 0.0
  %965 = vmatpush2.msra.mxu0 0.0
  %966 = vmatprep.subr.mxu0 0.0
  %967 = vmatpush2.msra.mxu0 0.0
  %968 = vmatprep.subr.mxu0 0.0
  %969 = vmatpush2.msra.mxu0 0.0
  %970 = vmatprep.subr.mxu0 0.0
  %971 = vmatpush2.msra.mxu0 0.0
  %972 = vmatprep.subr.mxu0 0.0
  %973 = vmatpush2.msra.mxu0 0.0
  %974 = vmatprep.subr.mxu0 0.0
  %975 = vmatpush2.msra.mxu0 0.0
  %976 = vmatprep.mubr.f32.mxu0 0.0
  %977 = vmatmul.mubr.f32.gmra.mxu0 %v723
  %v978 = vpop.f32.mrf.mxu0
  %v979 = vadd.f32 0.0, %v978
  %v980 = vpop.f32.mrf.mxu0
  %v981 = vadd.f32 0.0, %v980
  %982 = vmatprep.mubr.f32.mxu0 0.0
  %983 = vmatmul.mubr.f32.gmra.mxu0 %v726
  %v984 = vpop.f32.mrf.mxu0
  %v985 = vadd.f32 0.0, %v984
  %v986 = vpop.f32.mrf.mxu0
  %v987 = vadd.f32 0.0, %v986
  %988 = vmatprep.mubr.f32.mxu0 0.0
  %989 = vmatmul.mubr.f32.gmra.mxu0 %v729
  %v990 = vpop.f32.mrf.mxu0
  %v991 = vadd.f32 0.0, %v990
  %v992 = vpop.f32.mrf.mxu0
  %v993 = vadd.f32 0.0, %v992
  %994 = vmatprep.mubr.f32.mxu0 0.0
  %995 = vmatmul.mubr.f32.gmra.mxu0 %v732
  %v996 = vpop.f32.mrf.mxu0
  %v997 = vadd.f32 0.0, %v996
  %v998 = vpop.f32.mrf.mxu0
  %v999 = vadd.f32 0.0, %v998
  %1000 = vdwg.mxu0
  %s1001 = scalar_lea.vmem %s4, 32
  %v1002 = vld [vmem:[%s1001] sm:$0xff]
  %v1003 = vld [vmem:[%s1001 + $0x8] sm:$0xff]
  %v1004 = vld [vmem:[%s1001 + $0x10] sm:$0xff]
  %v1005 = vld [vmem:[%s1001 + $0x18] sm:$0xff]
  %v1007 = vsel %vm721, %v1002, 0
  %v1010 = vsel %vm721, %v1003, 0
  %v1013 = vsel %vm721, %v1004, 0
  %v1016 = vsel %vm721, %v1005, 0
  %1018 = vmatprep.subr.mxu0 0.0
  %1019 = vmatpush1.msra.mxu0 0.0
  %1020 = vmatprep.subr.mxu0 0.0
  %1021 = vmatpush1.msra.mxu0 0.0
  %1022 = vmatprep.subr.mxu0 0.0
  %1023 = vmatpush1.msra.mxu0 0.0
  %1024 = vmatprep.subr.mxu0 0.0
  %1025 = vmatpush1.msra.mxu0 0.0
  %1026 = vmatprep.subr.mxu0 %v708
  %1027 = vmatpush1.msra.mxu0 %v712
  %1028 = vmatprep.subr.mxu0 %v707
  %1029 = vmatpush1.msra.mxu0 %v711
  %1030 = vmatprep.subr.mxu0 %v706
  %1031 = vmatpush1.msra.mxu0 %v710
  %1032 = vmatprep.subr.mxu0 %v705
  %1033 = vmatpush1.msra.mxu0 %v709
  %1034 = vmatprep.subr.mxu0 %v568
  %1035 = vmatpush1.msra.mxu0 %v567
  %1036 = vmatprep.subr.mxu0 %v562
  %1037 = vmatpush1.msra.mxu0 %v561
  %1038 = vmatprep.subr.mxu0 %v556
  %1039 = vmatpush1.msra.mxu0 %v555
  %1040 = vmatprep.subr.mxu0 %v550
  %1041 = vmatpush1.msra.mxu0 %v549
  %1042 = vmatprep.subr.mxu0 %v640
  %1043 = vmatpush1.msra.mxu0 %v644
  %1044 = vmatprep.subr.mxu0 %v639
  %1045 = vmatpush1.msra.mxu0 %v643
  %1046 = vmatprep.subr.mxu0 %v638
  %1047 = vmatpush1.msra.mxu0 %v642
  %1048 = vmatprep.subr.mxu0 %v637
  %1049 = vmatpush1.msra.mxu0 %v641
  %1050 = vmatprep.subr.mxu0 0.0
  %1051 = vmatpush2.msra.mxu0 0.0
  %1052 = vmatprep.subr.mxu0 0.0
  %1053 = vmatpush2.msra.mxu0 0.0
  %1054 = vmatprep.subr.mxu0 0.0
  %1055 = vmatpush2.msra.mxu0 0.0
  %1056 = vmatprep.subr.mxu0 0.0
  %1057 = vmatpush2.msra.mxu0 0.0
  %1058 = vmatprep.subr.mxu0 0.0
  %1059 = vmatpush2.msra.mxu0 0.0
  %1060 = vmatprep.subr.mxu0 0.0
  %1061 = vmatpush2.msra.mxu0 0.0
  %1062 = vmatprep.subr.mxu0 0.0
  %1063 = vmatpush2.msra.mxu0 0.0
  %1064 = vmatprep.subr.mxu0 0.0
  %1065 = vmatpush2.msra.mxu0 0.0
  %1066 = vmatprep.subr.mxu0 0.0
  %1067 = vmatpush2.msra.mxu0 0.0
  %1068 = vmatprep.subr.mxu0 0.0
  %1069 = vmatpush2.msra.mxu0 0.0
  %1070 = vmatprep.subr.mxu0 0.0
  %1071 = vmatpush2.msra.mxu0 0.0
  %1072 = vmatprep.subr.mxu0 0.0
  %1073 = vmatpush2.msra.mxu0 0.0
  %1074 = vmatprep.subr.mxu0 0.0
  %1075 = vmatpush2.msra.mxu0 0.0
  %1076 = vmatprep.subr.mxu0 0.0
  %1077 = vmatpush2.msra.mxu0 0.0
  %1078 = vmatprep.subr.mxu0 0.0
  %1079 = vmatpush2.msra.mxu0 0.0
  %1080 = vmatprep.subr.mxu0 0.0
  %1081 = vmatpush2.msra.mxu0 0.0
  %1082 = vmatprep.mubr.f32.mxu0 0.0
  %1083 = vmatmul.mubr.f32.gmra.mxu0 %v1007
  %v1084 = vpop.f32.mrf.mxu0
  %v1085 = vadd.f32 0.0, %v1084
  %v1086 = vpop.f32.mrf.mxu0
  %v1087 = vadd.f32 0.0, %v1086
  %1088 = vmatprep.mubr.f32.mxu0 0.0
  %1089 = vmatmul.mubr.f32.gmra.mxu0 %v1010
  %v1090 = vpop.f32.mrf.mxu0
  %v1091 = vadd.f32 0.0, %v1090
  %v1092 = vpop.f32.mrf.mxu0
  %v1093 = vadd.f32 0.0, %v1092
  %1094 = vmatprep.mubr.f32.mxu0 0.0
  %1095 = vmatmul.mubr.f32.gmra.mxu0 %v1013
  %v1096 = vpop.f32.mrf.mxu0
  %v1097 = vadd.f32 0.0, %v1096
  %v1098 = vpop.f32.mrf.mxu0
  %v1099 = vadd.f32 0.0, %v1098
  %1100 = vmatprep.mubr.f32.mxu0 0.0
  %1101 = vmatmul.mubr.f32.gmra.mxu0 %v1016
  %v1102 = vpop.f32.mrf.mxu0
  %v1103 = vadd.f32 0.0, %v1102
  %v1104 = vpop.f32.mrf.mxu0
  %v1105 = vadd.f32 0.0, %v1104
  %1106 = vdwg.mxu0
  %1107 = vmatprep.subr.mxu0 0.0
  %1108 = vmatpush1.msra.mxu0 0.0
  %1109 = vmatprep.subr.mxu0 0.0
  %1110 = vmatpush1.msra.mxu0 0.0
  %1111 = vmatprep.subr.mxu0 0.0
  %1112 = vmatpush1.msra.mxu0 0.0
  %1113 = vmatprep.subr.mxu0 0.0
  %1114 = vmatpush1.msra.mxu0 0.0
  %1115 = vmatprep.subr.mxu0 %v700
  %1116 = vmatpush1.msra.mxu0 %v704
  %1117 = vmatprep.subr.mxu0 %v699
  %1118 = vmatpush1.msra.mxu0 %v703
  %1119 = vmatprep.subr.mxu0 %v698
  %1120 = vmatpush1.msra.mxu0 %v702
  %1121 = vmatprep.subr.mxu0 %v697
  %1122 = vmatpush1.msra.mxu0 %v701
  %1123 = vmatprep.subr.mxu0 %v570
  %1124 = vmatpush1.msra.mxu0 %v569
  %1125 = vmatprep.subr.mxu0 %v564
  %1126 = vmatpush1.msra.mxu0 %v563
  %1127 = vmatprep.subr.mxu0 %v558
  %1128 = vmatpush1.msra.mxu0 %v557
  %1129 = vmatprep.subr.mxu0 %v552
  %1130 = vmatpush1.msra.mxu0 %v551
  %1131 = vmatprep.subr.mxu0 %v632
  %1132 = vmatpush1.msra.mxu0 %v636
  %1133 = vmatprep.subr.mxu0 %v631
  %1134 = vmatpush1.msra.mxu0 %v635
  %1135 = vmatprep.subr.mxu0 %v630
  %1136 = vmatpush1.msra.mxu0 %v634
  %1137 = vmatprep.subr.mxu0 %v629
  %1138 = vmatpush1.msra.mxu0 %v633
  %1139 = vmatprep.subr.mxu0 0.0
  %1140 = vmatpush2.msra.mxu0 0.0
  %1141 = vmatprep.subr.mxu0 0.0
  %1142 = vmatpush2.msra.mxu0 0.0
  %1143 = vmatprep.subr.mxu0 0.0
  %1144 = vmatpush2.msra.mxu0 0.0
  %1145 = vmatprep.subr.mxu0 0.0
  %1146 = vmatpush2.msra.mxu0 0.0
  %1147 = vmatprep.subr.mxu0 0.0
  %1148 = vmatpush2.msra.mxu0 0.0
  %1149 = vmatprep.subr.mxu0 0.0
  %1150 = vmatpush2.msra.mxu0 0.0
  %1151 = vmatprep.subr.mxu0 0.0
  %1152 = vmatpush2.msra.mxu0 0.0
  %1153 = vmatprep.subr.mxu0 0.0
  %1154 = vmatpush2.msra.mxu0 0.0
  %1155 = vmatprep.subr.mxu0 0.0
  %1156 = vmatpush2.msra.mxu0 0.0
  %1157 = vmatprep.subr.mxu0 0.0
  %1158 = vmatpush2.msra.mxu0 0.0
  %1159 = vmatprep.subr.mxu0 0.0
  %1160 = vmatpush2.msra.mxu0 0.0
  %1161 = vmatprep.subr.mxu0 0.0
  %1162 = vmatpush2.msra.mxu0 0.0
  %1163 = vmatprep.subr.mxu0 0.0
  %1164 = vmatpush2.msra.mxu0 0.0
  %1165 = vmatprep.subr.mxu0 0.0
  %1166 = vmatpush2.msra.mxu0 0.0
  %1167 = vmatprep.subr.mxu0 0.0
  %1168 = vmatpush2.msra.mxu0 0.0
  %1169 = vmatprep.subr.mxu0 0.0
  %1170 = vmatpush2.msra.mxu0 0.0
  %1171 = vmatprep.mubr.f32.mxu0 0.0
  %1172 = vmatmul.mubr.f32.gmra.mxu0 %v1007
  %v1173 = vpop.f32.mrf.mxu0
  %v1174 = vadd.f32 0.0, %v1173
  %v1175 = vpop.f32.mrf.mxu0
  %v1176 = vadd.f32 0.0, %v1175
  %1177 = vmatprep.mubr.f32.mxu0 0.0
  %1178 = vmatmul.mubr.f32.gmra.mxu0 %v1010
  %v1179 = vpop.f32.mrf.mxu0
  %v1180 = vadd.f32 0.0, %v1179
  %v1181 = vpop.f32.mrf.mxu0
  %v1182 = vadd.f32 0.0, %v1181
  %1183 = vmatprep.mubr.f32.mxu0 0.0
  %1184 = vmatmul.mubr.f32.gmra.mxu0 %v1013
  %v1185 = vpop.f32.mrf.mxu0
  %v1186 = vadd.f32 0.0, %v1185
  %v1187 = vpop.f32.mrf.mxu0
  %v1188 = vadd.f32 0.0, %v1187
  %1189 = vmatprep.mubr.f32.mxu0 0.0
  %1190 = vmatmul.mubr.f32.gmra.mxu0 %v1016
  %v1191 = vpop.f32.mrf.mxu0
  %v1192 = vadd.f32 0.0, %v1191
  %v1193 = vpop.f32.mrf.mxu0
  %v1194 = vadd.f32 0.0, %v1193
  %1195 = vdwg.mxu0
  %1196 = vmatprep.subr.mxu0 0.0
  %1197 = vmatpush1.msra.mxu0 0.0
  %1198 = vmatprep.subr.mxu0 0.0
  %1199 = vmatpush1.msra.mxu0 0.0
  %1200 = vmatprep.subr.mxu0 0.0
  %1201 = vmatpush1.msra.mxu0 0.0
  %1202 = vmatprep.subr.mxu0 0.0
  %1203 = vmatpush1.msra.mxu0 0.0
  %1204 = vmatprep.subr.mxu0 %v716
  %1205 = vmatpush1.msra.mxu0 %v696
  %1206 = vmatprep.subr.mxu0 %v715
  %1207 = vmatpush1.msra.mxu0 %v695
  %1208 = vmatprep.subr.mxu0 %v714
  %1209 = vmatpush1.msra.mxu0 %v694
  %1210 = vmatprep.subr.mxu0 %v713
  %1211 = vmatpush1.msra.mxu0 %v693
  %1212 = vmatprep.subr.mxu0 %v572
  %1213 = vmatpush1.msra.mxu0 %v571
  %1214 = vmatprep.subr.mxu0 %v566
  %1215 = vmatpush1.msra.mxu0 %v565
  %1216 = vmatprep.subr.mxu0 %v560
  %1217 = vmatpush1.msra.mxu0 %v559
  %1218 = vmatprep.subr.mxu0 %v554
  %1219 = vmatpush1.msra.mxu0 %v553
  %1220 = vmatprep.subr.mxu0 %v624
  %1221 = vmatpush1.msra.mxu0 %v628
  %1222 = vmatprep.subr.mxu0 %v623
  %1223 = vmatpush1.msra.mxu0 %v627
  %1224 = vmatprep.subr.mxu0 %v622
  %1225 = vmatpush1.msra.mxu0 %v626
  %1226 = vmatprep.subr.mxu0 %v621
  %1227 = vmatpush1.msra.mxu0 %v625
  %1228 = vmatprep.subr.mxu0 0.0
  %1229 = vmatpush2.msra.mxu0 0.0
  %1230 = vmatprep.subr.mxu0 0.0
  %1231 = vmatpush2.msra.mxu0 0.0
  %1232 = vmatprep.subr.mxu0 0.0
  %1233 = vmatpush2.msra.mxu0 0.0
  %1234 = vmatprep.subr.mxu0 0.0
  %1235 = vmatpush2.msra.mxu0 0.0
  %1236 = vmatprep.subr.mxu0 0.0
  %1237 = vmatpush2.msra.mxu0 0.0
  %1238 = vmatprep.subr.mxu0 0.0
  %1239 = vmatpush2.msra.mxu0 0.0
  %1240 = vmatprep.subr.mxu0 0.0
  %1241 = vmatpush2.msra.mxu0 0.0
  %1242 = vmatprep.subr.mxu0 0.0
  %1243 = vmatpush2.msra.mxu0 0.0
  %1244 = vmatprep.subr.mxu0 0.0
  %1245 = vmatpush2.msra.mxu0 0.0
  %1246 = vmatprep.subr.mxu0 0.0
  %1247 = vmatpush2.msra.mxu0 0.0
  %1248 = vmatprep.subr.mxu0 0.0
  %1249 = vmatpush2.msra.mxu0 0.0
  %1250 = vmatprep.subr.mxu0 0.0
  %1251 = vmatpush2.msra.mxu0 0.0
  %1252 = vmatprep.subr.mxu0 0.0
  %1253 = vmatpush2.msra.mxu0 0.0
  %1254 = vmatprep.subr.mxu0 0.0
  %1255 = vmatpush2.msra.mxu0 0.0
  %1256 = vmatprep.subr.mxu0 0.0
  %1257 = vmatpush2.msra.mxu0 0.0
  %1258 = vmatprep.subr.mxu0 0.0
  %1259 = vmatpush2.msra.mxu0 0.0
  %1260 = vmatprep.mubr.f32.mxu0 0.0
  %1261 = vmatmul.mubr.f32.gmra.mxu0 %v1007
  %v1262 = vpop.f32.mrf.mxu0
  %v1263 = vadd.f32 0.0, %v1262
  %v1264 = vpop.f32.mrf.mxu0
  %v1265 = vadd.f32 0.0, %v1264
  %1266 = vmatprep.mubr.f32.mxu0 0.0
  %1267 = vmatmul.mubr.f32.gmra.mxu0 %v1010
  %v1268 = vpop.f32.mrf.mxu0
  %v1269 = vadd.f32 0.0, %v1268
  %v1270 = vpop.f32.mrf.mxu0
  %v1271 = vadd.f32 0.0, %v1270
  %1272 = vmatprep.mubr.f32.mxu0 0.0
  %1273 = vmatmul.mubr.f32.gmra.mxu0 %v1013
  %v1274 = vpop.f32.mrf.mxu0
  %v1275 = vadd.f32 0.0, %v1274
  %v1276 = vpop.f32.mrf.mxu0
  %v1277 = vadd.f32 0.0, %v1276
  %1278 = vmatprep.mubr.f32.mxu0 0.0
  %1279 = vmatmul.mubr.f32.gmra.mxu0 %v1016
  %v1280 = vpop.f32.mrf.mxu0
  %v1281 = vadd.f32 0.0, %v1280
  %v1282 = vpop.f32.mrf.mxu0
  %v1283 = vadd.f32 0.0, %v1282
  %1284 = vdwg.mxu0
  %s1285 = scalar_lea.vmem %s4, 64
  %v1286 = vld [vmem:[%s1285] sm:$0xff]
  %v1287 = vld [vmem:[%s1285 + $0x8] sm:$0xff]
  %v1288 = vld [vmem:[%s1285 + $0x10] sm:$0xff]
  %v1289 = vld [vmem:[%s1285 + $0x18] sm:$0xff]
  %v1291 = vsel %vm721, %v1286, 0
  %v1294 = vsel %vm721, %v1287, 0
  %v1297 = vsel %vm721, %v1288, 0
  %v1300 = vsel %vm721, %v1289, 0
  %1302 = vmatprep.subr.mxu0 0.0
  %1303 = vmatpush1.msra.mxu0 0.0
  %1304 = vmatprep.subr.mxu0 0.0
  %1305 = vmatpush1.msra.mxu0 0.0
  %1306 = vmatprep.subr.mxu0 0.0
  %1307 = vmatpush1.msra.mxu0 0.0
  %1308 = vmatprep.subr.mxu0 0.0
  %1309 = vmatpush1.msra.mxu0 0.0
  %1310 = vmatprep.subr.mxu0 %v708
  %1311 = vmatpush1.msra.mxu0 %v712
  %1312 = vmatprep.subr.mxu0 %v707
  %1313 = vmatpush1.msra.mxu0 %v711
  %1314 = vmatprep.subr.mxu0 %v706
  %1315 = vmatpush1.msra.mxu0 %v710
  %1316 = vmatprep.subr.mxu0 %v705
  %1317 = vmatpush1.msra.mxu0 %v709
  %1318 = vmatprep.subr.mxu0 %v568
  %1319 = vmatpush1.msra.mxu0 %v567
  %1320 = vmatprep.subr.mxu0 %v562
  %1321 = vmatpush1.msra.mxu0 %v561
  %1322 = vmatprep.subr.mxu0 %v556
  %1323 = vmatpush1.msra.mxu0 %v555
  %1324 = vmatprep.subr.mxu0 %v550
  %1325 = vmatpush1.msra.mxu0 %v549
  %1326 = vmatprep.subr.mxu0 %v640
  %1327 = vmatpush1.msra.mxu0 %v644
  %1328 = vmatprep.subr.mxu0 %v639
  %1329 = vmatpush1.msra.mxu0 %v643
  %1330 = vmatprep.subr.mxu0 %v638
  %1331 = vmatpush1.msra.mxu0 %v642
  %1332 = vmatprep.subr.mxu0 %v637
  %1333 = vmatpush1.msra.mxu0 %v641
  %1334 = vmatprep.subr.mxu0 0.0
  %1335 = vmatpush2.msra.mxu0 0.0
  %1336 = vmatprep.subr.mxu0 0.0
  %1337 = vmatpush2.msra.mxu0 0.0
  %1338 = vmatprep.subr.mxu0 0.0
  %1339 = vmatpush2.msra.mxu0 0.0
  %1340 = vmatprep.subr.mxu0 0.0
  %1341 = vmatpush2.msra.mxu0 0.0
  %1342 = vmatprep.subr.mxu0 0.0
  %1343 = vmatpush2.msra.mxu0 0.0
  %1344 = vmatprep.subr.mxu0 0.0
  %1345 = vmatpush2.msra.mxu0 0.0
  %1346 = vmatprep.subr.mxu0 0.0
  %1347 = vmatpush2.msra.mxu0 0.0
  %1348 = vmatprep.subr.mxu0 0.0
  %1349 = vmatpush2.msra.mxu0 0.0
  %1350 = vmatprep.subr.mxu0 0.0
  %1351 = vmatpush2.msra.mxu0 0.0
  %1352 = vmatprep.subr.mxu0 0.0
  %1353 = vmatpush2.msra.mxu0 0.0
  %1354 = vmatprep.subr.mxu0 0.0
  %1355 = vmatpush2.msra.mxu0 0.0
  %1356 = vmatprep.subr.mxu0 0.0
  %1357 = vmatpush2.msra.mxu0 0.0
  %1358 = vmatprep.subr.mxu0 0.0
  %1359 = vmatpush2.msra.mxu0 0.0
  %1360 = vmatprep.subr.mxu0 0.0
  %1361 = vmatpush2.msra.mxu0 0.0
  %1362 = vmatprep.subr.mxu0 0.0
  %1363 = vmatpush2.msra.mxu0 0.0
  %1364 = vmatprep.subr.mxu0 0.0
  %1365 = vmatpush2.msra.mxu0 0.0
  %1366 = vmatprep.mubr.f32.mxu0 0.0
  %1367 = vmatmul.mubr.f32.gmra.mxu0 %v1291
  %v1368 = vpop.f32.mrf.mxu0
  %v1369 = vadd.f32 0.0, %v1368
  %v1370 = vpop.f32.mrf.mxu0
  %v1371 = vadd.f32 0.0, %v1370
  %1372 = vmatprep.mubr.f32.mxu0 0.0
  %1373 = vmatmul.mubr.f32.gmra.mxu0 %v1294
  %v1374 = vpop.f32.mrf.mxu0
  %v1375 = vadd.f32 0.0, %v1374
  %v1376 = vpop.f32.mrf.mxu0
  %v1377 = vadd.f32 0.0, %v1376
  %1378 = vmatprep.mubr.f32.mxu0 0.0
  %1379 = vmatmul.mubr.f32.gmra.mxu0 %v1297
  %v1380 = vpop.f32.mrf.mxu0
  %v1381 = vadd.f32 0.0, %v1380
  %v1382 = vpop.f32.mrf.mxu0
  %v1383 = vadd.f32 0.0, %v1382
  %1384 = vmatprep.mubr.f32.mxu0 0.0
  %1385 = vmatmul.mubr.f32.gmra.mxu0 %v1300
  %v1386 = vpop.f32.mrf.mxu0
  %v1387 = vadd.f32 0.0, %v1386
  %v1388 = vpop.f32.mrf.mxu0
  %v1389 = vadd.f32 0.0, %v1388
  %1390 = vdwg.mxu0
  %1391 = vmatprep.subr.mxu0 0.0
  %1392 = vmatpush1.msra.mxu0 0.0
  %1393 = vmatprep.subr.mxu0 0.0
  %1394 = vmatpush1.msra.mxu0 0.0
  %1395 = vmatprep.subr.mxu0 0.0
  %1396 = vmatpush1.msra.mxu0 0.0
  %1397 = vmatprep.subr.mxu0 0.0
  %1398 = vmatpush1.msra.mxu0 0.0
  %1399 = vmatprep.subr.mxu0 %v700
  %1400 = vmatpush1.msra.mxu0 %v704
  %1401 = vmatprep.subr.mxu0 %v699
  %1402 = vmatpush1.msra.mxu0 %v703
  %1403 = vmatprep.subr.mxu0 %v698
  %1404 = vmatpush1.msra.mxu0 %v702
  %1405 = vmatprep.subr.mxu0 %v697
  %1406 = vmatpush1.msra.mxu0 %v701
  %1407 = vmatprep.subr.mxu0 %v570
  %1408 = vmatpush1.msra.mxu0 %v569
  %1409 = vmatprep.subr.mxu0 %v564
  %1410 = vmatpush1.msra.mxu0 %v563
  %1411 = vmatprep.subr.mxu0 %v558
  %1412 = vmatpush1.msra.mxu0 %v557
  %1413 = vmatprep.subr.mxu0 %v552
  %1414 = vmatpush1.msra.mxu0 %v551
  %1415 = vmatprep.subr.mxu0 %v632
  %1416 = vmatpush1.msra.mxu0 %v636
  %1417 = vmatprep.subr.mxu0 %v631
  %1418 = vmatpush1.msra.mxu0 %v635
  %1419 = vmatprep.subr.mxu0 %v630
  %1420 = vmatpush1.msra.mxu0 %v634
  %1421 = vmatprep.subr.mxu0 %v629
  %1422 = vmatpush1.msra.mxu0 %v633
  %1423 = vmatprep.subr.mxu0 0.0
  %1424 = vmatpush2.msra.mxu0 0.0
  %1425 = vmatprep.subr.mxu0 0.0
  %1426 = vmatpush2.msra.mxu0 0.0
  %1427 = vmatprep.subr.mxu0 0.0
  %1428 = vmatpush2.msra.mxu0 0.0
  %1429 = vmatprep.subr.mxu0 0.0
  %1430 = vmatpush2.msra.mxu0 0.0
  %1431 = vmatprep.subr.mxu0 0.0
  %1432 = vmatpush2.msra.mxu0 0.0
  %1433 = vmatprep.subr.mxu0 0.0
  %1434 = vmatpush2.msra.mxu0 0.0
  %1435 = vmatprep.subr.mxu0 0.0
  %1436 = vmatpush2.msra.mxu0 0.0
  %1437 = vmatprep.subr.mxu0 0.0
  %1438 = vmatpush2.msra.mxu0 0.0
  %1439 = vmatprep.subr.mxu0 0.0
  %1440 = vmatpush2.msra.mxu0 0.0
  %1441 = vmatprep.subr.mxu0 0.0
  %1442 = vmatpush2.msra.mxu0 0.0
  %1443 = vmatprep.subr.mxu0 0.0
  %1444 = vmatpush2.msra.mxu0 0.0
  %1445 = vmatprep.subr.mxu0 0.0
  %1446 = vmatpush2.msra.mxu0 0.0
  %1447 = vmatprep.subr.mxu0 0.0
  %1448 = vmatpush2.msra.mxu0 0.0
  %1449 = vmatprep.subr.mxu0 0.0
  %1450 = vmatpush2.msra.mxu0 0.0
  %1451 = vmatprep.subr.mxu0 0.0
  %1452 = vmatpush2.msra.mxu0 0.0
  %1453 = vmatprep.subr.mxu0 0.0
  %1454 = vmatpush2.msra.mxu0 0.0
  %1455 = vmatprep.mubr.f32.mxu0 0.0
  %1456 = vmatmul.mubr.f32.gmra.mxu0 %v1291
  %v1457 = vpop.f32.mrf.mxu0
  %v1458 = vadd.f32 0.0, %v1457
  %v1459 = vpop.f32.mrf.mxu0
  %v1460 = vadd.f32 0.0, %v1459
  %1461 = vmatprep.mubr.f32.mxu0 0.0
  %1462 = vmatmul.mubr.f32.gmra.mxu0 %v1294
  %v1463 = vpop.f32.mrf.mxu0
  %v1464 = vadd.f32 0.0, %v1463
  %v1465 = vpop.f32.mrf.mxu0
  %v1466 = vadd.f32 0.0, %v1465
  %1467 = vmatprep.mubr.f32.mxu0 0.0
  %1468 = vmatmul.mubr.f32.gmra.mxu0 %v1297
  %v1469 = vpop.f32.mrf.mxu0
  %v1470 = vadd.f32 0.0, %v1469
  %v1471 = vpop.f32.mrf.mxu0
  %v1472 = vadd.f32 0.0, %v1471
  %1473 = vmatprep.mubr.f32.mxu0 0.0
  %1474 = vmatmul.mubr.f32.gmra.mxu0 %v1300
  %v1475 = vpop.f32.mrf.mxu0
  %v1476 = vadd.f32 0.0, %v1475
  %v1477 = vpop.f32.mrf.mxu0
  %v1478 = vadd.f32 0.0, %v1477
  %1479 = vdwg.mxu0
  %1480 = vmatprep.subr.mxu0 0.0
  %1481 = vmatpush1.msra.mxu0 0.0
  %1482 = vmatprep.subr.mxu0 0.0
  %1483 = vmatpush1.msra.mxu0 0.0
  %1484 = vmatprep.subr.mxu0 0.0
  %1485 = vmatpush1.msra.mxu0 0.0
  %1486 = vmatprep.subr.mxu0 0.0
  %1487 = vmatpush1.msra.mxu0 0.0
  %1488 = vmatprep.subr.mxu0 %v716
  %1489 = vmatpush1.msra.mxu0 %v696
  %1490 = vmatprep.subr.mxu0 %v715
  %1491 = vmatpush1.msra.mxu0 %v695
  %1492 = vmatprep.subr.mxu0 %v714
  %1493 = vmatpush1.msra.mxu0 %v694
  %1494 = vmatprep.subr.mxu0 %v713
  %1495 = vmatpush1.msra.mxu0 %v693
  %1496 = vmatprep.subr.mxu0 %v572
  %1497 = vmatpush1.msra.mxu0 %v571
  %1498 = vmatprep.subr.mxu0 %v566
  %1499 = vmatpush1.msra.mxu0 %v565
  %1500 = vmatprep.subr.mxu0 %v560
  %1501 = vmatpush1.msra.mxu0 %v559
  %1502 = vmatprep.subr.mxu0 %v554
  %1503 = vmatpush1.msra.mxu0 %v553
  %1504 = vmatprep.subr.mxu0 %v624
  %1505 = vmatpush1.msra.mxu0 %v628
  %1506 = vmatprep.subr.mxu0 %v623
  %1507 = vmatpush1.msra.mxu0 %v627
  %1508 = vmatprep.subr.mxu0 %v622
  %1509 = vmatpush1.msra.mxu0 %v626
  %1510 = vmatprep.subr.mxu0 %v621
  %1511 = vmatpush1.msra.mxu0 %v625
  %1512 = vmatprep.subr.mxu0 0.0
  %1513 = vmatpush2.msra.mxu0 0.0
  %1514 = vmatprep.subr.mxu0 0.0
  %1515 = vmatpush2.msra.mxu0 0.0
  %1516 = vmatprep.subr.mxu0 0.0
  %1517 = vmatpush2.msra.mxu0 0.0
  %1518 = vmatprep.subr.mxu0 0.0
  %1519 = vmatpush2.msra.mxu0 0.0
  %1520 = vmatprep.subr.mxu0 0.0
  %1521 = vmatpush2.msra.mxu0 0.0
  %1522 = vmatprep.subr.mxu0 0.0
  %1523 = vmatpush2.msra.mxu0 0.0
  %1524 = vmatprep.subr.mxu0 0.0
  %1525 = vmatpush2.msra.mxu0 0.0
  %1526 = vmatprep.subr.mxu0 0.0
  %1527 = vmatpush2.msra.mxu0 0.0
  %1528 = vmatprep.subr.mxu0 0.0
  %1529 = vmatpush2.msra.mxu0 0.0
  %1530 = vmatprep.subr.mxu0 0.0
  %1531 = vmatpush2.msra.mxu0 0.0
  %1532 = vmatprep.subr.mxu0 0.0
  %1533 = vmatpush2.msra.mxu0 0.0
  %1534 = vmatprep.subr.mxu0 0.0
  %1535 = vmatpush2.msra.mxu0 0.0
  %1536 = vmatprep.subr.mxu0 0.0
  %1537 = vmatpush2.msra.mxu0 0.0
  %1538 = vmatprep.subr.mxu0 0.0
  %1539 = vmatpush2.msra.mxu0 0.0
  %1540 = vmatprep.subr.mxu0 0.0
  %1541 = vmatpush2.msra.mxu0 0.0
  %1542 = vmatprep.subr.mxu0 0.0
  %1543 = vmatpush2.msra.mxu0 0.0
  %1544 = vmatprep.mubr.f32.mxu0 0.0
  %1545 = vmatmul.mubr.f32.gmra.mxu0 %v1291
  %v1546 = vpop.f32.mrf.mxu0
  %v1547 = vadd.f32 0.0, %v1546
  %v1548 = vpop.f32.mrf.mxu0
  %v1549 = vadd.f32 0.0, %v1548
  %1550 = vmatprep.mubr.f32.mxu0 0.0
  %1551 = vmatmul.mubr.f32.gmra.mxu0 %v1294
  %v1552 = vpop.f32.mrf.mxu0
  %v1553 = vadd.f32 0.0, %v1552
  %v1554 = vpop.f32.mrf.mxu0
  %v1555 = vadd.f32 0.0, %v1554
  %1556 = vmatprep.mubr.f32.mxu0 0.0
  %1557 = vmatmul.mubr.f32.gmra.mxu0 %v1297
  %v1558 = vpop.f32.mrf.mxu0
  %v1559 = vadd.f32 0.0, %v1558
  %v1560 = vpop.f32.mrf.mxu0
  %v1561 = vadd.f32 0.0, %v1560
  %1562 = vmatprep.mubr.f32.mxu0 0.0
  %1563 = vmatmul.mubr.f32.gmra.mxu0 %v1300
  %v1564 = vpop.f32.mrf.mxu0
  %v1565 = vadd.f32 0.0, %v1564
  %v1566 = vpop.f32.mrf.mxu0
  %v1567 = vadd.f32 0.0, %v1566
  %1568 = vdwg.mxu0
  %1569 = vrot.lane.b32.xlu0 %v801, 18
  %v1570 = vpop.permute.xlu0 %1569
  %1571 = vrot.lane.b32.xlu0 %v807, 18
  %v1572 = vpop.permute.xlu0 %1571
  %1573 = vrot.lane.b32.xlu0 %v813, 18
  %v1574 = vpop.permute.xlu0 %1573
  %1575 = vrot.lane.b32.xlu0 %v819, 18
  %v1576 = vpop.permute.xlu0 %1575
  %1577 = vrot.lane.b32.xlu0 %v803, 18
  %v1578 = vpop.permute.xlu0 %1577
  %1579 = vrot.lane.b32.xlu0 %v809, 18
  %v1580 = vpop.permute.xlu0 %1579
  %1581 = vrot.lane.b32.xlu0 %v815, 18
  %v1582 = vpop.permute.xlu0 %1581
  %1583 = vrot.lane.b32.xlu0 %v821, 18
  %v1584 = vpop.permute.xlu0 %1583
  %1585 = vrot.lane.b32.xlu0 %v890, 18
  %v1586 = vpop.permute.xlu0 %1585
  %1587 = vrot.lane.b32.xlu0 %v896, 18
  %v1588 = vpop.permute.xlu0 %1587
  %1589 = vrot.lane.b32.xlu0 %v902, 18
  %v1590 = vpop.permute.xlu0 %1589
  %1591 = vrot.lane.b32.xlu0 %v908, 18
  %v1592 = vpop.permute.xlu0 %1591
  %1593 = vrot.lane.b32.xlu0 %v892, 18
  %v1594 = vpop.permute.xlu0 %1593
  %1595 = vrot.lane.b32.xlu0 %v898, 18
  %v1596 = vpop.permute.xlu0 %1595
  %1597 = vrot.lane.b32.xlu0 %v904, 18
  %v1598 = vpop.permute.xlu0 %1597
  %1599 = vrot.lane.b32.xlu0 %v910, 18
  %v1600 = vpop.permute.xlu0 %1599
  %1601 = vrot.lane.b32.xlu0 %v979, 18
  %v1602 = vpop.permute.xlu0 %1601
  %1603 = vrot.lane.b32.xlu0 %v985, 18
  %v1604 = vpop.permute.xlu0 %1603
  %1605 = vrot.lane.b32.xlu0 %v991, 18
  %v1606 = vpop.permute.xlu0 %1605
  %1607 = vrot.lane.b32.xlu0 %v997, 18
  %v1608 = vpop.permute.xlu0 %1607
  %1609 = vrot.lane.b32.xlu0 %v981, 18
  %v1610 = vpop.permute.xlu0 %1609
  %1611 = vrot.lane.b32.xlu0 %v987, 18
  %v1612 = vpop.permute.xlu0 %1611
  %1613 = vrot.lane.b32.xlu0 %v993, 18
  %v1614 = vpop.permute.xlu0 %1613
  %1615 = vrot.lane.b32.xlu0 %v999, 18
  %v1616 = vpop.permute.xlu0 %1615
  %v1617 = vsel %vm112, %v1602, %v1610
  %v1618 = vsel %vm112, %v1604, %v1612
  %v1619 = vsel %vm112, %v1606, %v1614
  %v1620 = vsel %vm112, %v1608, %v1616
  %v1621 = vsel %vm112, %v1594, %v1602
  %v1622 = vsel %vm112, %v1596, %v1604
  %v1623 = vsel %vm112, %v1598, %v1606
  %v1624 = vsel %vm112, %v1600, %v1608
  %v1625 = vsel %vm112, %v1586, %v1594
  %v1626 = vsel %vm112, %v1588, %v1596
  %v1627 = vsel %vm112, %v1590, %v1598
  %v1628 = vsel %vm112, %v1592, %v1600
  %v1629 = vsel %vm112, %v1578, %v1586
  %v1630 = vsel %vm112, %v1580, %v1588
  %v1631 = vsel %vm112, %v1582, %v1590
  %v1632 = vsel %vm112, %v1584, %v1592
  %v1633 = vsel %vm112, %v1570, %v1578
  %v1634 = vsel %vm112, %v1572, %v1580
  %v1635 = vsel %vm112, %v1574, %v1582
  %v1636 = vsel %vm112, %v1576, %v1584
  %v1637 = vsel %vm112, %v1610, %v1570
  %v1638 = vsel %vm112, %v1612, %v1572
  %v1639 = vsel %vm112, %v1614, %v1574
  %v1640 = vsel %vm112, %v1616, %v1576
  %v1641 = vadd.f32 %v1637, %v1085
  %v1642 = vadd.f32 %v1633, %v1087
  %v1643 = vadd.f32 %v1629, %v1174
  %v1644 = vadd.f32 %v1625, %v1176
  %v1645 = vadd.f32 %v1621, %v1263
  %v1646 = vadd.f32 %v1617, %v1265
  %v1647 = vadd.f32 %v1638, %v1091
  %v1648 = vadd.f32 %v1634, %v1093
  %v1649 = vadd.f32 %v1630, %v1180
  %v1650 = vadd.f32 %v1626, %v1182
  %v1651 = vadd.f32 %v1622, %v1269
  %v1652 = vadd.f32 %v1618, %v1271
  %v1653 = vadd.f32 %v1639, %v1097
  %v1654 = vadd.f32 %v1635, %v1099
  %v1655 = vadd.f32 %v1631, %v1186
  %v1656 = vadd.f32 %v1627, %v1188
  %v1657 = vadd.f32 %v1623, %v1275
  %v1658 = vadd.f32 %v1619, %v1277
  %v1659 = vadd.f32 %v1640, %v1103
  %v1660 = vadd.f32 %v1636, %v1105
  %v1661 = vadd.f32 %v1632, %v1192
  %v1662 = vadd.f32 %v1628, %v1194
  %v1663 = vadd.f32 %v1624, %v1281
  %v1664 = vadd.f32 %v1620, %v1283
  %1665 = vrot.lane.b32.xlu0 %v1369, 110
  %v1666 = vpop.permute.xlu0 %1665
  %1667 = vrot.lane.b32.xlu0 %v1375, 110
  %v1668 = vpop.permute.xlu0 %1667
  %1669 = vrot.lane.b32.xlu0 %v1381, 110
  %v1670 = vpop.permute.xlu0 %1669
  %1671 = vrot.lane.b32.xlu0 %v1387, 110
  %v1672 = vpop.permute.xlu0 %1671
  %1673 = vrot.lane.b32.xlu0 %v1371, 110
  %v1674 = vpop.permute.xlu0 %1673
  %1675 = vrot.lane.b32.xlu0 %v1377, 110
  %v1676 = vpop.permute.xlu0 %1675
  %1677 = vrot.lane.b32.xlu0 %v1383, 110
  %v1678 = vpop.permute.xlu0 %1677
  %1679 = vrot.lane.b32.xlu0 %v1389, 110
  %v1680 = vpop.permute.xlu0 %1679
  %1681 = vrot.lane.b32.xlu0 %v1458, 110
  %v1682 = vpop.permute.xlu0 %1681
  %1683 = vrot.lane.b32.xlu0 %v1464, 110
  %v1684 = vpop.permute.xlu0 %1683
  %1685 = vrot.lane.b32.xlu0 %v1470, 110
  %v1686 = vpop.permute.xlu0 %1685
  %1687 = vrot.lane.b32.xlu0 %v1476, 110
  %v1688 = vpop.permute.xlu0 %1687
  %1689 = vrot.lane.b32.xlu0 %v1460, 110
  %v1690 = vpop.permute.xlu0 %1689
  %1691 = vrot.lane.b32.xlu0 %v1466, 110
  %v1692 = vpop.permute.xlu0 %1691
  %1693 = vrot.lane.b32.xlu0 %v1472, 110
  %v1694 = vpop.permute.xlu0 %1693
  %1695 = vrot.lane.b32.xlu0 %v1478, 110
  %v1696 = vpop.permute.xlu0 %1695
  %1697 = vrot.lane.b32.xlu0 %v1547, 110
  %v1698 = vpop.permute.xlu0 %1697
  %1699 = vrot.lane.b32.xlu0 %v1553, 110
  %v1700 = vpop.permute.xlu0 %1699
  %1701 = vrot.lane.b32.xlu0 %v1559, 110
  %v1702 = vpop.permute.xlu0 %1701
  %1703 = vrot.lane.b32.xlu0 %v1565, 110
  %v1704 = vpop.permute.xlu0 %1703
  %1705 = vrot.lane.b32.xlu0 %v1549, 110
  %v1706 = vpop.permute.xlu0 %1705
  %1707 = vrot.lane.b32.xlu0 %v1555, 110
  %v1708 = vpop.permute.xlu0 %1707
  %1709 = vrot.lane.b32.xlu0 %v1561, 110
  %v1710 = vpop.permute.xlu0 %1709
  %1711 = vrot.lane.b32.xlu0 %v1567, 110
  %v1712 = vpop.permute.xlu0 %1711
  %v1713 = vsel %vm167, %v1698, %v1706
  %v1714 = vsel %vm167, %v1700, %v1708
  %v1715 = vsel %vm167, %v1702, %v1710
  %v1716 = vsel %vm167, %v1704, %v1712
  %v1717 = vsel %vm167, %v1690, %v1698
  %v1718 = vsel %vm167, %v1692, %v1700
  %v1719 = vsel %vm167, %v1694, %v1702
  %v1720 = vsel %vm167, %v1696, %v1704
  %v1721 = vsel %vm167, %v1682, %v1690
  %v1722 = vsel %vm167, %v1684, %v1692
  %v1723 = vsel %vm167, %v1686, %v1694
  %v1724 = vsel %vm167, %v1688, %v1696
  %v1725 = vsel %vm167, %v1674, %v1682
  %v1726 = vsel %vm167, %v1676, %v1684
  %v1727 = vsel %vm167, %v1678, %v1686
  %v1728 = vsel %vm167, %v1680, %v1688
  %v1729 = vsel %vm167, %v1666, %v1674
  %v1730 = vsel %vm167, %v1668, %v1676
  %v1731 = vsel %vm167, %v1670, %v1678
  %v1732 = vsel %vm167, %v1672, %v1680
  %v1733 = vsel %vm167, %v1706, %v1666
  %v1734 = vsel %vm167, %v1708, %v1668
  %v1735 = vsel %vm167, %v1710, %v1670
  %v1736 = vsel %vm167, %v1712, %v1672
  %v1737 = vadd.f32 %v1641, %v1729
  %v1738 = vadd.f32 %v1642, %v1725
  %v1739 = vadd.f32 %v1643, %v1721
  %v1740 = vadd.f32 %v1644, %v1717
  %v1741 = vadd.f32 %v1645, %v1713
  %v1742 = vadd.f32 %v1646, %v1733
  %v1743 = vadd.f32 %v1647, %v1730
  %v1744 = vadd.f32 %v1648, %v1726
  %v1745 = vadd.f32 %v1649, %v1722
  %v1746 = vadd.f32 %v1650, %v1718
  %v1747 = vadd.f32 %v1651, %v1714
  %v1748 = vadd.f32 %v1652, %v1734
  %v1749 = vadd.f32 %v1653, %v1731
  %v1750 = vadd.f32 %v1654, %v1727
  %v1751 = vadd.f32 %v1655, %v1723
  %v1752 = vadd.f32 %v1656, %v1719
  %v1753 = vadd.f32 %v1657, %v1715
  %v1754 = vadd.f32 %v1658, %v1735
  %v1755 = vadd.f32 %v1659, %v1732
  %v1756 = vadd.f32 %v1660, %v1728
  %v1757 = vadd.f32 %v1661, %v1724
  %v1758 = vadd.f32 %v1662, %v1720
  %v1759 = vadd.f32 %v1663, %v1716
  %v1760 = vadd.f32 %v1664, %v1736
  %v1761 = vld [vmem:[%s5] sm:$0xff]
  %v1762 = vld [vmem:[%s5 + $0x8] sm:$0xff]
  %v1763 = vld [vmem:[%s5 + $0x10] sm:$0xff]
  %v1764 = vld [vmem:[%s5 + $0x18] sm:$0xff]
  %1766 = vset.pattern.permute.xlu0 0
  %1767 = vperm.xlu0 %1766, %v1761
  %v1768 = vpop.permute.xlu0 %1767
  %1771 = vset.pattern.permute.xlu0 0
  %1772 = vperm.xlu0 %1771, %v1762
  %v1773 = vpop.permute.xlu0 %1772
  %1776 = vset.pattern.permute.xlu0 0
  %1777 = vperm.xlu0 %1776, %v1763
  %v1778 = vpop.permute.xlu0 %1777
  %1781 = vset.pattern.permute.xlu0 0
  %1782 = vperm.xlu0 %1781, %v1764
  %v1783 = vpop.permute.xlu0 %1782
  %v1785 = vadd.f32 %v1737, %v1768
  %v1786 = vadd.f32 %v1738, %v1768
  %v1787 = vadd.f32 %v1739, %v1768
  %v1788 = vadd.f32 %v1740, %v1768
  %v1789 = vadd.f32 %v1741, %v1768
  %v1790 = vadd.f32 %v1742, %v1768
  %v1791 = vadd.f32 %v1743, %v1773
  %v1792 = vadd.f32 %v1744, %v1773
  %v1793 = vadd.f32 %v1745, %v1773
  %v1794 = vadd.f32 %v1746, %v1773
  %v1795 = vadd.f32 %v1747, %v1773
  %v1796 = vadd.f32 %v1748, %v1773
  %v1797 = vadd.f32 %v1749, %v1778
  %v1798 = vadd.f32 %v1750, %v1778
  %v1799 = vadd.f32 %v1751, %v1778
  %v1800 = vadd.f32 %v1752, %v1778
  %v1801 = vadd.f32 %v1753, %v1778
  %v1802 = vadd.f32 %v1754, %v1778
  %v1803 = vadd.f32 %v1755, %v1783
  %v1804 = vadd.f32 %v1756, %v1783
  %v1805 = vadd.f32 %v1757, %v1783
  %v1806 = vadd.f32 %v1758, %v1783
  %v1807 = vadd.f32 %v1759, %v1783
  %v1808 = vadd.f32 %v1760, %v1783
  %v1809 = vmax.f32 %v1785, 0.0
  %v1810 = vmax.f32 %v1786, 0.0
  %v1811 = vmax.f32 %v1787, 0.0
  %v1812 = vmax.f32 %v1788, 0.0
  %v1813 = vmax.f32 %v1789, 0.0
  %v1814 = vmax.f32 %v1790, 0.0
  %v1815 = vmax.f32 %v1791, 0.0
  %v1816 = vmax.f32 %v1792, 0.0
  %v1817 = vmax.f32 %v1793, 0.0
  %v1818 = vmax.f32 %v1794, 0.0
  %v1819 = vmax.f32 %v1795, 0.0
  %v1820 = vmax.f32 %v1796, 0.0
  %v1821 = vmax.f32 %v1797, 0.0
  %v1822 = vmax.f32 %v1798, 0.0
  %v1823 = vmax.f32 %v1799, 0.0
  %v1824 = vmax.f32 %v1800, 0.0
  %v1825 = vmax.f32 %v1801, 0.0
  %v1826 = vmax.f32 %v1802, 0.0
  %v1827 = vmax.f32 %v1803, 0.0
  %v1828 = vmax.f32 %v1804, 0.0
  %v1829 = vmax.f32 %v1805, 0.0
  %v1830 = vmax.f32 %v1806, 0.0
  %v1831 = vmax.f32 %v1807, 0.0
  %v1832 = vmax.f32 %v1808, 0.0
  %v1833 = vmul.f32 %v1809, %v522
  %v1834 = vmul.f32 %v1810, %v526
  %v1835 = vmul.f32 %v1811, %v530
  %v1836 = vmul.f32 %v1812, %v534
  %v1837 = vmul.f32 %v1813, %v538
  %v1838 = vmul.f32 %v1814, %v542
  %v1839 = vmul.f32 %v1815, %v522
  %v1840 = vmul.f32 %v1816, %v526
  %v1841 = vmul.f32 %v1817, %v530
  %v1842 = vmul.f32 %v1818, %v534
  %v1843 = vmul.f32 %v1819, %v538
  %v1844 = vmul.f32 %v1820, %v542
  %v1845 = vmul.f32 %v1821, %v522
  %v1846 = vmul.f32 %v1822, %v526
  %v1847 = vmul.f32 %v1823, %v530
  %v1848 = vmul.f32 %v1824, %v534
  %v1849 = vmul.f32 %v1825, %v538
  %v1850 = vmul.f32 %v1826, %v542
  %v1851 = vmul.f32 %v1827, %v522
  %v1852 = vmul.f32 %v1828, %v526
  %v1853 = vmul.f32 %v1829, %v530
  %v1854 = vmul.f32 %v1830, %v534
  %v1855 = vmul.f32 %v1831, %v538
  %v1856 = vmul.f32 %v1832, %v542
  %1857 = vrot.lane.b32.xlu0 %v1833, 1
  %v1858 = vpop.permute.xlu0 %1857
  %1859 = vrot.lane.b32.xlu0 %v1839, 1
  %v1860 = vpop.permute.xlu0 %1859
  %1861 = vrot.lane.b32.xlu0 %v1845, 1
  %v1862 = vpop.permute.xlu0 %1861
  %1863 = vrot.lane.b32.xlu0 %v1851, 1
  %v1864 = vpop.permute.xlu0 %1863
  %1865 = vrot.lane.b32.xlu0 %v1834, 1
  %v1866 = vpop.permute.xlu0 %1865
  %1867 = vrot.lane.b32.xlu0 %v1840, 1
  %v1868 = vpop.permute.xlu0 %1867
  %1869 = vrot.lane.b32.xlu0 %v1846, 1
  %v1870 = vpop.permute.xlu0 %1869
  %1871 = vrot.lane.b32.xlu0 %v1852, 1
  %v1872 = vpop.permute.xlu0 %1871
  %1873 = vrot.lane.b32.xlu0 %v1835, 1
  %v1874 = vpop.permute.xlu0 %1873
  %1875 = vrot.lane.b32.xlu0 %v1841, 1
  %v1876 = vpop.permute.xlu0 %1875
  %1877 = vrot.lane.b32.xlu0 %v1847, 1
  %v1878 = vpop.permute.xlu0 %1877
  %1879 = vrot.lane.b32.xlu0 %v1853, 1
  %v1880 = vpop.permute.xlu0 %1879
  %1881 = vrot.lane.b32.xlu0 %v1836, 1
  %v1882 = vpop.permute.xlu0 %1881
  %1883 = vrot.lane.b32.xlu0 %v1842, 1
  %v1884 = vpop.permute.xlu0 %1883
  %1885 = vrot.lane.b32.xlu0 %v1848, 1
  %v1886 = vpop.permute.xlu0 %1885
  %1887 = vrot.lane.b32.xlu0 %v1854, 1
  %v1888 = vpop.permute.xlu0 %1887
  %1889 = vrot.lane.b32.xlu0 %v1837, 1
  %v1890 = vpop.permute.xlu0 %1889
  %1891 = vrot.lane.b32.xlu0 %v1843, 1
  %v1892 = vpop.permute.xlu0 %1891
  %1893 = vrot.lane.b32.xlu0 %v1849, 1
  %v1894 = vpop.permute.xlu0 %1893
  %1895 = vrot.lane.b32.xlu0 %v1855, 1
  %v1896 = vpop.permute.xlu0 %1895
  %1897 = vrot.lane.b32.xlu0 %v1838, 1
  %v1898 = vpop.permute.xlu0 %1897
  %1899 = vrot.lane.b32.xlu0 %v1844, 1
  %v1900 = vpop.permute.xlu0 %1899
  %1901 = vrot.lane.b32.xlu0 %v1850, 1
  %v1902 = vpop.permute.xlu0 %1901
  %1903 = vrot.lane.b32.xlu0 %v1856, 1
  %v1904 = vpop.permute.xlu0 %1903
  %v1905 = vsel %vm50, %v1890, %v1898
  %v1906 = vsel %vm50, %v1892, %v1900
  %v1907 = vsel %vm50, %v1894, %v1902
  %v1908 = vsel %vm50, %v1896, %v1904
  %v1909 = vsel %vm50, %v1882, %v1890
  %v1910 = vsel %vm50, %v1884, %v1892
  %v1911 = vsel %vm50, %v1886, %v1894
  %v1912 = vsel %vm50, %v1888, %v1896
  %v1913 = vsel %vm50, %v1874, %v1882
  %v1914 = vsel %vm50, %v1876, %v1884
  %v1915 = vsel %vm50, %v1878, %v1886
  %v1916 = vsel %vm50, %v1880, %v1888
  %v1917 = vsel %vm50, %v1866, %v1874
  %v1918 = vsel %vm50, %v1868, %v1876
  %v1919 = vsel %vm50, %v1870, %v1878
  %v1920 = vsel %vm50, %v1872, %v1880
  %v1921 = vsel %vm50, %v1858, %v1866
  %v1922 = vsel %vm50, %v1860, %v1868
  %v1923 = vsel %vm50, %v1862, %v1870
  %v1924 = vsel %vm50, %v1864, %v1872
  %v1925 = vsel %vm50, %v1898, %v1858
  %v1926 = vsel %vm50, %v1900, %v1860
  %v1927 = vsel %vm50, %v1902, %v1862
  %v1928 = vsel %vm50, %v1904, %v1864
  %1929 = vrot.lane.b32.xlu0 %v1833, 127
  %v1930 = vpop.permute.xlu0 %1929
  %1931 = vrot.lane.b32.xlu0 %v1839, 127
  %v1932 = vpop.permute.xlu0 %1931
  %1933 = vrot.lane.b32.xlu0 %v1845, 127
  %v1934 = vpop.permute.xlu0 %1933
  %1935 = vrot.lane.b32.xlu0 %v1851, 127
  %v1936 = vpop.permute.xlu0 %1935
  %1937 = vrot.lane.b32.xlu0 %v1834, 127
  %v1938 = vpop.permute.xlu0 %1937
  %1939 = vrot.lane.b32.xlu0 %v1840, 127
  %v1940 = vpop.permute.xlu0 %1939
  %1941 = vrot.lane.b32.xlu0 %v1846, 127
  %v1942 = vpop.permute.xlu0 %1941
  %1943 = vrot.lane.b32.xlu0 %v1852, 127
  %v1944 = vpop.permute.xlu0 %1943
  %1945 = vrot.lane.b32.xlu0 %v1835, 127
  %v1946 = vpop.permute.xlu0 %1945
  %1947 = vrot.lane.b32.xlu0 %v1841, 127
  %v1948 = vpop.permute.xlu0 %1947
  %1949 = vrot.lane.b32.xlu0 %v1847, 127
  %v1950 = vpop.permute.xlu0 %1949
  %1951 = vrot.lane.b32.xlu0 %v1853, 127
  %v1952 = vpop.permute.xlu0 %1951
  %1953 = vrot.lane.b32.xlu0 %v1836, 127
  %v1954 = vpop.permute.xlu0 %1953
  %1955 = vrot.lane.b32.xlu0 %v1842, 127
  %v1956 = vpop.permute.xlu0 %1955
  %1957 = vrot.lane.b32.xlu0 %v1848, 127
  %v1958 = vpop.permute.xlu0 %1957
  %1959 = vrot.lane.b32.xlu0 %v1854, 127
  %v1960 = vpop.permute.xlu0 %1959
  %1961 = vrot.lane.b32.xlu0 %v1837, 127
  %v1962 = vpop.permute.xlu0 %1961
  %1963 = vrot.lane.b32.xlu0 %v1843, 127
  %v1964 = vpop.permute.xlu0 %1963
  %1965 = vrot.lane.b32.xlu0 %v1849, 127
  %v1966 = vpop.permute.xlu0 %1965
  %1967 = vrot.lane.b32.xlu0 %v1855, 127
  %v1968 = vpop.permute.xlu0 %1967
  %1969 = vrot.lane.b32.xlu0 %v1838, 127
  %v1970 = vpop.permute.xlu0 %1969
  %1971 = vrot.lane.b32.xlu0 %v1844, 127
  %v1972 = vpop.permute.xlu0 %1971
  %1973 = vrot.lane.b32.xlu0 %v1850, 127
  %v1974 = vpop.permute.xlu0 %1973
  %1975 = vrot.lane.b32.xlu0 %v1856, 127
  %v1976 = vpop.permute.xlu0 %1975
  %v1977 = vsel %vm69, %v1962, %v1970
  %v1978 = vsel %vm69, %v1964, %v1972
  %v1979 = vsel %vm69, %v1966, %v1974
  %v1980 = vsel %vm69, %v1968, %v1976
  %v1981 = vsel %vm69, %v1954, %v1962
  %v1982 = vsel %vm69, %v1956, %v1964
  %v1983 = vsel %vm69, %v1958, %v1966
  %v1984 = vsel %vm69, %v1960, %v1968
  %v1985 = vsel %vm69, %v1946, %v1954
  %v1986 = vsel %vm69, %v1948, %v1956
  %v1987 = vsel %vm69, %v1950, %v1958
  %v1988 = vsel %vm69, %v1952, %v1960
  %v1989 = vsel %vm69, %v1938, %v1946
  %v1990 = vsel %vm69, %v1940, %v1948
  %v1991 = vsel %vm69, %v1942, %v1950
  %v1992 = vsel %vm69, %v1944, %v1952
  %v1993 = vsel %vm69, %v1930, %v1938
  %v1994 = vsel %vm69, %v1932, %v1940
  %v1995 = vsel %vm69, %v1934, %v1942
  %v1996 = vsel %vm69, %v1936, %v1944
  %v1997 = vsel %vm69, %v1970, %v1930
  %v1998 = vsel %vm69, %v1972, %v1932
  %v1999 = vsel %vm69, %v1974, %v1934
  %v2000 = vsel %vm69, %v1976, %v1936
  %2001 = vmatprep.subr.mxu0 0.0
  %2002 = vmatpush1.msra.mxu0 0.0
  %2003 = vmatprep.subr.mxu0 0.0
  %2004 = vmatpush1.msra.mxu0 0.0
  %2005 = vmatprep.subr.mxu0 0.0
  %2006 = vmatpush1.msra.mxu0 0.0
  %2007 = vmatprep.subr.mxu0 0.0
  %2008 = vmatpush1.msra.mxu0 0.0
  %2009 = vmatprep.subr.mxu0 %v1992
  %2010 = vmatpush1.msra.mxu0 %v1996
  %2011 = vmatprep.subr.mxu0 %v1991
  %2012 = vmatpush1.msra.mxu0 %v1995
  %2013 = vmatprep.subr.mxu0 %v1990
  %2014 = vmatpush1.msra.mxu0 %v1994
  %2015 = vmatprep.subr.mxu0 %v1989
  %2016 = vmatpush1.msra.mxu0 %v1993
  %2017 = vmatprep.subr.mxu0 %v1852
  %2018 = vmatpush1.msra.mxu0 %v1851
  %2019 = vmatprep.subr.mxu0 %v1846
  %2020 = vmatpush1.msra.mxu0 %v1845
  %2021 = vmatprep.subr.mxu0 %v1840
  %2022 = vmatpush1.msra.mxu0 %v1839
  %2023 = vmatprep.subr.mxu0 %v1834
  %2024 = vmatpush1.msra.mxu0 %v1833
  %2025 = vmatprep.subr.mxu0 %v1924
  %2026 = vmatpush1.msra.mxu0 %v1928
  %2027 = vmatprep.subr.mxu0 %v1923
  %2028 = vmatpush1.msra.mxu0 %v1927
  %2029 = vmatprep.subr.mxu0 %v1922
  %2030 = vmatpush1.msra.mxu0 %v1926
  %2031 = vmatprep.subr.mxu0 %v1921
  %2032 = vmatpush1.msra.mxu0 %v1925
  %2033 = vmatprep.subr.mxu0 0.0
  %2034 = vmatpush2.msra.mxu0 0.0
  %2035 = vmatprep.subr.mxu0 0.0
  %2036 = vmatpush2.msra.mxu0 0.0
  %2037 = vmatprep.subr.mxu0 0.0
  %2038 = vmatpush2.msra.mxu0 0.0
  %2039 = vmatprep.subr.mxu0 0.0
  %2040 = vmatpush2.msra.mxu0 0.0
  %2041 = vmatprep.subr.mxu0 0.0
  %2042 = vmatpush2.msra.mxu0 0.0
  %2043 = vmatprep.subr.mxu0 0.0
  %2044 = vmatpush2.msra.mxu0 0.0
  %2045 = vmatprep.subr.mxu0 0.0
  %2046 = vmatpush2.msra.mxu0 0.0
  %2047 = vmatprep.subr.mxu0 0.0
  %2048 = vmatpush2.msra.mxu0 0.0
  %2049 = vmatprep.subr.mxu0 0.0
  %2050 = vmatpush2.msra.mxu0 0.0
  %2051 = vmatprep.subr.mxu0 0.0
  %2052 = vmatpush2.msra.mxu0 0.0
  %2053 = vmatprep.subr.mxu0 0.0
  %2054 = vmatpush2.msra.mxu0 0.0
  %2055 = vmatprep.subr.mxu0 0.0
  %2056 = vmatpush2.msra.mxu0 0.0
  %2057 = vmatprep.subr.mxu0 0.0
  %2058 = vmatpush2.msra.mxu0 0.0
  %2059 = vmatprep.subr.mxu0 0.0
  %2060 = vmatpush2.msra.mxu0 0.0
  %2061 = vmatprep.subr.mxu0 0.0
  %2062 = vmatpush2.msra.mxu0 0.0
  %2063 = vmatprep.subr.mxu0 0.0
  %2064 = vmatpush2.msra.mxu0 0.0
  %2065 = vmatprep.mubr.f32.mxu0 0.0
  %2066 = vmatmul.mubr.f32.gmra.mxu0 %v723
  %v2067 = vpop.f32.mrf.mxu0
  %v2068 = vadd.f32 0.0, %v2067
  %v2069 = vpop.f32.mrf.mxu0
  %v2070 = vadd.f32 0.0, %v2069
  %2071 = vmatprep.mubr.f32.mxu0 0.0
  %2072 = vmatmul.mubr.f32.gmra.mxu0 %v726
  %v2073 = vpop.f32.mrf.mxu0
  %v2074 = vadd.f32 0.0, %v2073
  %v2075 = vpop.f32.mrf.mxu0
  %v2076 = vadd.f32 0.0, %v2075
  %2077 = vmatprep.mubr.f32.mxu0 0.0
  %2078 = vmatmul.mubr.f32.gmra.mxu0 %v729
  %v2079 = vpop.f32.mrf.mxu0
  %v2080 = vadd.f32 0.0, %v2079
  %v2081 = vpop.f32.mrf.mxu0
  %v2082 = vadd.f32 0.0, %v2081
  %2083 = vmatprep.mubr.f32.mxu0 0.0
  %2084 = vmatmul.mubr.f32.gmra.mxu0 %v732
  %v2085 = vpop.f32.mrf.mxu0
  %v2086 = vadd.f32 0.0, %v2085
  %v2087 = vpop.f32.mrf.mxu0
  %v2088 = vadd.f32 0.0, %v2087
  %2089 = vdwg.mxu0
  %2090 = vmatprep.subr.mxu0 0.0
  %2091 = vmatpush1.msra.mxu0 0.0
  %2092 = vmatprep.subr.mxu0 0.0
  %2093 = vmatpush1.msra.mxu0 0.0
  %2094 = vmatprep.subr.mxu0 0.0
  %2095 = vmatpush1.msra.mxu0 0.0
  %2096 = vmatprep.subr.mxu0 0.0
  %2097 = vmatpush1.msra.mxu0 0.0
  %2098 = vmatprep.subr.mxu0 %v1984
  %2099 = vmatpush1.msra.mxu0 %v1988
  %2100 = vmatprep.subr.mxu0 %v1983
  %2101 = vmatpush1.msra.mxu0 %v1987
  %2102 = vmatprep.subr.mxu0 %v1982
  %2103 = vmatpush1.msra.mxu0 %v1986
  %2104 = vmatprep.subr.mxu0 %v1981
  %2105 = vmatpush1.msra.mxu0 %v1985
  %2106 = vmatprep.subr.mxu0 %v1854
  %2107 = vmatpush1.msra.mxu0 %v1853
  %2108 = vmatprep.subr.mxu0 %v1848
  %2109 = vmatpush1.msra.mxu0 %v1847
  %2110 = vmatprep.subr.mxu0 %v1842
  %2111 = vmatpush1.msra.mxu0 %v1841
  %2112 = vmatprep.subr.mxu0 %v1836
  %2113 = vmatpush1.msra.mxu0 %v1835
  %2114 = vmatprep.subr.mxu0 %v1916
  %2115 = vmatpush1.msra.mxu0 %v1920
  %2116 = vmatprep.subr.mxu0 %v1915
  %2117 = vmatpush1.msra.mxu0 %v1919
  %2118 = vmatprep.subr.mxu0 %v1914
  %2119 = vmatpush1.msra.mxu0 %v1918
  %2120 = vmatprep.subr.mxu0 %v1913
  %2121 = vmatpush1.msra.mxu0 %v1917
  %2122 = vmatprep.subr.mxu0 0.0
  %2123 = vmatpush2.msra.mxu0 0.0
  %2124 = vmatprep.subr.mxu0 0.0
  %2125 = vmatpush2.msra.mxu0 0.0
  %2126 = vmatprep.subr.mxu0 0.0
  %2127 = vmatpush2.msra.mxu0 0.0
  %2128 = vmatprep.subr.mxu0 0.0
  %2129 = vmatpush2.msra.mxu0 0.0
  %2130 = vmatprep.subr.mxu0 0.0
  %2131 = vmatpush2.msra.mxu0 0.0
  %2132 = vmatprep.subr.mxu0 0.0
  %2133 = vmatpush2.msra.mxu0 0.0
  %2134 = vmatprep.subr.mxu0 0.0
  %2135 = vmatpush2.msra.mxu0 0.0
  %2136 = vmatprep.subr.mxu0 0.0
  %2137 = vmatpush2.msra.mxu0 0.0
  %2138 = vmatprep.subr.mxu0 0.0
  %2139 = vmatpush2.msra.mxu0 0.0
  %2140 = vmatprep.subr.mxu0 0.0
  %2141 = vmatpush2.msra.mxu0 0.0
  %2142 = vmatprep.subr.mxu0 0.0
  %2143 = vmatpush2.msra.mxu0 0.0
  %2144 = vmatprep.subr.mxu0 0.0
  %2145 = vmatpush2.msra.mxu0 0.0
  %2146 = vmatprep.subr.mxu0 0.0
  %2147 = vmatpush2.msra.mxu0 0.0
  %2148 = vmatprep.subr.mxu0 0.0
  %2149 = vmatpush2.msra.mxu0 0.0
  %2150 = vmatprep.subr.mxu0 0.0
  %2151 = vmatpush2.msra.mxu0 0.0
  %2152 = vmatprep.subr.mxu0 0.0
  %2153 = vmatpush2.msra.mxu0 0.0
  %2154 = vmatprep.mubr.f32.mxu0 0.0
  %2155 = vmatmul.mubr.f32.gmra.mxu0 %v723
  %v2156 = vpop.f32.mrf.mxu0
  %v2157 = vadd.f32 0.0, %v2156
  %v2158 = vpop.f32.mrf.mxu0
  %v2159 = vadd.f32 0.0, %v2158
  %2160 = vmatprep.mubr.f32.mxu0 0.0
  %2161 = vmatmul.mubr.f32.gmra.mxu0 %v726
  %v2162 = vpop.f32.mrf.mxu0
  %v2163 = vadd.f32 0.0, %v2162
  %v2164 = vpop.f32.mrf.mxu0
  %v2165 = vadd.f32 0.0, %v2164
  %2166 = vmatprep.mubr.f32.mxu0 0.0
  %2167 = vmatmul.mubr.f32.gmra.mxu0 %v729
  %v2168 = vpop.f32.mrf.mxu0
  %v2169 = vadd.f32 0.0, %v2168
  %v2170 = vpop.f32.mrf.mxu0
  %v2171 = vadd.f32 0.0, %v2170
  %2172 = vmatprep.mubr.f32.mxu0 0.0
  %2173 = vmatmul.mubr.f32.gmra.mxu0 %v732
  %v2174 = vpop.f32.mrf.mxu0
  %v2175 = vadd.f32 0.0, %v2174
  %v2176 = vpop.f32.mrf.mxu0
  %v2177 = vadd.f32 0.0, %v2176
  %2178 = vdwg.mxu0
  %2179 = vmatprep.subr.mxu0 0.0
  %2180 = vmatpush1.msra.mxu0 0.0
  %2181 = vmatprep.subr.mxu0 0.0
  %2182 = vmatpush1.msra.mxu0 0.0
  %2183 = vmatprep.subr.mxu0 0.0
  %2184 = vmatpush1.msra.mxu0 0.0
  %2185 = vmatprep.subr.mxu0 0.0
  %2186 = vmatpush1.msra.mxu0 0.0
  %2187 = vmatprep.subr.mxu0 %v2000
  %2188 = vmatpush1.msra.mxu0 %v1980
  %2189 = vmatprep.subr.mxu0 %v1999
  %2190 = vmatpush1.msra.mxu0 %v1979
  %2191 = vmatprep.subr.mxu0 %v1998
  %2192 = vmatpush1.msra.mxu0 %v1978
  %2193 = vmatprep.subr.mxu0 %v1997
  %2194 = vmatpush1.msra.mxu0 %v1977
  %2195 = vmatprep.subr.mxu0 %v1856
  %2196 = vmatpush1.msra.mxu0 %v1855
  %2197 = vmatprep.subr.mxu0 %v1850
  %2198 = vmatpush1.msra.mxu0 %v1849
  %2199 = vmatprep.subr.mxu0 %v1844
  %2200 = vmatpush1.msra.mxu0 %v1843
  %2201 = vmatprep.subr.mxu0 %v1838
  %2202 = vmatpush1.msra.mxu0 %v1837
  %2203 = vmatprep.subr.mxu0 %v1908
  %2204 = vmatpush1.msra.mxu0 %v1912
  %2205 = vmatprep.subr.mxu0 %v1907
  %2206 = vmatpush1.msra.mxu0 %v1911
  %2207 = vmatprep.subr.mxu0 %v1906
  %2208 = vmatpush1.msra.mxu0 %v1910
  %2209 = vmatprep.subr.mxu0 %v1905
  %2210 = vmatpush1.msra.mxu0 %v1909
  %2211 = vmatprep.subr.mxu0 0.0
  %2212 = vmatpush2.msra.mxu0 0.0
  %2213 = vmatprep.subr.mxu0 0.0
  %2214 = vmatpush2.msra.mxu0 0.0
  %2215 = vmatprep.subr.mxu0 0.0
  %2216 = vmatpush2.msra.mxu0 0.0
  %2217 = vmatprep.subr.mxu0 0.0
  %2218 = vmatpush2.msra.mxu0 0.0
  %2219 = vmatprep.subr.mxu0 0.0
  %2220 = vmatpush2.msra.mxu0 0.0
  %2221 = vmatprep.subr.mxu0 0.0
  %2222 = vmatpush2.msra.mxu0 0.0
  %2223 = vmatprep.subr.mxu0 0.0
  %2224 = vmatpush2.msra.mxu0 0.0
  %2225 = vmatprep.subr.mxu0 0.0
  %2226 = vmatpush2.msra.mxu0 0.0
  %2227 = vmatprep.subr.mxu0 0.0
  %2228 = vmatpush2.msra.mxu0 0.0
  %2229 = vmatprep.subr.mxu0 0.0
  %2230 = vmatpush2.msra.mxu0 0.0
  %2231 = vmatprep.subr.mxu0 0.0
  %2232 = vmatpush2.msra.mxu0 0.0
  %2233 = vmatprep.subr.mxu0 0.0
  %2234 = vmatpush2.msra.mxu0 0.0
  %2235 = vmatprep.subr.mxu0 0.0
  %2236 = vmatpush2.msra.mxu0 0.0
  %2237 = vmatprep.subr.mxu0 0.0
  %2238 = vmatpush2.msra.mxu0 0.0
  %2239 = vmatprep.subr.mxu0 0.0
  %2240 = vmatpush2.msra.mxu0 0.0
  %2241 = vmatprep.subr.mxu0 0.0
  %2242 = vmatpush2.msra.mxu0 0.0
  %2243 = vmatprep.mubr.f32.mxu0 0.0
  %2244 = vmatmul.mubr.f32.gmra.mxu0 %v723
  %v2245 = vpop.f32.mrf.mxu0
  %v2246 = vadd.f32 0.0, %v2245
  %v2247 = vpop.f32.mrf.mxu0
  %v2248 = vadd.f32 0.0, %v2247
  %2249 = vmatprep.mubr.f32.mxu0 0.0
  %2250 = vmatmul.mubr.f32.gmra.mxu0 %v726
  %v2251 = vpop.f32.mrf.mxu0
  %v2252 = vadd.f32 0.0, %v2251
  %v2253 = vpop.f32.mrf.mxu0
  %v2254 = vadd.f32 0.0, %v2253
  %2255 = vmatprep.mubr.f32.mxu0 0.0
  %2256 = vmatmul.mubr.f32.gmra.mxu0 %v729
  %v2257 = vpop.f32.mrf.mxu0
  %v2258 = vadd.f32 0.0, %v2257
  %v2259 = vpop.f32.mrf.mxu0
  %v2260 = vadd.f32 0.0, %v2259
  %2261 = vmatprep.mubr.f32.mxu0 0.0
  %2262 = vmatmul.mubr.f32.gmra.mxu0 %v732
  %v2263 = vpop.f32.mrf.mxu0
  %v2264 = vadd.f32 0.0, %v2263
  %v2265 = vpop.f32.mrf.mxu0
  %v2266 = vadd.f32 0.0, %v2265
  %2267 = vdwg.mxu0
  %2268 = vmatprep.subr.mxu0 0.0
  %2269 = vmatpush1.msra.mxu0 0.0
  %2270 = vmatprep.subr.mxu0 0.0
  %2271 = vmatpush1.msra.mxu0 0.0
  %2272 = vmatprep.subr.mxu0 0.0
  %2273 = vmatpush1.msra.mxu0 0.0
  %2274 = vmatprep.subr.mxu0 0.0
  %2275 = vmatpush1.msra.mxu0 0.0
  %2276 = vmatprep.subr.mxu0 %v1992
  %2277 = vmatpush1.msra.mxu0 %v1996
  %2278 = vmatprep.subr.mxu0 %v1991
  %2279 = vmatpush1.msra.mxu0 %v1995
  %2280 = vmatprep.subr.mxu0 %v1990
  %2281 = vmatpush1.msra.mxu0 %v1994
  %2282 = vmatprep.subr.mxu0 %v1989
  %2283 = vmatpush1.msra.mxu0 %v1993
  %2284 = vmatprep.subr.mxu0 %v1852
  %2285 = vmatpush1.msra.mxu0 %v1851
  %2286 = vmatprep.subr.mxu0 %v1846
  %2287 = vmatpush1.msra.mxu0 %v1845
  %2288 = vmatprep.subr.mxu0 %v1840
  %2289 = vmatpush1.msra.mxu0 %v1839
  %2290 = vmatprep.subr.mxu0 %v1834
  %2291 = vmatpush1.msra.mxu0 %v1833
  %2292 = vmatprep.subr.mxu0 %v1924
  %2293 = vmatpush1.msra.mxu0 %v1928
  %2294 = vmatprep.subr.mxu0 %v1923
  %2295 = vmatpush1.msra.mxu0 %v1927
  %2296 = vmatprep.subr.mxu0 %v1922
  %2297 = vmatpush1.msra.mxu0 %v1926
  %2298 = vmatprep.subr.mxu0 %v1921
  %2299 = vmatpush1.msra.mxu0 %v1925
  %2300 = vmatprep.subr.mxu0 0.0
  %2301 = vmatpush2.msra.mxu0 0.0
  %2302 = vmatprep.subr.mxu0 0.0
  %2303 = vmatpush2.msra.mxu0 0.0
  %2304 = vmatprep.subr.mxu0 0.0
  %2305 = vmatpush2.msra.mxu0 0.0
  %2306 = vmatprep.subr.mxu0 0.0
  %2307 = vmatpush2.msra.mxu0 0.0
  %2308 = vmatprep.subr.mxu0 0.0
  %2309 = vmatpush2.msra.mxu0 0.0
  %2310 = vmatprep.subr.mxu0 0.0
  %2311 = vmatpush2.msra.mxu0 0.0
  %2312 = vmatprep.subr.mxu0 0.0
  %2313 = vmatpush2.msra.mxu0 0.0
  %2314 = vmatprep.subr.mxu0 0.0
  %2315 = vmatpush2.msra.mxu0 0.0
  %2316 = vmatprep.subr.mxu0 0.0
  %2317 = vmatpush2.msra.mxu0 0.0
  %2318 = vmatprep.subr.mxu0 0.0
  %2319 = vmatpush2.msra.mxu0 0.0
  %2320 = vmatprep.subr.mxu0 0.0
  %2321 = vmatpush2.msra.mxu0 0.0
  %2322 = vmatprep.subr.mxu0 0.0
  %2323 = vmatpush2.msra.mxu0 0.0
  %2324 = vmatprep.subr.mxu0 0.0
  %2325 = vmatpush2.msra.mxu0 0.0
  %2326 = vmatprep.subr.mxu0 0.0
  %2327 = vmatpush2.msra.mxu0 0.0
  %2328 = vmatprep.subr.mxu0 0.0
  %2329 = vmatpush2.msra.mxu0 0.0
  %2330 = vmatprep.subr.mxu0 0.0
  %2331 = vmatpush2.msra.mxu0 0.0
  %2332 = vmatprep.mubr.f32.mxu0 0.0
  %2333 = vmatmul.mubr.f32.gmra.mxu0 %v1007
  %v2334 = vpop.f32.mrf.mxu0
  %v2335 = vadd.f32 0.0, %v2334
  %v2336 = vpop.f32.mrf.mxu0
  %v2337 = vadd.f32 0.0, %v2336
  %2338 = vmatprep.mubr.f32.mxu0 0.0
  %2339 = vmatmul.mubr.f32.gmra.mxu0 %v1010
  %v2340 = vpop.f32.mrf.mxu0
  %v2341 = vadd.f32 0.0, %v2340
  %v2342 = vpop.f32.mrf.mxu0
  %v2343 = vadd.f32 0.0, %v2342
  %2344 = vmatprep.mubr.f32.mxu0 0.0
  %2345 = vmatmul.mubr.f32.gmra.mxu0 %v1013
  %v2346 = vpop.f32.mrf.mxu0
  %v2347 = vadd.f32 0.0, %v2346
  %v2348 = vpop.f32.mrf.mxu0
  %v2349 = vadd.f32 0.0, %v2348
  %2350 = vmatprep.mubr.f32.mxu0 0.0
  %2351 = vmatmul.mubr.f32.gmra.mxu0 %v1016
  %v2352 = vpop.f32.mrf.mxu0
  %v2353 = vadd.f32 0.0, %v2352
  %v2354 = vpop.f32.mrf.mxu0
  %v2355 = vadd.f32 0.0, %v2354
  %2356 = vdwg.mxu0
  %2357 = vmatprep.subr.mxu0 0.0
  %2358 = vmatpush1.msra.mxu0 0.0
  %2359 = vmatprep.subr.mxu0 0.0
  %2360 = vmatpush1.msra.mxu0 0.0
  %2361 = vmatprep.subr.mxu0 0.0
  %2362 = vmatpush1.msra.mxu0 0.0
  %2363 = vmatprep.subr.mxu0 0.0
  %2364 = vmatpush1.msra.mxu0 0.0
  %2365 = vmatprep.subr.mxu0 %v1984
  %2366 = vmatpush1.msra.mxu0 %v1988
  %2367 = vmatprep.subr.mxu0 %v1983
  %2368 = vmatpush1.msra.mxu0 %v1987
  %2369 = vmatprep.subr.mxu0 %v1982
  %2370 = vmatpush1.msra.mxu0 %v1986
  %2371 = vmatprep.subr.mxu0 %v1981
  %2372 = vmatpush1.msra.mxu0 %v1985
  %2373 = vmatprep.subr.mxu0 %v1854
  %2374 = vmatpush1.msra.mxu0 %v1853
  %2375 = vmatprep.subr.mxu0 %v1848
  %2376 = vmatpush1.msra.mxu0 %v1847
  %2377 = vmatprep.subr.mxu0 %v1842
  %2378 = vmatpush1.msra.mxu0 %v1841
  %2379 = vmatprep.subr.mxu0 %v1836
  %2380 = vmatpush1.msra.mxu0 %v1835
  %2381 = vmatprep.subr.mxu0 %v1916
  %2382 = vmatpush1.msra.mxu0 %v1920
  %2383 = vmatprep.subr.mxu0 %v1915
  %2384 = vmatpush1.msra.mxu0 %v1919
  %2385 = vmatprep.subr.mxu0 %v1914
  %2386 = vmatpush1.msra.mxu0 %v1918
  %2387 = vmatprep.subr.mxu0 %v1913
  %2388 = vmatpush1.msra.mxu0 %v1917
  %2389 = vmatprep.subr.mxu0 0.0
  %2390 = vmatpush2.msra.mxu0 0.0
  %2391 = vmatprep.subr.mxu0 0.0
  %2392 = vmatpush2.msra.mxu0 0.0
  %2393 = vmatprep.subr.mxu0 0.0
  %2394 = vmatpush2.msra.mxu0 0.0
  %2395 = vmatprep.subr.mxu0 0.0
  %2396 = vmatpush2.msra.mxu0 0.0
  %2397 = vmatprep.subr.mxu0 0.0
  %2398 = vmatpush2.msra.mxu0 0.0
  %2399 = vmatprep.subr.mxu0 0.0
  %2400 = vmatpush2.msra.mxu0 0.0
  %2401 = vmatprep.subr.mxu0 0.0
  %2402 = vmatpush2.msra.mxu0 0.0
  %2403 = vmatprep.subr.mxu0 0.0
  %2404 = vmatpush2.msra.mxu0 0.0
  %2405 = vmatprep.subr.mxu0 0.0
  %2406 = vmatpush2.msra.mxu0 0.0
  %2407 = vmatprep.subr.mxu0 0.0
  %2408 = vmatpush2.msra.mxu0 0.0
  %2409 = vmatprep.subr.mxu0 0.0
  %2410 = vmatpush2.msra.mxu0 0.0
  %2411 = vmatprep.subr.mxu0 0.0
  %2412 = vmatpush2.msra.mxu0 0.0
  %2413 = vmatprep.subr.mxu0 0.0
  %2414 = vmatpush2.msra.mxu0 0.0
  %2415 = vmatprep.subr.mxu0 0.0
  %2416 = vmatpush2.msra.mxu0 0.0
  %2417 = vmatprep.subr.mxu0 0.0
  %2418 = vmatpush2.msra.mxu0 0.0
  %2419 = vmatprep.subr.mxu0 0.0
  %2420 = vmatpush2.msra.mxu0 0.0
  %2421 = vmatprep.mubr.f32.mxu0 0.0
  %2422 = vmatmul.mubr.f32.gmra.mxu0 %v1007
  %v2423 = vpop.f32.mrf.mxu0
  %v2424 = vadd.f32 0.0, %v2423
  %v2425 = vpop.f32.mrf.mxu0
  %v2426 = vadd.f32 0.0, %v2425
  %2427 = vmatprep.mubr.f32.mxu0 0.0
  %2428 = vmatmul.mubr.f32.gmra.mxu0 %v1010
  %v2429 = vpop.f32.mrf.mxu0
  %v2430 = vadd.f32 0.0, %v2429
  %v2431 = vpop.f32.mrf.mxu0
  %v2432 = vadd.f32 0.0, %v2431
  %2433 = vmatprep.mubr.f32.mxu0 0.0
  %2434 = vmatmul.mubr.f32.gmra.mxu0 %v1013
  %v2435 = vpop.f32.mrf.mxu0
  %v2436 = vadd.f32 0.0, %v2435
  %v2437 = vpop.f32.mrf.mxu0
  %v2438 = vadd.f32 0.0, %v2437
  %2439 = vmatprep.mubr.f32.mxu0 0.0
  %2440 = vmatmul.mubr.f32.gmra.mxu0 %v1016
  %v2441 = vpop.f32.mrf.mxu0
  %v2442 = vadd.f32 0.0, %v2441
  %v2443 = vpop.f32.mrf.mxu0
  %v2444 = vadd.f32 0.0, %v2443
  %2445 = vdwg.mxu0
  %2446 = vmatprep.subr.mxu0 0.0
  %2447 = vmatpush1.msra.mxu0 0.0
  %2448 = vmatprep.subr.mxu0 0.0
  %2449 = vmatpush1.msra.mxu0 0.0
  %2450 = vmatprep.subr.mxu0 0.0
  %2451 = vmatpush1.msra.mxu0 0.0
  %2452 = vmatprep.subr.mxu0 0.0
  %2453 = vmatpush1.msra.mxu0 0.0
  %2454 = vmatprep.subr.mxu0 %v2000
  %2455 = vmatpush1.msra.mxu0 %v1980
  %2456 = vmatprep.subr.mxu0 %v1999
  %2457 = vmatpush1.msra.mxu0 %v1979
  %2458 = vmatprep.subr.mxu0 %v1998
  %2459 = vmatpush1.msra.mxu0 %v1978
  %2460 = vmatprep.subr.mxu0 %v1997
  %2461 = vmatpush1.msra.mxu0 %v1977
  %2462 = vmatprep.subr.mxu0 %v1856
  %2463 = vmatpush1.msra.mxu0 %v1855
  %2464 = vmatprep.subr.mxu0 %v1850
  %2465 = vmatpush1.msra.mxu0 %v1849
  %2466 = vmatprep.subr.mxu0 %v1844
  %2467 = vmatpush1.msra.mxu0 %v1843
  %2468 = vmatprep.subr.mxu0 %v1838
  %2469 = vmatpush1.msra.mxu0 %v1837
  %2470 = vmatprep.subr.mxu0 %v1908
  %2471 = vmatpush1.msra.mxu0 %v1912
  %2472 = vmatprep.subr.mxu0 %v1907
  %2473 = vmatpush1.msra.mxu0 %v1911
  %2474 = vmatprep.subr.mxu0 %v1906
  %2475 = vmatpush1.msra.mxu0 %v1910
  %2476 = vmatprep.subr.mxu0 %v1905
  %2477 = vmatpush1.msra.mxu0 %v1909
  %2478 = vmatprep.subr.mxu0 0.0
  %2479 = vmatpush2.msra.mxu0 0.0
  %2480 = vmatprep.subr.mxu0 0.0
  %2481 = vmatpush2.msra.mxu0 0.0
  %2482 = vmatprep.subr.mxu0 0.0
  %2483 = vmatpush2.msra.mxu0 0.0
  %2484 = vmatprep.subr.mxu0 0.0
  %2485 = vmatpush2.msra.mxu0 0.0
  %2486 = vmatprep.subr.mxu0 0.0
  %2487 = vmatpush2.msra.mxu0 0.0
  %2488 = vmatprep.subr.mxu0 0.0
  %2489 = vmatpush2.msra.mxu0 0.0
  %2490 = vmatprep.subr.mxu0 0.0
  %2491 = vmatpush2.msra.mxu0 0.0
  %2492 = vmatprep.subr.mxu0 0.0
  %2493 = vmatpush2.msra.mxu0 0.0
  %2494 = vmatprep.subr.mxu0 0.0
  %2495 = vmatpush2.msra.mxu0 0.0
  %2496 = vmatprep.subr.mxu0 0.0
  %2497 = vmatpush2.msra.mxu0 0.0
  %2498 = vmatprep.subr.mxu0 0.0
  %2499 = vmatpush2.msra.mxu0 0.0
  %2500 = vmatprep.subr.mxu0 0.0
  %2501 = vmatpush2.msra.mxu0 0.0
  %2502 = vmatprep.subr.mxu0 0.0
  %2503 = vmatpush2.msra.mxu0 0.0
  %2504 = vmatprep.subr.mxu0 0.0
  %2505 = vmatpush2.msra.mxu0 0.0
  %2506 = vmatprep.subr.mxu0 0.0
  %2507 = vmatpush2.msra.mxu0 0.0
  %2508 = vmatprep.subr.mxu0 0.0
  %2509 = vmatpush2.msra.mxu0 0.0
  %2510 = vmatprep.mubr.f32.mxu0 0.0
  %2511 = vmatmul.mubr.f32.gmra.mxu0 %v1007
  %v2512 = vpop.f32.mrf.mxu0
  %v2513 = vadd.f32 0.0, %v2512
  %v2514 = vpop.f32.mrf.mxu0
  %v2515 = vadd.f32 0.0, %v2514
  %2516 = vmatprep.mubr.f32.mxu0 0.0
  %2517 = vmatmul.mubr.f32.gmra.mxu0 %v1010
  %v2518 = vpop.f32.mrf.mxu0
  %v2519 = vadd.f32 0.0, %v2518
  %v2520 = vpop.f32.mrf.mxu0
  %v2521 = vadd.f32 0.0, %v2520
  %2522 = vmatprep.mubr.f32.mxu0 0.0
  %2523 = vmatmul.mubr.f32.gmra.mxu0 %v1013
  %v2524 = vpop.f32.mrf.mxu0
  %v2525 = vadd.f32 0.0, %v2524
  %v2526 = vpop.f32.mrf.mxu0
  %v2527 = vadd.f32 0.0, %v2526
  %2528 = vmatprep.mubr.f32.mxu0 0.0
  %2529 = vmatmul.mubr.f32.gmra.mxu0 %v1016
  %v2530 = vpop.f32.mrf.mxu0
  %v2531 = vadd.f32 0.0, %v2530
  %v2532 = vpop.f32.mrf.mxu0
  %v2533 = vadd.f32 0.0, %v2532
  %2534 = vdwg.mxu0
  %2535 = vmatprep.subr.mxu0 0.0
  %2536 = vmatpush1.msra.mxu0 0.0
  %2537 = vmatprep.subr.mxu0 0.0
  %2538 = vmatpush1.msra.mxu0 0.0
  %2539 = vmatprep.subr.mxu0 0.0
  %2540 = vmatpush1.msra.mxu0 0.0
  %2541 = vmatprep.subr.mxu0 0.0
  %2542 = vmatpush1.msra.mxu0 0.0
  %2543 = vmatprep.subr.mxu0 %v1992
  %2544 = vmatpush1.msra.mxu0 %v1996
  %2545 = vmatprep.subr.mxu0 %v1991
  %2546 = vmatpush1.msra.mxu0 %v1995
  %2547 = vmatprep.subr.mxu0 %v1990
  %2548 = vmatpush1.msra.mxu0 %v1994
  %2549 = vmatprep.subr.mxu0 %v1989
  %2550 = vmatpush1.msra.mxu0 %v1993
  %2551 = vmatprep.subr.mxu0 %v1852
  %2552 = vmatpush1.msra.mxu0 %v1851
  %2553 = vmatprep.subr.mxu0 %v1846
  %2554 = vmatpush1.msra.mxu0 %v1845
  %2555 = vmatprep.subr.mxu0 %v1840
  %2556 = vmatpush1.msra.mxu0 %v1839
  %2557 = vmatprep.subr.mxu0 %v1834
  %2558 = vmatpush1.msra.mxu0 %v1833
  %2559 = vmatprep.subr.mxu0 %v1924
  %2560 = vmatpush1.msra.mxu0 %v1928
  %2561 = vmatprep.subr.mxu0 %v1923
  %2562 = vmatpush1.msra.mxu0 %v1927
  %2563 = vmatprep.subr.mxu0 %v1922
  %2564 = vmatpush1.msra.mxu0 %v1926
  %2565 = vmatprep.subr.mxu0 %v1921
  %2566 = vmatpush1.msra.mxu0 %v1925
  %2567 = vmatprep.subr.mxu0 0.0
  %2568 = vmatpush2.msra.mxu0 0.0
  %2569 = vmatprep.subr.mxu0 0.0
  %2570 = vmatpush2.msra.mxu0 0.0
  %2571 = vmatprep.subr.mxu0 0.0
  %2572 = vmatpush2.msra.mxu0 0.0
  %2573 = vmatprep.subr.mxu0 0.0
  %2574 = vmatpush2.msra.mxu0 0.0
  %2575 = vmatprep.subr.mxu0 0.0
  %2576 = vmatpush2.msra.mxu0 0.0
  %2577 = vmatprep.subr.mxu0 0.0
  %2578 = vmatpush2.msra.mxu0 0.0
  %2579 = vmatprep.subr.mxu0 0.0
  %2580 = vmatpush2.msra.mxu0 0.0
  %2581 = vmatprep.subr.mxu0 0.0
  %2582 = vmatpush2.msra.mxu0 0.0
  %2583 = vmatprep.subr.mxu0 0.0
  %2584 = vmatpush2.msra.mxu0 0.0
  %2585 = vmatprep.subr.mxu0 0.0
  %2586 = vmatpush2.msra.mxu0 0.0
  %2587 = vmatprep.subr.mxu0 0.0
  %2588 = vmatpush2.msra.mxu0 0.0
  %2589 = vmatprep.subr.mxu0 0.0
  %2590 = vmatpush2.msra.mxu0 0.0
  %2591 = vmatprep.subr.mxu0 0.0
  %2592 = vmatpush2.msra.mxu0 0.0
  %2593 = vmatprep.subr.mxu0 0.0
  %2594 = vmatpush2.msra.mxu0 0.0
  %2595 = vmatprep.subr.mxu0 0.0
  %2596 = vmatpush2.msra.mxu0 0.0
  %2597 = vmatprep.subr.mxu0 0.0
  %2598 = vmatpush2.msra.mxu0 0.0
  %2599 = vmatprep.mubr.f32.mxu0 0.0
  %2600 = vmatmul.mubr.f32.gmra.mxu0 %v1291
  %v2601 = vpop.f32.mrf.mxu0
  %v2602 = vadd.f32 0.0, %v2601
  %v2603 = vpop.f32.mrf.mxu0
  %v2604 = vadd.f32 0.0, %v2603
  %2605 = vmatprep.mubr.f32.mxu0 0.0
  %2606 = vmatmul.mubr.f32.gmra.mxu0 %v1294
  %v2607 = vpop.f32.mrf.mxu0
  %v2608 = vadd.f32 0.0, %v2607
  %v2609 = vpop.f32.mrf.mxu0
  %v2610 = vadd.f32 0.0, %v2609
  %2611 = vmatprep.mubr.f32.mxu0 0.0
  %2612 = vmatmul.mubr.f32.gmra.mxu0 %v1297
  %v2613 = vpop.f32.mrf.mxu0
  %v2614 = vadd.f32 0.0, %v2613
  %v2615 = vpop.f32.mrf.mxu0
  %v2616 = vadd.f32 0.0, %v2615
  %2617 = vmatprep.mubr.f32.mxu0 0.0
  %2618 = vmatmul.mubr.f32.gmra.mxu0 %v1300
  %v2619 = vpop.f32.mrf.mxu0
  %v2620 = vadd.f32 0.0, %v2619
  %v2621 = vpop.f32.mrf.mxu0
  %v2622 = vadd.f32 0.0, %v2621
  %2623 = vdwg.mxu0
  %2624 = vmatprep.subr.mxu0 0.0
  %2625 = vmatpush1.msra.mxu0 0.0
  %2626 = vmatprep.subr.mxu0 0.0
  %2627 = vmatpush1.msra.mxu0 0.0
  %2628 = vmatprep.subr.mxu0 0.0
  %2629 = vmatpush1.msra.mxu0 0.0
  %2630 = vmatprep.subr.mxu0 0.0
  %2631 = vmatpush1.msra.mxu0 0.0
  %2632 = vmatprep.subr.mxu0 %v1984
  %2633 = vmatpush1.msra.mxu0 %v1988
  %2634 = vmatprep.subr.mxu0 %v1983
  %2635 = vmatpush1.msra.mxu0 %v1987
  %2636 = vmatprep.subr.mxu0 %v1982
  %2637 = vmatpush1.msra.mxu0 %v1986
  %2638 = vmatprep.subr.mxu0 %v1981
  %2639 = vmatpush1.msra.mxu0 %v1985
  %2640 = vmatprep.subr.mxu0 %v1854
  %2641 = vmatpush1.msra.mxu0 %v1853
  %2642 = vmatprep.subr.mxu0 %v1848
  %2643 = vmatpush1.msra.mxu0 %v1847
  %2644 = vmatprep.subr.mxu0 %v1842
  %2645 = vmatpush1.msra.mxu0 %v1841
  %2646 = vmatprep.subr.mxu0 %v1836
  %2647 = vmatpush1.msra.mxu0 %v1835
  %2648 = vmatprep.subr.mxu0 %v1916
  %2649 = vmatpush1.msra.mxu0 %v1920
  %2650 = vmatprep.subr.mxu0 %v1915
  %2651 = vmatpush1.msra.mxu0 %v1919
  %2652 = vmatprep.subr.mxu0 %v1914
  %2653 = vmatpush1.msra.mxu0 %v1918
  %2654 = vmatprep.subr.mxu0 %v1913
  %2655 = vmatpush1.msra.mxu0 %v1917
  %2656 = vmatprep.subr.mxu0 0.0
  %2657 = vmatpush2.msra.mxu0 0.0
  %2658 = vmatprep.subr.mxu0 0.0
  %2659 = vmatpush2.msra.mxu0 0.0
  %2660 = vmatprep.subr.mxu0 0.0
  %2661 = vmatpush2.msra.mxu0 0.0
  %2662 = vmatprep.subr.mxu0 0.0
  %2663 = vmatpush2.msra.mxu0 0.0
  %2664 = vmatprep.subr.mxu0 0.0
  %2665 = vmatpush2.msra.mxu0 0.0
  %2666 = vmatprep.subr.mxu0 0.0
  %2667 = vmatpush2.msra.mxu0 0.0
  %2668 = vmatprep.subr.mxu0 0.0
  %2669 = vmatpush2.msra.mxu0 0.0
  %2670 = vmatprep.subr.mxu0 0.0
  %2671 = vmatpush2.msra.mxu0 0.0
  %2672 = vmatprep.subr.mxu0 0.0
  %2673 = vmatpush2.msra.mxu0 0.0
  %2674 = vmatprep.subr.mxu0 0.0
  %2675 = vmatpush2.msra.mxu0 0.0
  %2676 = vmatprep.subr.mxu0 0.0
  %2677 = vmatpush2.msra.mxu0 0.0
  %2678 = vmatprep.subr.mxu0 0.0
  %2679 = vmatpush2.msra.mxu0 0.0
  %2680 = vmatprep.subr.mxu0 0.0
  %2681 = vmatpush2.msra.mxu0 0.0
  %2682 = vmatprep.subr.mxu0 0.0
  %2683 = vmatpush2.msra.mxu0 0.0
  %2684 = vmatprep.subr.mxu0 0.0
  %2685 = vmatpush2.msra.mxu0 0.0
  %2686 = vmatprep.subr.mxu0 0.0
  %2687 = vmatpush2.msra.mxu0 0.0
  %2688 = vmatprep.mubr.f32.mxu0 0.0
  %2689 = vmatmul.mubr.f32.gmra.mxu0 %v1291
  %v2690 = vpop.f32.mrf.mxu0
  %v2691 = vadd.f32 0.0, %v2690
  %v2692 = vpop.f32.mrf.mxu0
  %v2693 = vadd.f32 0.0, %v2692
  %2694 = vmatprep.mubr.f32.mxu0 0.0
  %2695 = vmatmul.mubr.f32.gmra.mxu0 %v1294
  %v2696 = vpop.f32.mrf.mxu0
  %v2697 = vadd.f32 0.0, %v2696
  %v2698 = vpop.f32.mrf.mxu0
  %v2699 = vadd.f32 0.0, %v2698
  %2700 = vmatprep.mubr.f32.mxu0 0.0
  %2701 = vmatmul.mubr.f32.gmra.mxu0 %v1297
  %v2702 = vpop.f32.mrf.mxu0
  %v2703 = vadd.f32 0.0, %v2702
  %v2704 = vpop.f32.mrf.mxu0
  %v2705 = vadd.f32 0.0, %v2704
  %2706 = vmatprep.mubr.f32.mxu0 0.0
  %2707 = vmatmul.mubr.f32.gmra.mxu0 %v1300
  %v2708 = vpop.f32.mrf.mxu0
  %v2709 = vadd.f32 0.0, %v2708
  %v2710 = vpop.f32.mrf.mxu0
  %v2711 = vadd.f32 0.0, %v2710
  %2712 = vdwg.mxu0
  %2713 = vmatprep.subr.mxu0 0.0
  %2714 = vmatpush1.msra.mxu0 0.0
  %2715 = vmatprep.subr.mxu0 0.0
  %2716 = vmatpush1.msra.mxu0 0.0
  %2717 = vmatprep.subr.mxu0 0.0
  %2718 = vmatpush1.msra.mxu0 0.0
  %2719 = vmatprep.subr.mxu0 0.0
  %2720 = vmatpush1.msra.mxu0 0.0
  %2721 = vmatprep.subr.mxu0 %v2000
  %2722 = vmatpush1.msra.mxu0 %v1980
  %2723 = vmatprep.subr.mxu0 %v1999
  %2724 = vmatpush1.msra.mxu0 %v1979
  %2725 = vmatprep.subr.mxu0 %v1998
  %2726 = vmatpush1.msra.mxu0 %v1978
  %2727 = vmatprep.subr.mxu0 %v1997
  %2728 = vmatpush1.msra.mxu0 %v1977
  %2729 = vmatprep.subr.mxu0 %v1856
  %2730 = vmatpush1.msra.mxu0 %v1855
  %2731 = vmatprep.subr.mxu0 %v1850
  %2732 = vmatpush1.msra.mxu0 %v1849
  %2733 = vmatprep.subr.mxu0 %v1844
  %2734 = vmatpush1.msra.mxu0 %v1843
  %2735 = vmatprep.subr.mxu0 %v1838
  %2736 = vmatpush1.msra.mxu0 %v1837
  %2737 = vmatprep.subr.mxu0 %v1908
  %2738 = vmatpush1.msra.mxu0 %v1912
  %2739 = vmatprep.subr.mxu0 %v1907
  %2740 = vmatpush1.msra.mxu0 %v1911
  %2741 = vmatprep.subr.mxu0 %v1906
  %2742 = vmatpush1.msra.mxu0 %v1910
  %2743 = vmatprep.subr.mxu0 %v1905
  %2744 = vmatpush1.msra.mxu0 %v1909
  %2745 = vmatprep.subr.mxu0 0.0
  %2746 = vmatpush2.msra.mxu0 0.0
  %2747 = vmatprep.subr.mxu0 0.0
  %2748 = vmatpush2.msra.mxu0 0.0
  %2749 = vmatprep.subr.mxu0 0.0
  %2750 = vmatpush2.msra.mxu0 0.0
  %2751 = vmatprep.subr.mxu0 0.0
  %2752 = vmatpush2.msra.mxu0 0.0
  %2753 = vmatprep.subr.mxu0 0.0
  %2754 = vmatpush2.msra.mxu0 0.0
  %2755 = vmatprep.subr.mxu0 0.0
  %2756 = vmatpush2.msra.mxu0 0.0
  %2757 = vmatprep.subr.mxu0 0.0
  %2758 = vmatpush2.msra.mxu0 0.0
  %2759 = vmatprep.subr.mxu0 0.0
  %2760 = vmatpush2.msra.mxu0 0.0
  %2761 = vmatprep.subr.mxu0 0.0
  %2762 = vmatpush2.msra.mxu0 0.0
  %2763 = vmatprep.subr.mxu0 0.0
  %2764 = vmatpush2.msra.mxu0 0.0
  %2765 = vmatprep.subr.mxu0 0.0
  %2766 = vmatpush2.msra.mxu0 0.0
  %2767 = vmatprep.subr.mxu0 0.0
  %2768 = vmatpush2.msra.mxu0 0.0
  %2769 = vmatprep.subr.mxu0 0.0
  %2770 = vmatpush2.msra.mxu0 0.0
  %2771 = vmatprep.subr.mxu0 0.0
  %2772 = vmatpush2.msra.mxu0 0.0
  %2773 = vmatprep.subr.mxu0 0.0
  %2774 = vmatpush2.msra.mxu0 0.0
  %2775 = vmatprep.subr.mxu0 0.0
  %2776 = vmatpush2.msra.mxu0 0.0
  %2777 = vmatprep.mubr.f32.mxu0 0.0
  %2778 = vmatmul.mubr.f32.gmra.mxu0 %v1291
  %v2779 = vpop.f32.mrf.mxu0
  %v2780 = vadd.f32 0.0, %v2779
  %v2781 = vpop.f32.mrf.mxu0
  %v2782 = vadd.f32 0.0, %v2781
  %2783 = vmatprep.mubr.f32.mxu0 0.0
  %2784 = vmatmul.mubr.f32.gmra.mxu0 %v1294
  %v2785 = vpop.f32.mrf.mxu0
  %v2786 = vadd.f32 0.0, %v2785
  %v2787 = vpop.f32.mrf.mxu0
  %v2788 = vadd.f32 0.0, %v2787
  %2789 = vmatprep.mubr.f32.mxu0 0.0
  %2790 = vmatmul.mubr.f32.gmra.mxu0 %v1297
  %v2791 = vpop.f32.mrf.mxu0
  %v2792 = vadd.f32 0.0, %v2791
  %v2793 = vpop.f32.mrf.mxu0
  %v2794 = vadd.f32 0.0, %v2793
  %2795 = vmatprep.mubr.f32.mxu0 0.0
  %2796 = vmatmul.mubr.f32.gmra.mxu0 %v1300
  %v2797 = vpop.f32.mrf.mxu0
  %v2798 = vadd.f32 0.0, %v2797
  %v2799 = vpop.f32.mrf.mxu0
  %v2800 = vadd.f32 0.0, %v2799
  %2801 = vdwg.mxu0
  %2802 = vrot.lane.b32.xlu0 %v2068, 18
  %v2803 = vpop.permute.xlu0 %2802
  %2804 = vrot.lane.b32.xlu0 %v2074, 18
  %v2805 = vpop.permute.xlu0 %2804
  %2806 = vrot.lane.b32.xlu0 %v2080, 18
  %v2807 = vpop.permute.xlu0 %2806
  %2808 = vrot.lane.b32.xlu0 %v2086, 18
  %v2809 = vpop.permute.xlu0 %2808
  %2810 = vrot.lane.b32.xlu0 %v2070, 18
  %v2811 = vpop.permute.xlu0 %2810
  %2812 = vrot.lane.b32.xlu0 %v2076, 18
  %v2813 = vpop.permute.xlu0 %2812
  %2814 = vrot.lane.b32.xlu0 %v2082, 18
  %v2815 = vpop.permute.xlu0 %2814
  %2816 = vrot.lane.b32.xlu0 %v2088, 18
  %v2817 = vpop.permute.xlu0 %2816
  %2818 = vrot.lane.b32.xlu0 %v2157, 18
  %v2819 = vpop.permute.xlu0 %2818
  %2820 = vrot.lane.b32.xlu0 %v2163, 18
  %v2821 = vpop.permute.xlu0 %2820
  %2822 = vrot.lane.b32.xlu0 %v2169, 18
  %v2823 = vpop.permute.xlu0 %2822
  %2824 = vrot.lane.b32.xlu0 %v2175, 18
  %v2825 = vpop.permute.xlu0 %2824
  %2826 = vrot.lane.b32.xlu0 %v2159, 18
  %v2827 = vpop.permute.xlu0 %2826
  %2828 = vrot.lane.b32.xlu0 %v2165, 18
  %v2829 = vpop.permute.xlu0 %2828
  %2830 = vrot.lane.b32.xlu0 %v2171, 18
  %v2831 = vpop.permute.xlu0 %2830
  %2832 = vrot.lane.b32.xlu0 %v2177, 18
  %v2833 = vpop.permute.xlu0 %2832
  %2834 = vrot.lane.b32.xlu0 %v2246, 18
  %v2835 = vpop.permute.xlu0 %2834
  %2836 = vrot.lane.b32.xlu0 %v2252, 18
  %v2837 = vpop.permute.xlu0 %2836
  %2838 = vrot.lane.b32.xlu0 %v2258, 18
  %v2839 = vpop.permute.xlu0 %2838
  %2840 = vrot.lane.b32.xlu0 %v2264, 18
  %v2841 = vpop.permute.xlu0 %2840
  %2842 = vrot.lane.b32.xlu0 %v2248, 18
  %v2843 = vpop.permute.xlu0 %2842
  %2844 = vrot.lane.b32.xlu0 %v2254, 18
  %v2845 = vpop.permute.xlu0 %2844
  %2846 = vrot.lane.b32.xlu0 %v2260, 18
  %v2847 = vpop.permute.xlu0 %2846
  %2848 = vrot.lane.b32.xlu0 %v2266, 18
  %v2849 = vpop.permute.xlu0 %2848
  %v2850 = vsel %vm112, %v2835, %v2843
  %v2851 = vsel %vm112, %v2837, %v2845
  %v2852 = vsel %vm112, %v2839, %v2847
  %v2853 = vsel %vm112, %v2841, %v2849
  %v2854 = vsel %vm112, %v2827, %v2835
  %v2855 = vsel %vm112, %v2829, %v2837
  %v2856 = vsel %vm112, %v2831, %v2839
  %v2857 = vsel %vm112, %v2833, %v2841
  %v2858 = vsel %vm112, %v2819, %v2827
  %v2859 = vsel %vm112, %v2821, %v2829
  %v2860 = vsel %vm112, %v2823, %v2831
  %v2861 = vsel %vm112, %v2825, %v2833
  %v2862 = vsel %vm112, %v2811, %v2819
  %v2863 = vsel %vm112, %v2813, %v2821
  %v2864 = vsel %vm112, %v2815, %v2823
  %v2865 = vsel %vm112, %v2817, %v2825
  %v2866 = vsel %vm112, %v2803, %v2811
  %v2867 = vsel %vm112, %v2805, %v2813
  %v2868 = vsel %vm112, %v2807, %v2815
  %v2869 = vsel %vm112, %v2809, %v2817
  %v2870 = vsel %vm112, %v2843, %v2803
  %v2871 = vsel %vm112, %v2845, %v2805
  %v2872 = vsel %vm112, %v2847, %v2807
  %v2873 = vsel %vm112, %v2849, %v2809
  %v2874 = vadd.f32 %v2870, %v2335
  %v2875 = vadd.f32 %v2866, %v2337
  %v2876 = vadd.f32 %v2862, %v2424
  %v2877 = vadd.f32 %v2858, %v2426
  %v2878 = vadd.f32 %v2854, %v2513
  %v2879 = vadd.f32 %v2850, %v2515
  %v2880 = vadd.f32 %v2871, %v2341
  %v2881 = vadd.f32 %v2867, %v2343
  %v2882 = vadd.f32 %v2863, %v2430
  %v2883 = vadd.f32 %v2859, %v2432
  %v2884 = vadd.f32 %v2855, %v2519
  %v2885 = vadd.f32 %v2851, %v2521
  %v2886 = vadd.f32 %v2872, %v2347
  %v2887 = vadd.f32 %v2868, %v2349
  %v2888 = vadd.f32 %v2864, %v2436
  %v2889 = vadd.f32 %v2860, %v2438
  %v2890 = vadd.f32 %v2856, %v2525
  %v2891 = vadd.f32 %v2852, %v2527
  %v2892 = vadd.f32 %v2873, %v2353
  %v2893 = vadd.f32 %v2869, %v2355
  %v2894 = vadd.f32 %v2865, %v2442
  %v2895 = vadd.f32 %v2861, %v2444
  %v2896 = vadd.f32 %v2857, %v2531
  %v2897 = vadd.f32 %v2853, %v2533
  %2898 = vrot.lane.b32.xlu0 %v2602, 110
  %v2899 = vpop.permute.xlu0 %2898
  %2900 = vrot.lane.b32.xlu0 %v2608, 110
  %v2901 = vpop.permute.xlu0 %2900
  %2902 = vrot.lane.b32.xlu0 %v2614, 110
  %v2903 = vpop.permute.xlu0 %2902
  %2904 = vrot.lane.b32.xlu0 %v2620, 110
  %v2905 = vpop.permute.xlu0 %2904
  %2906 = vrot.lane.b32.xlu0 %v2604, 110
  %v2907 = vpop.permute.xlu0 %2906
  %2908 = vrot.lane.b32.xlu0 %v2610, 110
  %v2909 = vpop.permute.xlu0 %2908
  %2910 = vrot.lane.b32.xlu0 %v2616, 110
  %v2911 = vpop.permute.xlu0 %2910
  %2912 = vrot.lane.b32.xlu0 %v2622, 110
  %v2913 = vpop.permute.xlu0 %2912
  %2914 = vrot.lane.b32.xlu0 %v2691, 110
  %v2915 = vpop.permute.xlu0 %2914
  %2916 = vrot.lane.b32.xlu0 %v2697, 110
  %v2917 = vpop.permute.xlu0 %2916
  %2918 = vrot.lane.b32.xlu0 %v2703, 110
  %v2919 = vpop.permute.xlu0 %2918
  %2920 = vrot.lane.b32.xlu0 %v2709, 110
  %v2921 = vpop.permute.xlu0 %2920
  %2922 = vrot.lane.b32.xlu0 %v2693, 110
  %v2923 = vpop.permute.xlu0 %2922
  %2924 = vrot.lane.b32.xlu0 %v2699, 110
  %v2925 = vpop.permute.xlu0 %2924
  %2926 = vrot.lane.b32.xlu0 %v2705, 110
  %v2927 = vpop.permute.xlu0 %2926
  %2928 = vrot.lane.b32.xlu0 %v2711, 110
  %v2929 = vpop.permute.xlu0 %2928
  %2930 = vrot.lane.b32.xlu0 %v2780, 110
  %v2931 = vpop.permute.xlu0 %2930
  %2932 = vrot.lane.b32.xlu0 %v2786, 110
  %v2933 = vpop.permute.xlu0 %2932
  %2934 = vrot.lane.b32.xlu0 %v2792, 110
  %v2935 = vpop.permute.xlu0 %2934
  %2936 = vrot.lane.b32.xlu0 %v2798, 110
  %v2937 = vpop.permute.xlu0 %2936
  %2938 = vrot.lane.b32.xlu0 %v2782, 110
  %v2939 = vpop.permute.xlu0 %2938
  %2940 = vrot.lane.b32.xlu0 %v2788, 110
  %v2941 = vpop.permute.xlu0 %2940
  %2942 = vrot.lane.b32.xlu0 %v2794, 110
  %v2943 = vpop.permute.xlu0 %2942
  %2944 = vrot.lane.b32.xlu0 %v2800, 110
  %v2945 = vpop.permute.xlu0 %2944
  %v2946 = vsel %vm167, %v2931, %v2939
  %v2947 = vsel %vm167, %v2933, %v2941
  %v2948 = vsel %vm167, %v2935, %v2943
  %v2949 = vsel %vm167, %v2937, %v2945
  %v2950 = vsel %vm167, %v2923, %v2931
  %v2951 = vsel %vm167, %v2925, %v2933
  %v2952 = vsel %vm167, %v2927, %v2935
  %v2953 = vsel %vm167, %v2929, %v2937
  %v2954 = vsel %vm167, %v2915, %v2923
  %v2955 = vsel %vm167, %v2917, %v2925
  %v2956 = vsel %vm167, %v2919, %v2927
  %v2957 = vsel %vm167, %v2921, %v2929
  %v2958 = vsel %vm167, %v2907, %v2915
  %v2959 = vsel %vm167, %v2909, %v2917
  %v2960 = vsel %vm167, %v2911, %v2919
  %v2961 = vsel %vm167, %v2913, %v2921
  %v2962 = vsel %vm167, %v2899, %v2907
  %v2963 = vsel %vm167, %v2901, %v2909
  %v2964 = vsel %vm167, %v2903, %v2911
  %v2965 = vsel %vm167, %v2905, %v2913
  %v2966 = vsel %vm167, %v2939, %v2899
  %v2967 = vsel %vm167, %v2941, %v2901
  %v2968 = vsel %vm167, %v2943, %v2903
  %v2969 = vsel %vm167, %v2945, %v2905
  %v2970 = vadd.f32 %v2874, %v2962
  %v2971 = vadd.f32 %v2875, %v2958
  %v2972 = vadd.f32 %v2876, %v2954
  %v2973 = vadd.f32 %v2877, %v2950
  %v2974 = vadd.f32 %v2878, %v2946
  %v2975 = vadd.f32 %v2879, %v2966
  %v2976 = vadd.f32 %v2880, %v2963
  %v2977 = vadd.f32 %v2881, %v2959
  %v2978 = vadd.f32 %v2882, %v2955
  %v2979 = vadd.f32 %v2883, %v2951
  %v2980 = vadd.f32 %v2884, %v2947
  %v2981 = vadd.f32 %v2885, %v2967
  %v2982 = vadd.f32 %v2886, %v2964
  %v2983 = vadd.f32 %v2887, %v2960
  %v2984 = vadd.f32 %v2888, %v2956
  %v2985 = vadd.f32 %v2889, %v2952
  %v2986 = vadd.f32 %v2890, %v2948
  %v2987 = vadd.f32 %v2891, %v2968
  %v2988 = vadd.f32 %v2892, %v2965
  %v2989 = vadd.f32 %v2893, %v2961
  %v2990 = vadd.f32 %v2894, %v2957
  %v2991 = vadd.f32 %v2895, %v2953
  %v2992 = vadd.f32 %v2896, %v2949
  %v2993 = vadd.f32 %v2897, %v2969
  %v2994 = vadd.f32 %v2970, %v1768
  %v2995 = vadd.f32 %v2971, %v1768
  %v2996 = vadd.f32 %v2972, %v1768
  %v2997 = vadd.f32 %v2973, %v1768
  %v2998 = vadd.f32 %v2974, %v1768
  %v2999 = vadd.f32 %v2975, %v1768
  %v3000 = vadd.f32 %v2976, %v1773
  %v3001 = vadd.f32 %v2977, %v1773
  %v3002 = vadd.f32 %v2978, %v1773
  %v3003 = vadd.f32 %v2979, %v1773
  %v3004 = vadd.f32 %v2980, %v1773
  %v3005 = vadd.f32 %v2981, %v1773
  %v3006 = vadd.f32 %v2982, %v1778
  %v3007 = vadd.f32 %v2983, %v1778
  %v3008 = vadd.f32 %v2984, %v1778
  %v3009 = vadd.f32 %v2985, %v1778
  %v3010 = vadd.f32 %v2986, %v1778
  %v3011 = vadd.f32 %v2987, %v1778
  %v3012 = vadd.f32 %v2988, %v1783
  %v3013 = vadd.f32 %v2989, %v1783
  %v3014 = vadd.f32 %v2990, %v1783
  %v3015 = vadd.f32 %v2991, %v1783
  %v3016 = vadd.f32 %v2992, %v1783
  %v3017 = vadd.f32 %v2993, %v1783
  %v3018 = vmax.f32 %v2994, 0.0
  %v3019 = vmax.f32 %v2995, 0.0
  %v3020 = vmax.f32 %v2996, 0.0
  %v3021 = vmax.f32 %v2997, 0.0
  %v3022 = vmax.f32 %v2998, 0.0
  %v3023 = vmax.f32 %v2999, 0.0
  %v3024 = vmax.f32 %v3000, 0.0
  %v3025 = vmax.f32 %v3001, 0.0
  %v3026 = vmax.f32 %v3002, 0.0
  %v3027 = vmax.f32 %v3003, 0.0
  %v3028 = vmax.f32 %v3004, 0.0
  %v3029 = vmax.f32 %v3005, 0.0
  %v3030 = vmax.f32 %v3006, 0.0
  %v3031 = vmax.f32 %v3007, 0.0
  %v3032 = vmax.f32 %v3008, 0.0
  %v3033 = vmax.f32 %v3009, 0.0
  %v3034 = vmax.f32 %v3010, 0.0
  %v3035 = vmax.f32 %v3011, 0.0
  %v3036 = vmax.f32 %v3012, 0.0
  %v3037 = vmax.f32 %v3013, 0.0
  %v3038 = vmax.f32 %v3014, 0.0
  %v3039 = vmax.f32 %v3015, 0.0
  %v3040 = vmax.f32 %v3016, 0.0
  %v3041 = vmax.f32 %v3017, 0.0
  %v3042 = vld [vmem:[%s6] sm:$0xff]
  %v3043 = vld [vmem:[%s7] sm:$0xff]
  %3045 = vset.pattern.permute.xlu0 0
  %3046 = vperm.xlu0 %3045, %v3043
  %v3047 = vpop.permute.xlu0 %3046
  %vm3049 = vcmask 261120
  %v3051 = vsel %vm3049, %v3042, 0
  %3053 = vmatprep.subr.mxu0 0.0
  %3054 = vmatpush1.msra.mxu0 0.0
  %3055 = vmatprep.subr.mxu0 0.0
  %3056 = vmatpush1.msra.mxu0 0.0
  %3057 = vmatprep.subr.mxu0 0.0
  %3058 = vmatpush1.msra.mxu0 0.0
  %3059 = vmatprep.subr.mxu0 0.0
  %3060 = vmatpush1.msra.mxu0 0.0
  %3061 = vmatprep.subr.mxu0 0.0
  %3062 = vmatpush1.msra.mxu0 0.0
  %3063 = vmatprep.subr.mxu0 0.0
  %3064 = vmatpush1.msra.mxu0 0.0
  %3065 = vmatprep.subr.mxu0 0.0
  %3066 = vmatpush1.msra.mxu0 0.0
  %3067 = vmatprep.subr.mxu0 0.0
  %3068 = vmatpush1.msra.mxu0 0.0
  %3069 = vmatprep.subr.mxu0 0.0
  %3070 = vmatpush1.msra.mxu0 0.0
  %3071 = vmatprep.subr.mxu0 0.0
  %3072 = vmatpush1.msra.mxu0 0.0
  %3073 = vmatprep.subr.mxu0 0.0
  %3074 = vmatpush1.msra.mxu0 0.0
  %3075 = vmatprep.subr.mxu0 0.0
  %3076 = vmatpush1.msra.mxu0 0.0
  %3077 = vmatprep.subr.mxu0 %v3037
  %3078 = vmatpush1.msra.mxu0 %v3036
  %3079 = vmatprep.subr.mxu0 %v3031
  %3080 = vmatpush1.msra.mxu0 %v3030
  %3081 = vmatprep.subr.mxu0 %v3025
  %3082 = vmatpush1.msra.mxu0 %v3024
  %3083 = vmatprep.subr.mxu0 %v3019
  %3084 = vmatpush1.msra.mxu0 %v3018
  %3085 = vmatprep.subr.mxu0 0.0
  %3086 = vmatpush2.msra.mxu0 0.0
  %3087 = vmatprep.subr.mxu0 0.0
  %3088 = vmatpush2.msra.mxu0 0.0
  %3089 = vmatprep.subr.mxu0 0.0
  %3090 = vmatpush2.msra.mxu0 0.0
  %3091 = vmatprep.subr.mxu0 0.0
  %3092 = vmatpush2.msra.mxu0 0.0
  %3093 = vmatprep.subr.mxu0 0.0
  %3094 = vmatpush2.msra.mxu0 0.0
  %3095 = vmatprep.subr.mxu0 0.0
  %3096 = vmatpush2.msra.mxu0 0.0
  %3097 = vmatprep.subr.mxu0 0.0
  %3098 = vmatpush2.msra.mxu0 0.0
  %3099 = vmatprep.subr.mxu0 0.0
  %3100 = vmatpush2.msra.mxu0 0.0
  %3101 = vmatprep.subr.mxu0 0.0
  %3102 = vmatpush2.msra.mxu0 0.0
  %3103 = vmatprep.subr.mxu0 0.0
  %3104 = vmatpush2.msra.mxu0 0.0
  %3105 = vmatprep.subr.mxu0 0.0
  %3106 = vmatpush2.msra.mxu0 0.0
  %3107 = vmatprep.subr.mxu0 0.0
  %3108 = vmatpush2.msra.mxu0 0.0
  %3109 = vmatprep.subr.mxu0 0.0
  %3110 = vmatpush2.msra.mxu0 0.0
  %3111 = vmatprep.subr.mxu0 0.0
  %3112 = vmatpush2.msra.mxu0 0.0
  %3113 = vmatprep.subr.mxu0 0.0
  %3114 = vmatpush2.msra.mxu0 0.0
  %3115 = vmatprep.subr.mxu0 0.0
  %3116 = vmatpush2.msra.mxu0 0.0
  %3117 = vmatprep.mubr.f32.mxu0 0.0
  %3118 = vmatmul.mubr.f32.gmra.mxu0 %v3051
  %v3119 = vpop.f32.mrf.mxu0
  %v3120 = vadd.f32 %v3047, %v3119
  %v3121 = vpop.f32.mrf.mxu0
  %v3122 = vadd.f32 %v3047, %v3121
  %3123 = vdwg.mxu0
  %3124 = vmatprep.subr.mxu0 0.0
  %3125 = vmatpush1.msra.mxu0 0.0
  %3126 = vmatprep.subr.mxu0 0.0
  %3127 = vmatpush1.msra.mxu0 0.0
  %3128 = vmatprep.subr.mxu0 0.0
  %3129 = vmatpush1.msra.mxu0 0.0
  %3130 = vmatprep.subr.mxu0 0.0
  %3131 = vmatpush1.msra.mxu0 0.0
  %3132 = vmatprep.subr.mxu0 0.0
  %3133 = vmatpush1.msra.mxu0 0.0
  %3134 = vmatprep.subr.mxu0 0.0
  %3135 = vmatpush1.msra.mxu0 0.0
  %3136 = vmatprep.subr.mxu0 0.0
  %3137 = vmatpush1.msra.mxu0 0.0
  %3138 = vmatprep.subr.mxu0 0.0
  %3139 = vmatpush1.msra.mxu0 0.0
  %3140 = vmatprep.subr.mxu0 0.0
  %3141 = vmatpush1.msra.mxu0 0.0
  %3142 = vmatprep.subr.mxu0 0.0
  %3143 = vmatpush1.msra.mxu0 0.0
  %3144 = vmatprep.subr.mxu0 0.0
  %3145 = vmatpush1.msra.mxu0 0.0
  %3146 = vmatprep.subr.mxu0 0.0
  %3147 = vmatpush1.msra.mxu0 0.0
  %3148 = vmatprep.subr.mxu0 %v3039
  %3149 = vmatpush1.msra.mxu0 %v3038
  %3150 = vmatprep.subr.mxu0 %v3033
  %3151 = vmatpush1.msra.mxu0 %v3032
  %3152 = vmatprep.subr.mxu0 %v3027
  %3153 = vmatpush1.msra.mxu0 %v3026
  %3154 = vmatprep.subr.mxu0 %v3021
  %3155 = vmatpush1.msra.mxu0 %v3020
  %3156 = vmatprep.subr.mxu0 0.0
  %3157 = vmatpush2.msra.mxu0 0.0
  %3158 = vmatprep.subr.mxu0 0.0
  %3159 = vmatpush2.msra.mxu0 0.0
  %3160 = vmatprep.subr.mxu0 0.0
  %3161 = vmatpush2.msra.mxu0 0.0
  %3162 = vmatprep.subr.mxu0 0.0
  %3163 = vmatpush2.msra.mxu0 0.0
  %3164 = vmatprep.subr.mxu0 0.0
  %3165 = vmatpush2.msra.mxu0 0.0
  %3166 = vmatprep.subr.mxu0 0.0
  %3167 = vmatpush2.msra.mxu0 0.0
  %3168 = vmatprep.subr.mxu0 0.0
  %3169 = vmatpush2.msra.mxu0 0.0
  %3170 = vmatprep.subr.mxu0 0.0
  %3171 = vmatpush2.msra.mxu0 0.0
  %3172 = vmatprep.subr.mxu0 0.0
  %3173 = vmatpush2.msra.mxu0 0.0
  %3174 = vmatprep.subr.mxu0 0.0
  %3175 = vmatpush2.msra.mxu0 0.0
  %3176 = vmatprep.subr.mxu0 0.0
  %3177 = vmatpush2.msra.mxu0 0.0
  %3178 = vmatprep.subr.mxu0 0.0
  %3179 = vmatpush2.msra.mxu0 0.0
  %3180 = vmatprep.subr.mxu0 0.0
  %3181 = vmatpush2.msra.mxu0 0.0
  %3182 = vmatprep.subr.mxu0 0.0
  %3183 = vmatpush2.msra.mxu0 0.0
  %3184 = vmatprep.subr.mxu0 0.0
  %3185 = vmatpush2.msra.mxu0 0.0
  %3186 = vmatprep.subr.mxu0 0.0
  %3187 = vmatpush2.msra.mxu0 0.0
  %3188 = vmatprep.mubr.f32.mxu0 0.0
  %3189 = vmatmul.mubr.f32.gmra.mxu0 %v3051
  %v3190 = vpop.f32.mrf.mxu0
  %v3191 = vadd.f32 %v3047, %v3190
  %v3192 = vpop.f32.mrf.mxu0
  %v3193 = vadd.f32 %v3047, %v3192
  %3194 = vdwg.mxu0
  %3195 = vmatprep.subr.mxu0 0.0
  %3196 = vmatpush1.msra.mxu0 0.0
  %3197 = vmatprep.subr.mxu0 0.0
  %3198 = vmatpush1.msra.mxu0 0.0
  %3199 = vmatprep.subr.mxu0 0.0
  %3200 = vmatpush1.msra.mxu0 0.0
  %3201 = vmatprep.subr.mxu0 0.0
  %3202 = vmatpush1.msra.mxu0 0.0
  %3203 = vmatprep.subr.mxu0 0.0
  %3204 = vmatpush1.msra.mxu0 0.0
  %3205 = vmatprep.subr.mxu0 0.0
  %3206 = vmatpush1.msra.mxu0 0.0
  %3207 = vmatprep.subr.mxu0 0.0
  %3208 = vmatpush1.msra.mxu0 0.0
  %3209 = vmatprep.subr.mxu0 0.0
  %3210 = vmatpush1.msra.mxu0 0.0
  %3211 = vmatprep.subr.mxu0 0.0
  %3212 = vmatpush1.msra.mxu0 0.0
  %3213 = vmatprep.subr.mxu0 0.0
  %3214 = vmatpush1.msra.mxu0 0.0
  %3215 = vmatprep.subr.mxu0 0.0
  %3216 = vmatpush1.msra.mxu0 0.0
  %3217 = vmatprep.subr.mxu0 0.0
  %3218 = vmatpush1.msra.mxu0 0.0
  %3219 = vmatprep.subr.mxu0 %v3041
  %3220 = vmatpush1.msra.mxu0 %v3040
  %3221 = vmatprep.subr.mxu0 %v3035
  %3222 = vmatpush1.msra.mxu0 %v3034
  %3223 = vmatprep.subr.mxu0 %v3029
  %3224 = vmatpush1.msra.mxu0 %v3028
  %3225 = vmatprep.subr.mxu0 %v3023
  %3226 = vmatpush1.msra.mxu0 %v3022
  %3227 = vmatprep.subr.mxu0 0.0
  %3228 = vmatpush2.msra.mxu0 0.0
  %3229 = vmatprep.subr.mxu0 0.0
  %3230 = vmatpush2.msra.mxu0 0.0
  %3231 = vmatprep.subr.mxu0 0.0
  %3232 = vmatpush2.msra.mxu0 0.0
  %3233 = vmatprep.subr.mxu0 0.0
  %3234 = vmatpush2.msra.mxu0 0.0
  %3235 = vmatprep.subr.mxu0 0.0
  %3236 = vmatpush2.msra.mxu0 0.0
  %3237 = vmatprep.subr.mxu0 0.0
  %3238 = vmatpush2.msra.mxu0 0.0
  %3239 = vmatprep.subr.mxu0 0.0
  %3240 = vmatpush2.msra.mxu0 0.0
  %3241 = vmatprep.subr.mxu0 0.0
  %3242 = vmatpush2.msra.mxu0 0.0
  %3243 = vmatprep.subr.mxu0 0.0
  %3244 = vmatpush2.msra.mxu0 0.0
  %3245 = vmatprep.subr.mxu0 0.0
  %3246 = vmatpush2.msra.mxu0 0.0
  %3247 = vmatprep.subr.mxu0 0.0
  %3248 = vmatpush2.msra.mxu0 0.0
  %3249 = vmatprep.subr.mxu0 0.0
  %3250 = vmatpush2.msra.mxu0 0.0
  %3251 = vmatprep.subr.mxu0 0.0
  %3252 = vmatpush2.msra.mxu0 0.0
  %3253 = vmatprep.subr.mxu0 0.0
  %3254 = vmatpush2.msra.mxu0 0.0
  %3255 = vmatprep.subr.mxu0 0.0
  %3256 = vmatpush2.msra.mxu0 0.0
  %3257 = vmatprep.subr.mxu0 0.0
  %3258 = vmatpush2.msra.mxu0 0.0
  %3259 = vmatprep.mubr.f32.mxu0 0.0
  %3260 = vmatmul.mubr.f32.gmra.mxu0 %v3051
  %v3261 = vpop.f32.mrf.mxu0
  %v3262 = vadd.f32 %v3047, %v3261
  %v3263 = vpop.f32.mrf.mxu0
  %v3264 = vadd.f32 %v3047, %v3263
  %3265 = vdwg.mxu0
  %v3266 = vrot.slane %v3120, 4
  %v3267 = vmax.f32 %v3120, %v3266
  %v3268 = vrot.slane %v3267, 2
  %v3269 = vmax.f32 %v3267, %v3268
  %v3270 = vrot.slane %v3269, 1
  %v3271 = vmax.f32 %v3269, %v3270
  %v3272 = vrot.slane %v3122, 4
  %v3273 = vmax.f32 %v3122, %v3272
  %v3274 = vrot.slane %v3273, 2
  %v3275 = vmax.f32 %v3273, %v3274
  %v3276 = vrot.slane %v3275, 1
  %v3277 = vmax.f32 %v3275, %v3276
  %v3278 = vrot.slane %v3191, 4
  %v3279 = vmax.f32 %v3191, %v3278
  %v3280 = vrot.slane %v3279, 2
  %v3281 = vmax.f32 %v3279, %v3280
  %v3282 = vrot.slane %v3281, 1
  %v3283 = vmax.f32 %v3281, %v3282
  %v3284 = vrot.slane %v3193, 4
  %v3285 = vmax.f32 %v3193, %v3284
  %v3286 = vrot.slane %v3285, 2
  %v3287 = vmax.f32 %v3285, %v3286
  %v3288 = vrot.slane %v3287, 1
  %v3289 = vmax.f32 %v3287, %v3288
  %v3290 = vrot.slane %v3262, 4
  %v3291 = vmax.f32 %v3262, %v3290
  %v3292 = vrot.slane %v3291, 2
  %v3293 = vmax.f32 %v3291, %v3292
  %v3294 = vrot.slane %v3293, 1
  %v3295 = vmax.f32 %v3293, %v3294
  %v3296 = vrot.slane %v3264, 4
  %v3297 = vmax.f32 %v3264, %v3296
  %v3298 = vrot.slane %v3297, 2
  %v3299 = vmax.f32 %v3297, %v3298
  %v3300 = vrot.slane %v3299, 1
  %v3301 = vmax.f32 %v3299, %v3300
  %v3302 = vsub.f32 %v3120, %v3271
  %v3303 = vsub.f32 %v3122, %v3277
  %v3304 = vsub.f32 %v3191, %v3283
  %v3305 = vsub.f32 %v3193, %v3289
  %v3306 = vsub.f32 %v3262, %v3295
  %v3307 = vsub.f32 %v3264, %v3301
  %v3308 = vmul.f32 %v3302, 1.442695
  %v3309 = vpow.pop %v3308
  %v3310 = vmul.f32 %v3303, 1.442695
  %v3311 = vpow.pop %v3310
  %v3312 = vmul.f32 %v3304, 1.442695
  %v3313 = vpow.pop %v3312
  %v3314 = vmul.f32 %v3305, 1.442695
  %v3315 = vpow.pop %v3314
  %v3316 = vmul.f32 %v3306, 1.442695
  %v3317 = vpow.pop %v3316
  %v3318 = vmul.f32 %v3307, 1.442695
  %v3319 = vpow.pop %v3318
  %v3320 = vrot.slane %v3309, 4
  %v3321 = vadd.f32 %v3309, %v3320
  %v3322 = vrot.slane %v3321, 2
  %v3323 = vadd.f32 %v3321, %v3322
  %v3324 = vrot.slane %v3323, 1
  %v3325 = vadd.f32 %v3323, %v3324
  %v3326 = vrot.slane %v3311, 4
  %v3327 = vadd.f32 %v3311, %v3326
  %v3328 = vrot.slane %v3327, 2
  %v3329 = vadd.f32 %v3327, %v3328
  %v3330 = vrot.slane %v3329, 1
  %v3331 = vadd.f32 %v3329, %v3330
  %v3332 = vrot.slane %v3313, 4
  %v3333 = vadd.f32 %v3313, %v3332
  %v3334 = vrot.slane %v3333, 2
  %v3335 = vadd.f32 %v3333, %v3334
  %v3336 = vrot.slane %v3335, 1
  %v3337 = vadd.f32 %v3335, %v3336
  %v3338 = vrot.slane %v3315, 4
  %v3339 = vadd.f32 %v3315, %v3338
  %v3340 = vrot.slane %v3339, 2
  %v3341 = vadd.f32 %v3339, %v3340
  %v3342 = vrot.slane %v3341, 1
  %v3343 = vadd.f32 %v3341, %v3342
  %v3344 = vrot.slane %v3317, 4
  %v3345 = vadd.f32 %v3317, %v3344
  %v3346 = vrot.slane %v3345, 2
  %v3347 = vadd.f32 %v3345, %v3346
  %v3348 = vrot.slane %v3347, 1
  %v3349 = vadd.f32 %v3347, %v3348
  %v3350 = vrot.slane %v3319, 4
  %v3351 = vadd.f32 %v3319, %v3350
  %v3352 = vrot.slane %v3351, 2
  %v3353 = vadd.f32 %v3351, %v3352
  %v3354 = vrot.slane %v3353, 1
  %v3355 = vadd.f32 %v3353, %v3354
  %v3356 = vrcp.pop %v3325
  %v3357 = vmul.f32 %v3309, %v3356
  %v3358 = vrcp.pop %v3331
  %v3359 = vmul.f32 %v3311, %v3358
  %v3360 = vrcp.pop %v3337
  %v3361 = vmul.f32 %v3313, %v3360
  %v3362 = vrcp.pop %v3343
  %v3363 = vmul.f32 %v3315, %v3362
  %v3364 = vrcp.pop %v3349
  %v3365 = vmul.f32 %v3317, %v3364
  %v3366 = vrcp.pop %v3355
  %v3367 = vmul.f32 %v3319, %v3366
  %3368 = vst [vmem:[%s8] sm:$0xff] %v3357
  %3369 = vst [vmem:[%s8 + $0x8] sm:$0xff] %v3359
  %3370 = vst [vmem:[%s8 + $0x10] sm:$0xff] %v3361
  %3371 = vst [vmem:[%s8 + $0x18] sm:$0xff] %v3363
  %3372 = vst [vmem:[%s8 + $0x20] sm:$0xff] %v3365
  %3373 = vst [vmem:[%s8 + $0x28] sm:$0xff] %v3367
  // Predicated region
  $region34: #{second_branch_forward.1} parent=0 // pred_check
    _
  $region35: #{second_branch_forward.1} parent=0 // pred_check_branch
    %3375 = sbr.rel (0) target = $region37
  $region36: #{second_branch_forward.1} parent=0 // pred_region
    _
  $region37: #{second_branch_forward.1} parent=0 // pred_fallthru
    _
  // Predicated region
  $region38: #{second_branch_forward.1} parent=0 // pred_check
    _
  $region39: #{second_branch_forward.1} parent=0 // pred_check_branch
    %3377 = sbr.rel (0) target = $region41
  $region40: #{second_branch_forward.1} parent=0 // pred_region
    _
  $region41: #{second_branch_forward.1} parent=0 // pred_fallthru
    _

</llo_original>
